<compile_context>
chip_gen: v7x
topology: tpu7x:2x2x1
jax: 0.10.0
libtpu: 0.0.40
codegen_flags: <defaults>
</compile_context>

<pallas_src>
import functools

import jax
import jax.numpy as jnp
from jax.experimental import pallas as pl
from jax.experimental.pallas import tpu as pltpu

FEA_DIM = 512
EMB_DIM = 64
N_COND = 5
CONV_OUT = 32
KH = KW = 3
P_DIM = 3 * KH * KW          # 27
LRELU_SLOPE = 0.01           # PyTorch nn.LeakyReLU default
OUT_PAD = 128                # lane-dense padding of the 3-wide output head
TILE_M = 8                   # images processed per grid step


# ---------------------------------------------------------------- kernel ----
def _fused_kernel(patch_ref, ce_ref, pool_ref,
                  wconv_ref, bconv_ref, wfc_ref, bfc_ref,
                  w1, b1, w2, b2, w3, b3,
                  w4, b4, w5, b5, w6, b6, w7, b7,
                  out_ref, emb_ref):
    """One grid step = TILE_M images: backbone surrogate fused with the
    cond-embedding gate MLP and both output heads."""
    f32 = jnp.float32

    def lrelu(v):
        return jnp.where(v > 0, v, LRELU_SLOPE * v)

    def lin(x, w_ref, b_ref):
        return jnp.dot(x, w_ref[...], preferred_element_type=f32) + b_ref[...]

    # ---- backbone surrogate: conv3x3 -> ReLU -> GAP -> FC(512) --------------
    # conv as one lane-dense matmul over all TILE_M images:
    #   (C, P) @ (P, TILE_M*HW) -> (C, TILE_M*HW)
    pat = patch_ref[0]
    s = jnp.dot(wconv_ref[...], pat, preferred_element_type=f32)
    s = jnp.maximum(s + bconv_ref[...], 0.0)                       # bias + ReLU
    # global average pool per image on the MXU (block-diagonal 1/HW matrix):
    #   (C, TILE_M*HW) @ (TILE_M*HW, TILE_M) -> (C, TILE_M)
    gap = jnp.dot(s, pool_ref[...], preferred_element_type=f32)
    feats = lin(gap.T, wfc_ref, bfc_ref)                           # (TILE_M, 512)

    # ---- cond_fea_extractor gate (embedding row already gathered) -----------
    h = lrelu(lin(ce_ref[...], w1, b1))                            # 64  -> 128
    h = lrelu(lin(h, w2, b2))                                      # 128 -> 256
    z = lin(h, w3, b3)                                             # 256 -> 512
    gate = 1.0 / (1.0 + jnp.exp(-z))                               # sigmoid

    x = feats * gate                                               # Dropout(0.1): identity at inference

    # ---- output heads --------------------------------------------------------
    o = lrelu(lin(x, w4, b4))                                      # 512 -> 512
    out_ref[...] = lin(o, w5, b5)                                  # 512 -> 3 (lane-padded to 128)
    e = lrelu(lin(x, w6, b6))                                      # 512 -> 512
    emb_ref[...] = lin(e, w7, b7)                                  # 512 -> 128


# ------------------------------------------------------------------- glue ----
def _im2col_t(x):
    """x: (N, d, H, W) NCHW -> (N, d*KH*KW, H*W); 3x3 conv, pad=1, stride=1."""
    n, d, hgt, wid = x.shape
    xp = jnp.pad(x, ((0, 0), (0, 0), (1, 1), (1, 1)))
    cols = []
    for di in range(KH):
        for dj in range(KW):
            cols.append(xp[:, :, di:di + hgt, dj:dj + wid])        # (N, d, H, W)
    pat = jnp.stack(cols, axis=2)                                  # (N, d, 9, H, W)
    return pat.reshape(n, d * KH * KW, hgt * wid)                  # (N, P, HW)


def init_params(key):
    def dense(k, fin, fout):
        kw, kb = jax.random.split(k)
        lim = 1.0 / float(fin) ** 0.5
        w = jax.random.uniform(kw, (fin, fout), jnp.float32, -lim, lim)
        b = jax.random.uniform(kb, (1, fout), jnp.float32, -lim, lim)
        return w, b

    keys = jax.random.split(key, 10)
    p = {}
    p['wconv'], p['bconv'] = dense(keys[0], P_DIM, CONV_OUT)
    p['wfc'], p['bfc'] = dense(keys[1], CONV_OUT, FEA_DIM)
    p['emb'] = jax.random.normal(keys[2], (N_COND, EMB_DIM), jnp.float32)
    p['w1'], p['b1'] = dense(keys[3], EMB_DIM, 128)
    p['w2'], p['b2'] = dense(keys[4], 128, 256)
    p['w3'], p['b3'] = dense(keys[5], 256, FEA_DIM)
    p['w4'], p['b4'] = dense(keys[6], FEA_DIM, FEA_DIM)
    p['w5'], p['b5'] = dense(keys[7], FEA_DIM, 3)
    p['w6'], p['b6'] = dense(keys[8], FEA_DIM, FEA_DIM)
    p['w7'], p['b7'] = dense(keys[9], FEA_DIM, 128)
    return p


@functools.partial(jax.jit, static_argnames=("with_emb",))
def sag_model_25d_forward(params, x, cond, with_emb=False):
    b, k, d, hgt, wid = x.shape
    assert d == 3, "in_chans=3"
    levels = k // 5
    n = b * k
    hw = hgt * wid
    n_pad = ((n + TILE_M - 1) // TILE_M) * TILE_M
    num_tiles = n_pad // TILE_M

    f32 = jnp.float32

    x = x.reshape(n, d, hgt, wid).astype(f32)
    cond_flat = cond.reshape(-1).astype(jnp.int32)

    # ---- patches: (num_tiles, P, TILE_M*HW), HW in lanes (lane-dense) --------
    patches = _im2col_t(x)                                         # (n, P, HW)
    patches = jnp.pad(patches, ((0, n_pad - n), (0, 0), (0, 0)))
    patches = patches.reshape(num_tiles, TILE_M, P_DIM, hw)
    patches = jnp.transpose(patches, (0, 2, 1, 3))
    patches = patches.reshape(num_tiles, P_DIM, TILE_M * hw).astype(f32)

    # ---- embedding lookup as a plain gather (no one-hot matmul) --------------
    ce = params['emb'][cond_flat]                                  # (n, 64)
    ce = jnp.pad(ce, ((0, n_pad - n), (0, 0))).astype(f32)

    # ---- per-image average-pool matrix (block diagonal of 1/HW) --------------
    img_id = jnp.arange(TILE_M * hw, dtype=jnp.int32) // hw
    pool = (img_id[:, None] == jnp.arange(TILE_M, dtype=jnp.int32)[None, :])
    pool = pool.astype(f32) / float(hw)                            # (TILE_M*HW, TILE_M)

    # ---- f32 weights; pad the 3-wide head to 128 lanes -----------------------
    wconv_t = params['wconv'].T.astype(f32)                        # (C, P)
    bconv_c = params['bconv'].reshape(CONV_OUT, 1).astype(f32)     # (C, 1)
    w5p = jnp.zeros((FEA_DIM, OUT_PAD), f32).at[:, :3].set(params['w5'])
    b5p = jnp.zeros((1, OUT_PAD), f32).at[:, :3].set(params['b5'])

    weights = [
        wconv_t, bconv_c, params['wfc'].astype(f32), params['bfc'].astype(f32),
        params['w1'].astype(f32), params['b1'].astype(f32),
        params['w2'].astype(f32), params['b2'].astype(f32),
        params['w3'].astype(f32), params['b3'].astype(f32),
        params['w4'].astype(f32), params['b4'].astype(f32),
        w5p, b5p,
        params['w6'].astype(f32), params['b6'].astype(f32),
        params['w7'].astype(f32), params['b7'].astype(f32),
    ]

    def resident(a):   # whole array, constant index map -> stays in VMEM
        return pl.BlockSpec(a.shape, lambda i, nd=a.ndim: (0,) * nd)

    in_specs = (
        [pl.BlockSpec((1, P_DIM, TILE_M * hw), lambda i: (i, 0, 0)),
         pl.BlockSpec((TILE_M, EMB_DIM), lambda i: (i, 0)),
         resident(pool)]
        + [resident(a) for a in weights]
    )

    out_pad, emb_pad = pl.pallas_call(
        _fused_kernel,
        out_shape=(jax.ShapeDtypeStruct((n_pad, OUT_PAD), f32),
                   jax.ShapeDtypeStruct((n_pad, 128), f32)),
        grid=(num_tiles,),
        in_specs=in_specs,
        out_specs=(pl.BlockSpec((TILE_M, OUT_PAD), lambda i: (i, 0)),
                   pl.BlockSpec((TILE_M, 128), lambda i: (i, 0))),
        compiler_params=pltpu.CompilerParams(
            dimension_semantics=("parallel",)),
    )(patches, ce, pool, *weights)

    out = out_pad[:n, :3].reshape(b, k, 3).reshape(b, -1)          # (b, 3k)
    if with_emb:
        embeds = emb_pad[:n].reshape(b, -1, levels, 128)
        embeds = jnp.transpose(embeds, (0, 2, 1, 3))               # matches .permute(0,2,1,3)
        embeds = embeds.reshape(b, 5, -1)
        return out, embeds
    return out


if __name__ == "__main__":
    b, k, d, hgt, wid = 2, 5, 3, 16, 16
    key = jax.random.PRNGKey(0)
    kx, kc, kp = jax.random.split(key, 3)
    x = jax.random.normal(kx, (b, k, d, hgt, wid), dtype=jnp.float32)
    cond = jax.random.randint(kc, (b, k), 0, 5)
    params = init_params(kp)

    out = sag_model_25d_forward(params, x, cond, with_emb=False)
    out = jax.block_until_ready(out)
    assert out.shape == (b, k * 3), out.shape

    out2, emb = sag_model_25d_forward(params, x, cond, with_emb=True)
    jax.block_until_ready((out2, emb))
    assert emb.shape == (b, 5, (k // 5) * 128), emb.shape

    print("KERNEL_OK")
</pallas_src>

<mosaic_0001>
module attributes {stable_mosaic.version = 11 : i64} {
  func.func @_fused_kernel(%arg0: i32, %arg1: memref<1x27x2048xf32, #tpu.memory_space<vmem>>, %arg2: memref<8x64xf32, #tpu.memory_space<vmem>>, %arg3: memref<2048x8xf32, #tpu.memory_space<vmem>>, %arg4: memref<32x27xf32, #tpu.memory_space<vmem>>, %arg5: memref<32x1xf32, #tpu.memory_space<vmem>>, %arg6: memref<32x512xf32, #tpu.memory_space<vmem>>, %arg7: memref<1x512xf32, #tpu.memory_space<vmem>>, %arg8: memref<64x128xf32, #tpu.memory_space<vmem>>, %arg9: memref<1x128xf32, #tpu.memory_space<vmem>>, %arg10: memref<128x256xf32, #tpu.memory_space<vmem>>, %arg11: memref<1x256xf32, #tpu.memory_space<vmem>>, %arg12: memref<256x512xf32, #tpu.memory_space<vmem>>, %arg13: memref<1x512xf32, #tpu.memory_space<vmem>>, %arg14: memref<512x512xf32, #tpu.memory_space<vmem>>, %arg15: memref<1x512xf32, #tpu.memory_space<vmem>>, %arg16: memref<512x128xf32, #tpu.memory_space<vmem>>, %arg17: memref<1x128xf32, #tpu.memory_space<vmem>>, %arg18: memref<512x512xf32, #tpu.memory_space<vmem>>, %arg19: memref<1x512xf32, #tpu.memory_space<vmem>>, %arg20: memref<512x128xf32, #tpu.memory_space<vmem>>, %arg21: memref<1x128xf32, #tpu.memory_space<vmem>>, %arg22: memref<8x128xf32, #tpu.memory_space<vmem>>, %arg23: memref<8x128xf32, #tpu.memory_space<vmem>>) attributes {dimension_semantics = [#tpu.dimension_semantics<parallel>], iteration_bounds = array<i64: 2>, scalar_prefetch = 0 : i64, scratch_operands = 0 : i64, tpu.core_type = #tpu.core_type<tc>, window_params = [{transform_indices = @transform_0, window_bounds = array<i64: 1, 27, 2048>}, {transform_indices = @transform_1, window_bounds = array<i64: 8, 64>}, {pipeline_mode = #tpu.pipeline_mode<synchronous>, transform_indices = @transform_2, window_bounds = array<i64: 2048, 8>}, {pipeline_mode = #tpu.pipeline_mode<synchronous>, transform_indices = @transform_3, window_bounds = array<i64: 32, 27>}, {pipeline_mode = #tpu.pipeline_mode<synchronous>, transform_indices = @transform_4, window_bounds = array<i64: 32, 1>}, {pipeline_mode = #tpu.pipeline_mode<synchronous>, transform_indices = @transform_5, window_bounds = array<i64: 32, 512>}, {pipeline_mode = #tpu.pipeline_mode<synchronous>, transform_indices = @transform_6, window_bounds = array<i64: 1, 512>}, {pipeline_mode = #tpu.pipeline_mode<synchronous>, transform_indices = @transform_7, window_bounds = array<i64: 64, 128>}, {pipeline_mode = #tpu.pipeline_mode<synchronous>, transform_indices = @transform_8, window_bounds = array<i64: 1, 128>}, {pipeline_mode = #tpu.pipeline_mode<synchronous>, transform_indices = @transform_9, window_bounds = array<i64: 128, 256>}, {pipeline_mode = #tpu.pipeline_mode<synchronous>, transform_indices = @transform_10, window_bounds = array<i64: 1, 256>}, {pipeline_mode = #tpu.pipeline_mode<synchronous>, transform_indices = @transform_11, window_bounds = array<i64: 256, 512>}, {pipeline_mode = #tpu.pipeline_mode<synchronous>, transform_indices = @transform_12, window_bounds = array<i64: 1, 512>}, {pipeline_mode = #tpu.pipeline_mode<synchronous>, transform_indices = @transform_13, window_bounds = array<i64: 512, 512>}, {pipeline_mode = #tpu.pipeline_mode<synchronous>, transform_indices = @transform_14, window_bounds = array<i64: 1, 512>}, {pipeline_mode = #tpu.pipeline_mode<synchronous>, transform_indices = @transform_15, window_bounds = array<i64: 512, 128>}, {pipeline_mode = #tpu.pipeline_mode<synchronous>, transform_indices = @transform_16, window_bounds = array<i64: 1, 128>}, {pipeline_mode = #tpu.pipeline_mode<synchronous>, transform_indices = @transform_17, window_bounds = array<i64: 512, 512>}, {pipeline_mode = #tpu.pipeline_mode<synchronous>, transform_indices = @transform_18, window_bounds = array<i64: 1, 512>}, {pipeline_mode = #tpu.pipeline_mode<synchronous>, transform_indices = @transform_19, window_bounds = array<i64: 512, 128>}, {pipeline_mode = #tpu.pipeline_mode<synchronous>, transform_indices = @transform_20, window_bounds = array<i64: 1, 128>}, {transform_indices = @transform_21, window_bounds = array<i64: 8, 128>}, {transform_indices = @transform_22, window_bounds = array<i64: 8, 128>}]} {
    %c0 = arith.constant 0 : index
    %c0_0 = arith.constant 0 : index
    %c0_1 = arith.constant 0 : index
    %0 = vector.load %arg1[%c0, %c0_0, %c0_1] : memref<1x27x2048xf32, #tpu.memory_space<vmem>>, vector<1x27x2048xf32>
    %1 = vector.shape_cast %0 : vector<1x27x2048xf32> to vector<27x2048xf32>
    %c0_2 = arith.constant 0 : index
    %c0_3 = arith.constant 0 : index
    %2 = vector.load %arg4[%c0_2, %c0_3] : memref<32x27xf32, #tpu.memory_space<vmem>>, vector<32x27xf32>
    %cst = arith.constant dense<0.000000e+00> : vector<32x2048xf32>
    %3 = tpu.matmul %2, %1, %cst {dimension_numbers = #tpu.dot_dimension_numbers<[1], [0], [0], [1], [0, 0, 1, 1], [], []>} : vector<32x27xf32>, vector<27x2048xf32>, vector<32x2048xf32> -> vector<32x2048xf32>
    %c0_4 = arith.constant 0 : index
    %c0_5 = arith.constant 0 : index
    %4 = vector.load %arg5[%c0_4, %c0_5] : memref<32x1xf32, #tpu.memory_space<vmem>>, vector<32x1xf32>
    %5 = vector.broadcast %4 : vector<32x1xf32> to vector<32x2048xf32>
    %6 = arith.addf %3, %5 : vector<32x2048xf32>
    %cst_6 = arith.constant 0.000000e+00 : f32
    %7 = vector.broadcast %cst_6 : f32 to vector<32x2048xf32>
    %8 = arith.maximumf %6, %7 : vector<32x2048xf32>
    %c0_7 = arith.constant 0 : index
    %c0_8 = arith.constant 0 : index
    %9 = vector.load %arg3[%c0_7, %c0_8] : memref<2048x8xf32, #tpu.memory_space<vmem>>, vector<2048x8xf32>
    %cst_9 = arith.constant dense<0.000000e+00> : vector<32x8xf32>
    %10 = tpu.matmul %8, %9, %cst_9 {dimension_numbers = #tpu.dot_dimension_numbers<[1], [0], [0], [1], [0, 0, 1, 1], [], []>} : vector<32x2048xf32>, vector<2048x8xf32>, vector<32x8xf32> -> vector<32x8xf32>
    %11 = tpu.transpose %10, [1, 0] : vector<32x8xf32> -> vector<8x32xf32>
    %c0_10 = arith.constant 0 : index
    %c0_11 = arith.constant 0 : index
    %12 = vector.load %arg6[%c0_10, %c0_11] : memref<32x512xf32, #tpu.memory_space<vmem>>, vector<32x512xf32>
    %cst_12 = arith.constant dense<0.000000e+00> : vector<8x512xf32>
    %13 = tpu.matmul %11, %12, %cst_12 {dimension_numbers = #tpu.dot_dimension_numbers<[1], [0], [0], [1], [0, 0, 1, 1], [], []>} : vector<8x32xf32>, vector<32x512xf32>, vector<8x512xf32> -> vector<8x512xf32>
    %c0_13 = arith.constant 0 : index
    %c0_14 = arith.constant 0 : index
    %14 = vector.load %arg7[%c0_13, %c0_14] : memref<1x512xf32, #tpu.memory_space<vmem>>, vector<1x512xf32>
    %15 = vector.broadcast %14 : vector<1x512xf32> to vector<8x512xf32>
    %16 = arith.addf %13, %15 : vector<8x512xf32>
    %c0_15 = arith.constant 0 : index
    %c0_16 = arith.constant 0 : index
    %17 = vector.load %arg2[%c0_15, %c0_16] : memref<8x64xf32, #tpu.memory_space<vmem>>, vector<8x64xf32>
    %c0_17 = arith.constant 0 : index
    %c0_18 = arith.constant 0 : index
    %18 = vector.load %arg8[%c0_17, %c0_18] : memref<64x128xf32, #tpu.memory_space<vmem>>, vector<64x128xf32>
    %cst_19 = arith.constant dense<0.000000e+00> : vector<8x128xf32>
    %19 = tpu.matmul %17, %18, %cst_19 {dimension_numbers = #tpu.dot_dimension_numbers<[1], [0], [0], [1], [0, 0, 1, 1], [], []>} : vector<8x64xf32>, vector<64x128xf32>, vector<8x128xf32> -> vector<8x128xf32>
    %c0_20 = arith.constant 0 : index
    %c0_21 = arith.constant 0 : index
    %20 = vector.load %arg9[%c0_20, %c0_21] : memref<1x128xf32, #tpu.memory_space<vmem>>, vector<1x128xf32>
    %21 = vector.broadcast %20 : vector<1x128xf32> to vector<8x128xf32>
    %22 = arith.addf %19, %21 : vector<8x128xf32>
    %cst_22 = arith.constant 0.000000e+00 : f32
    %23 = vector.broadcast %cst_22 : f32 to vector<8x128xf32>
    %24 = arith.cmpf ogt, %22, %23 : vector<8x128xf32>
    %cst_23 = arith.constant 0.00999999977 : f32
    %25 = vector.broadcast %cst_23 : f32 to vector<8x128xf32>
    %26 = arith.mulf %25, %22 : vector<8x128xf32>
    %27 = arith.select %24, %22, %26 : vector<8x128xi1>, vector<8x128xf32>
    %c0_24 = arith.constant 0 : index
    %c0_25 = arith.constant 0 : index
    %28 = vector.load %arg10[%c0_24, %c0_25] : memref<128x256xf32, #tpu.memory_space<vmem>>, vector<128x256xf32>
    %cst_26 = arith.constant dense<0.000000e+00> : vector<8x256xf32>
    %29 = tpu.matmul %27, %28, %cst_26 {dimension_numbers = #tpu.dot_dimension_numbers<[1], [0], [0], [1], [0, 0, 1, 1], [], []>} : vector<8x128xf32>, vector<128x256xf32>, vector<8x256xf32> -> vector<8x256xf32>
    %c0_27 = arith.constant 0 : index
    %c0_28 = arith.constant 0 : index
    %30 = vector.load %arg11[%c0_27, %c0_28] : memref<1x256xf32, #tpu.memory_space<vmem>>, vector<1x256xf32>
    %31 = vector.broadcast %30 : vector<1x256xf32> to vector<8x256xf32>
    %32 = arith.addf %29, %31 : vector<8x256xf32>
    %cst_29 = arith.constant 0.000000e+00 : f32
    %33 = vector.broadcast %cst_29 : f32 to vector<8x256xf32>
    %34 = arith.cmpf ogt, %32, %33 : vector<8x256xf32>
    %cst_30 = arith.constant 0.00999999977 : f32
    %35 = vector.broadcast %cst_30 : f32 to vector<8x256xf32>
    %36 = arith.mulf %35, %32 : vector<8x256xf32>
    %37 = arith.select %34, %32, %36 : vector<8x256xi1>, vector<8x256xf32>
    %c0_31 = arith.constant 0 : index
    %c0_32 = arith.constant 0 : index
    %38 = vector.load %arg12[%c0_31, %c0_32] : memref<256x512xf32, #tpu.memory_space<vmem>>, vector<256x512xf32>
    %cst_33 = arith.constant dense<0.000000e+00> : vector<8x512xf32>
    %39 = tpu.matmul %37, %38, %cst_33 {dimension_numbers = #tpu.dot_dimension_numbers<[1], [0], [0], [1], [0, 0, 1, 1], [], []>} : vector<8x256xf32>, vector<256x512xf32>, vector<8x512xf32> -> vector<8x512xf32>
    %c0_34 = arith.constant 0 : index
    %c0_35 = arith.constant 0 : index
    %40 = vector.load %arg13[%c0_34, %c0_35] : memref<1x512xf32, #tpu.memory_space<vmem>>, vector<1x512xf32>
    %41 = vector.broadcast %40 : vector<1x512xf32> to vector<8x512xf32>
    %42 = arith.addf %39, %41 : vector<8x512xf32>
    %cst_36 = arith.constant 0.000000e+00 : f32
    %43 = vector.broadcast %cst_36 : f32 to vector<8x512xf32>
    %44 = arith.subf %43, %42 : vector<8x512xf32>
    %45 = math.exp %44 : vector<8x512xf32>
    %cst_37 = arith.constant 1.000000e+00 : f32
    %46 = vector.broadcast %cst_37 : f32 to vector<8x512xf32>
    %47 = arith.addf %46, %45 : vector<8x512xf32>
    %cst_38 = arith.constant 1.000000e+00 : f32
    %48 = vector.broadcast %cst_38 : f32 to vector<8x512xf32>
    %49 = arith.divf %48, %47 : vector<8x512xf32>
    %50 = arith.mulf %16, %49 : vector<8x512xf32>
    %c0_39 = arith.constant 0 : index
    %c0_40 = arith.constant 0 : index
    %51 = vector.load %arg14[%c0_39, %c0_40] : memref<512x512xf32, #tpu.memory_space<vmem>>, vector<512x512xf32>
    %cst_41 = arith.constant dense<0.000000e+00> : vector<8x512xf32>
    %52 = tpu.matmul %50, %51, %cst_41 {dimension_numbers = #tpu.dot_dimension_numbers<[1], [0], [0], [1], [0, 0, 1, 1], [], []>} : vector<8x512xf32>, vector<512x512xf32>, vector<8x512xf32> -> vector<8x512xf32>
    %c0_42 = arith.constant 0 : index
    %c0_43 = arith.constant 0 : index
    %53 = vector.load %arg15[%c0_42, %c0_43] : memref<1x512xf32, #tpu.memory_space<vmem>>, vector<1x512xf32>
    %54 = vector.broadcast %53 : vector<1x512xf32> to vector<8x512xf32>
    %55 = arith.addf %52, %54 : vector<8x512xf32>
    %cst_44 = arith.constant 0.000000e+00 : f32
    %56 = vector.broadcast %cst_44 : f32 to vector<8x512xf32>
    %57 = arith.cmpf ogt, %55, %56 : vector<8x512xf32>
    %cst_45 = arith.constant 0.00999999977 : f32
    %58 = vector.broadcast %cst_45 : f32 to vector<8x512xf32>
    %59 = arith.mulf %58, %55 : vector<8x512xf32>
    %60 = arith.select %57, %55, %59 : vector<8x512xi1>, vector<8x512xf32>
    %c0_46 = arith.constant 0 : index
    %c0_47 = arith.constant 0 : index
    %61 = vector.load %arg16[%c0_46, %c0_47] : memref<512x128xf32, #tpu.memory_space<vmem>>, vector<512x128xf32>
    %cst_48 = arith.constant dense<0.000000e+00> : vector<8x128xf32>
    %62 = tpu.matmul %60, %61, %cst_48 {dimension_numbers = #tpu.dot_dimension_numbers<[1], [0], [0], [1], [0, 0, 1, 1], [], []>} : vector<8x512xf32>, vector<512x128xf32>, vector<8x128xf32> -> vector<8x128xf32>
    %c0_49 = arith.constant 0 : index
    %c0_50 = arith.constant 0 : index
    %63 = vector.load %arg17[%c0_49, %c0_50] : memref<1x128xf32, #tpu.memory_space<vmem>>, vector<1x128xf32>
    %64 = vector.broadcast %63 : vector<1x128xf32> to vector<8x128xf32>
    %65 = arith.addf %62, %64 : vector<8x128xf32>
    %c0_51 = arith.constant 0 : index
    %c0_52 = arith.constant 0 : index
    %66 = vector.load %arg22[%c0_51, %c0_52] : memref<8x128xf32, #tpu.memory_space<vmem>>, vector<8x128xf32>
    tpu.vector_store %arg22[%c0_51, %c0_52], %65 {strides = array<i32>} : memref<8x128xf32, #tpu.memory_space<vmem>>, vector<8x128xf32>,
    %c0_53 = arith.constant 0 : index
    %c0_54 = arith.constant 0 : index
    %67 = vector.load %arg18[%c0_53, %c0_54] : memref<512x512xf32, #tpu.memory_space<vmem>>, vector<512x512xf32>
    %cst_55 = arith.constant dense<0.000000e+00> : vector<8x512xf32>
    %68 = tpu.matmul %50, %67, %cst_55 {dimension_numbers = #tpu.dot_dimension_numbers<[1], [0], [0], [1], [0, 0, 1, 1], [], []>} : vector<8x512xf32>, vector<512x512xf32>, vector<8x512xf32> -> vector<8x512xf32>
    %c0_56 = arith.constant 0 : index
    %c0_57 = arith.constant 0 : index
    %69 = vector.load %arg19[%c0_56, %c0_57] : memref<1x512xf32, #tpu.memory_space<vmem>>, vector<1x512xf32>
    %70 = vector.broadcast %69 : vector<1x512xf32> to vector<8x512xf32>
    %71 = arith.addf %68, %70 : vector<8x512xf32>
    %cst_58 = arith.constant 0.000000e+00 : f32
    %72 = vector.broadcast %cst_58 : f32 to vector<8x512xf32>
    %73 = arith.cmpf ogt, %71, %72 : vector<8x512xf32>
    %cst_59 = arith.constant 0.00999999977 : f32
    %74 = vector.broadcast %cst_59 : f32 to vector<8x512xf32>
    %75 = arith.mulf %74, %71 : vector<8x512xf32>
    %76 = arith.select %73, %71, %75 : vector<8x512xi1>, vector<8x512xf32>
    %c0_60 = arith.constant 0 : index
    %c0_61 = arith.constant 0 : index
    %77 = vector.load %arg20[%c0_60, %c0_61] : memref<512x128xf32, #tpu.memory_space<vmem>>, vector<512x128xf32>
    %cst_62 = arith.constant dense<0.000000e+00> : vector<8x128xf32>
    %78 = tpu.matmul %76, %77, %cst_62 {dimension_numbers = #tpu.dot_dimension_numbers<[1], [0], [0], [1], [0, 0, 1, 1], [], []>} : vector<8x512xf32>, vector<512x128xf32>, vector<8x128xf32> -> vector<8x128xf32>
    %c0_63 = arith.constant 0 : index
    %c0_64 = arith.constant 0 : index
    %79 = vector.load %arg21[%c0_63, %c0_64] : memref<1x128xf32, #tpu.memory_space<vmem>>, vector<1x128xf32>
    %80 = vector.broadcast %79 : vector<1x128xf32> to vector<8x128xf32>
    %81 = arith.addf %78, %80 : vector<8x128xf32>
    %c0_65 = arith.constant 0 : index
    %c0_66 = arith.constant 0 : index
    %82 = vector.load %arg23[%c0_65, %c0_66] : memref<8x128xf32, #tpu.memory_space<vmem>>, vector<8x128xf32>
    tpu.vector_store %arg23[%c0_65, %c0_66], %81 {strides = array<i32>} : memref<8x128xf32, #tpu.memory_space<vmem>>, vector<8x128xf32>,
    return
  }
  func.func @transform_0(%arg0: i32) -> (i32, i32, i32) {
    %c0_i32 = arith.constant 0 : i32
    %c0_i32_0 = arith.constant 0 : i32
    %c0_i32_1 = arith.constant 0 : i32
    return %arg0, %c0_i32, %c0_i32_0 : i32, i32, i32
  }
  func.func @transform_1(%arg0: i32) -> (i32, i32) {
    %c0_i32 = arith.constant 0 : i32
    %c0_i32_0 = arith.constant 0 : i32
    return %arg0, %c0_i32 : i32, i32
  }
  func.func @transform_2(%arg0: i32) -> (i32, i32) {
    %c0_i32 = arith.constant 0 : i32
    %c0_i32_0 = arith.constant 0 : i32
    %c0_i32_1 = arith.constant 0 : i32
    return %c0_i32, %c0_i32_0 : i32, i32
  }
  func.func @transform_3(%arg0: i32) -> (i32, i32) {
    %c0_i32 = arith.constant 0 : i32
    %c0_i32_0 = arith.constant 0 : i32
    %c0_i32_1 = arith.constant 0 : i32
    return %c0_i32, %c0_i32_0 : i32, i32
  }
  func.func @transform_4(%arg0: i32) -> (i32, i32) {
    %c0_i32 = arith.constant 0 : i32
    %c0_i32_0 = arith.constant 0 : i32
    %c0_i32_1 = arith.constant 0 : i32
    return %c0_i32, %c0_i32_0 : i32, i32
  }
  func.func @transform_5(%arg0: i32) -> (i32, i32) {
    %c0_i32 = arith.constant 0 : i32
    %c0_i32_0 = arith.constant 0 : i32
    %c0_i32_1 = arith.constant 0 : i32
    return %c0_i32, %c0_i32_0 : i32, i32
  }
  func.func @transform_6(%arg0: i32) -> (i32, i32) {
    %c0_i32 = arith.constant 0 : i32
    %c0_i32_0 = arith.constant 0 : i32
    %c0_i32_1 = arith.constant 0 : i32
    return %c0_i32, %c0_i32_0 : i32, i32
  }
  func.func @transform_7(%arg0: i32) -> (i32, i32) {
    %c0_i32 = arith.constant 0 : i32
    %c0_i32_0 = arith.constant 0 : i32
    %c0_i32_1 = arith.constant 0 : i32
    return %c0_i32, %c0_i32_0 : i32, i32
  }
  func.func @transform_8(%arg0: i32) -> (i32, i32) {
    %c0_i32 = arith.constant 0 : i32
    %c0_i32_0 = arith.constant 0 : i32
    %c0_i32_1 = arith.constant 0 : i32
    return %c0_i32, %c0_i32_0 : i32, i32
  }
  func.func @transform_9(%arg0: i32) -> (i32, i32) {
    %c0_i32 = arith.constant 0 : i32
    %c0_i32_0 = arith.constant 0 : i32
    %c0_i32_1 = arith.constant 0 : i32
    return %c0_i32, %c0_i32_0 : i32, i32
  }
  func.func @transform_10(%arg0: i32) -> (i32, i32) {
    %c0_i32 = arith.constant 0 : i32
    %c0_i32_0 = arith.constant 0 : i32
    %c0_i32_1 = arith.constant 0 : i32
    return %c0_i32, %c0_i32_0 : i32, i32
  }
  func.func @transform_11(%arg0: i32) -> (i32, i32) {
    %c0_i32 = arith.constant 0 : i32
    %c0_i32_0 = arith.constant 0 : i32
    %c0_i32_1 = arith.constant 0 : i32
    return %c0_i32, %c0_i32_0 : i32, i32
  }
  func.func @transform_12(%arg0: i32) -> (i32, i32) {
    %c0_i32 = arith.constant 0 : i32
    %c0_i32_0 = arith.constant 0 : i32
    %c0_i32_1 = arith.constant 0 : i32
    return %c0_i32, %c0_i32_0 : i32, i32
  }
  func.func @transform_13(%arg0: i32) -> (i32, i32) {
    %c0_i32 = arith.constant 0 : i32
    %c0_i32_0 = arith.constant 0 : i32
    %c0_i32_1 = arith.constant 0 : i32
    return %c0_i32, %c0_i32_0 : i32, i32
  }
  func.func @transform_14(%arg0: i32) -> (i32, i32) {
    %c0_i32 = arith.constant 0 : i32
    %c0_i32_0 = arith.constant 0 : i32
    %c0_i32_1 = arith.constant 0 : i32
    return %c0_i32, %c0_i32_0 : i32, i32
  }
  func.func @transform_15(%arg0: i32) -> (i32, i32) {
    %c0_i32 = arith.constant 0 : i32
    %c0_i32_0 = arith.constant 0 : i32
    %c0_i32_1 = arith.constant 0 : i32
    return %c0_i32, %c0_i32_0 : i32, i32
  }
  func.func @transform_16(%arg0: i32) -> (i32, i32) {
    %c0_i32 = arith.constant 0 : i32
    %c0_i32_0 = arith.constant 0 : i32
    %c0_i32_1 = arith.constant 0 : i32
    return %c0_i32, %c0_i32_0 : i32, i32
  }
  func.func @transform_17(%arg0: i32) -> (i32, i32) {
    %c0_i32 = arith.constant 0 : i32
    %c0_i32_0 = arith.constant 0 : i32
    %c0_i32_1 = arith.constant 0 : i32
    return %c0_i32, %c0_i32_0 : i32, i32
  }
  func.func @transform_18(%arg0: i32) -> (i32, i32) {
    %c0_i32 = arith.constant 0 : i32
    %c0_i32_0 = arith.constant 0 : i32
    %c0_i32_1 = arith.constant 0 : i32
    return %c0_i32, %c0_i32_0 : i32, i32
  }
  func.func @transform_19(%arg0: i32) -> (i32, i32) {
    %c0_i32 = arith.constant 0 : i32
    %c0_i32_0 = arith.constant 0 : i32
    %c0_i32_1 = arith.constant 0 : i32
    return %c0_i32, %c0_i32_0 : i32, i32
  }
  func.func @transform_20(%arg0: i32) -> (i32, i32) {
    %c0_i32 = arith.constant 0 : i32
    %c0_i32_0 = arith.constant 0 : i32
    %c0_i32_1 = arith.constant 0 : i32
    return %c0_i32, %c0_i32_0 : i32, i32
  }
  func.func @transform_21(%arg0: i32) -> (i32, i32) {
    %c0_i32 = arith.constant 0 : i32
    %c0_i32_0 = arith.constant 0 : i32
    return %arg0, %c0_i32 : i32, i32
  }
  func.func @transform_22(%arg0: i32) -> (i32, i32) {
    %c0_i32 = arith.constant 0 : i32
    %c0_i32_0 = arith.constant 0 : i32
    return %arg0, %c0_i32 : i32, i32
  }
}

</mosaic_0001>

<llo_original>
// kernel: sag_model_25d_forward.1
$region0: #{sag_model_25d_forward.1}
  #allocation0 [shape = 'u32[]', space=smem, size = 0x4, offset = 0x4, fixed_abs, tag = 'smem constant byte address 0x4 - core index']
  #allocation1 [shape = 'u32[144,128]{1,0:T(1,128)}', space=vmem, size = 0x12000, scoped, tag = 'internal scratch']
  %s0 = inlined_call_operand.vmem [shape: f32[2,27,2048], index: 0, kind: input, shape index: {}]
  %s1 = inlined_call_operand.vmem [shape: f32[16,64], index: 1, kind: input, shape index: {}]
  %s2 = inlined_call_operand.vmem [shape: f32[2048,8], index: 2, kind: input, shape index: {}]
  %s3 = inlined_call_operand.vmem [shape: f32[32,27], index: 3, kind: input, shape index: {}]
  %s4 = inlined_call_operand.vmem [shape: f32[32,1], index: 4, kind: input, shape index: {}]
  %s5 = inlined_call_operand.vmem [shape: f32[32,512], index: 5, kind: input, shape index: {}]
  %s6 = inlined_call_operand.vmem [shape: f32[1,512], index: 6, kind: input, shape index: {}]
  %s7 = inlined_call_operand.vmem [shape: f32[64,128], index: 7, kind: input, shape index: {}]
  %s8 = inlined_call_operand.vmem [shape: f32[1,128], index: 8, kind: input, shape index: {}]
  %s9 = inlined_call_operand.vmem [shape: f32[128,256], index: 9, kind: input, shape index: {}]
  %s10 = inlined_call_operand.vmem [shape: f32[1,256], index: 10, kind: input, shape index: {}]
  %s11 = inlined_call_operand.vmem [shape: f32[256,512], index: 11, kind: input, shape index: {}]
  %s12 = inlined_call_operand.vmem [shape: f32[1,512], index: 12, kind: input, shape index: {}]
  %s13 = inlined_call_operand.vmem [shape: f32[512,512], index: 13, kind: input, shape index: {}]
  %s14 = inlined_call_operand.vmem [shape: f32[1,512], index: 14, kind: input, shape index: {}]
  %s15 = inlined_call_operand.vmem [shape: f32[512,128], index: 15, kind: input, shape index: {}]
  %s16 = inlined_call_operand.vmem [shape: f32[1,128], index: 16, kind: input, shape index: {}]
  %s17 = inlined_call_operand.vmem [shape: f32[512,512], index: 17, kind: input, shape index: {}]
  %s18 = inlined_call_operand.vmem [shape: f32[1,512], index: 18, kind: input, shape index: {}]
  %s19 = inlined_call_operand.vmem [shape: f32[512,128], index: 19, kind: input, shape index: {}]
  %s20 = inlined_call_operand.vmem [shape: f32[1,128], index: 20, kind: input, shape index: {}]
  %s21 = inlined_call_operand.vmem [shape: f32[16,128], index: 21, kind: output, shape index: {0}]
  %s22 = inlined_call_operand.hbm [shape: f32[16,128], index: 22, kind: output, shape index: {1}]
  %23 = xla_tuple %s21, %s22
  %s24 = sld [smem:[#allocation0]]
  $region125: #{sag_model_25d_forward.1} parent=0
    _
  %s26 = ssub.s32 1, %s24
  %s27 = scalar_select 0, %s26, %s24
  $region1: #{sag_model_25d_forward.1} parent=0
    #allocation2 [shape = 'u8[8192]{0}', space=vmem, size = 0x2000, scoped, tag = 'output window, operand 1']
    #allocation3 [shape = 's32[2]{0}', space=sflag, size = 0x8, scoped, tag = 'scoped memory for sag_model_25d_forward.1']
    %28 = vsyncpa [#allocation3], 0
    %s29 = scalar_lea.sflag [#allocation3], 1
    %30 = vsyncpa %s29, 0
    loop: start=0, step=1, limit=4
    $region2: #{sag_model_25d_forward.1} parent=1 // loop_pre_header
      _
    $region3: #{sag_model_25d_forward.1} parent=1 // loop_header
      %s32 = sphi 0, %s36
      %p33 = scmp.ge.s32.totalorder %s32, 4
      %s42 = sphi 0, %s44
      %s45 = sphi 0, %s42
      %s46 = sphi 0, %s45
      %s62 = sphi 0, %s46
      %s68 = sphi 0, %s70
      %s71 = sphi 0, %s68
      %s72 = sphi 0, %s71
      %s88 = sphi 0, %s72
      %s92 = sphi 0, %s92
      %s94 = sphi 0, %s92
      %s95 = sphi 0, %s94
      %s109 = sphi 0, %s95
      %s113 = sphi 0, %s113
      %s115 = sphi 0, %s113
      %s116 = sphi 0, %s115
      %s130 = sphi 0, %s116
      %s134 = sphi 0, %s134
      %s136 = sphi 0, %s134
      %s137 = sphi 0, %s136
      %s151 = sphi 0, %s137
      %s155 = sphi 0, %s155
      %s157 = sphi 0, %s155
      %s158 = sphi 0, %s157
      %s172 = sphi 0, %s158
      %s176 = sphi 0, %s176
      %s178 = sphi 0, %s176
      %s179 = sphi 0, %s178
      %s193 = sphi 0, %s179
      %s197 = sphi 0, %s197
      %s199 = sphi 0, %s197
      %s200 = sphi 0, %s199
      %s214 = sphi 0, %s200
      %s218 = sphi 0, %s218
      %s220 = sphi 0, %s218
      %s221 = sphi 0, %s220
      %s235 = sphi 0, %s221
      %s239 = sphi 0, %s239
      %s241 = sphi 0, %s239
      %s242 = sphi 0, %s241
      %s256 = sphi 0, %s242
      %s260 = sphi 0, %s260
      %s262 = sphi 0, %s260
      %s263 = sphi 0, %s262
      %s277 = sphi 0, %s263
      %s281 = sphi 0, %s281
      %s283 = sphi 0, %s281
      %s284 = sphi 0, %s283
      %s298 = sphi 0, %s284
      %s302 = sphi 0, %s302
      %s304 = sphi 0, %s302
      %s305 = sphi 0, %s304
      %s319 = sphi 0, %s305
      %s323 = sphi 0, %s323
      %s325 = sphi 0, %s323
      %s326 = sphi 0, %s325
      %s340 = sphi 0, %s326
      %s344 = sphi 0, %s344
      %s346 = sphi 0, %s344
      %s347 = sphi 0, %s346
      %s361 = sphi 0, %s347
      %s365 = sphi 0, %s365
      %s367 = sphi 0, %s365
      %s368 = sphi 0, %s367
      %s382 = sphi 0, %s368
      %s386 = sphi 0, %s386
      %s388 = sphi 0, %s386
      %s389 = sphi 0, %s388
      %s403 = sphi 0, %s389
      %s407 = sphi 0, %s407
      %s409 = sphi 0, %s407
      %s410 = sphi 0, %s409
      %s424 = sphi 0, %s410
      %s428 = sphi 0, %s428
      %s430 = sphi 0, %s428
      %s431 = sphi 0, %s430
      %s445 = sphi 0, %s431
      %s449 = sphi 0, %s449
      %s451 = sphi 0, %s449
      %s452 = sphi 0, %s451
      %s466 = sphi 0, %s452
      %s470 = sphi 0, %s470
      %s472 = sphi 0, %s470
      %s473 = sphi 0, %s472
      %s487 = sphi 0, %s473
      %s493 = sphi 0, %s495
      %s496 = sphi 0, %s493
      %s497 = sphi 0, %s496
      %s513 = sphi 0, %s497
      %s519 = sphi 0, %s521
      %s522 = sphi 0, %s519
      %s523 = sphi 0, %s522
      %s539 = sphi 0, %s523
    $region4: #{sag_model_25d_forward.1} parent=1 // loop_header_branch
      %35 = sbr.rel (%p33) target = $region8
    $region5: #{sag_model_25d_forward.1} parent=1 // loop_body
      %s37 = ssub.s32 %s32, 1
      %s38 = ssub.s32 %s32, 2
      %s39 = sadd.s32 %s32, 1
      %s40 = ssub.s32 %s32, %s39
      %p41 = scmp.eq.s32.totalorder %s40, 0
      %s43 = sadd.s32 %s42, 1
      %s44 = scalar_select %p41, %s42, %s43
      %p47 = pneg %p41
      %p48 = scmp.eq.s32.totalorder %s32, 1
      %p49 = por %p47, %p48
      %p50 = scmp.ne.s32.totalorder %s42, %s45
      %p51 = scmp.eq.s32.totalorder %s32, 0
      %p52 = por %p50, %p51
      %p53 = scmp.ne.s32.totalorder %s42, %s45
      %p54 = scmp.eq.s32.totalorder %s37, 1
      %p55 = por %p53, %p54
      %p56 = scmp.ne.s32.totalorder %s45, %s46
      %p57 = scmp.eq.s32.totalorder %s37, 0
      %p58 = por %p56, %p57
      %p59 = scmp.ne.s32.totalorder %s45, %s46
      %p60 = scmp.eq.s32.totalorder %s38, 1
      %p61 = por %p59, %p60
      %p63 = scmp.ne.s32.totalorder %s46, %s62
      %p64 = scmp.eq.s32.totalorder %s38, 0
      %p65 = por %p63, %p64
      %s66 = ssub.s32 %s32, %s39
      %p67 = scmp.eq.s32.totalorder %s66, 0
      %s69 = sadd.s32 %s68, 1
      %s70 = scalar_select %p67, %s68, %s69
      %p73 = pneg %p67
      %p74 = scmp.eq.s32.totalorder %s32, 1
      %p75 = por %p73, %p74
      %p76 = scmp.ne.s32.totalorder %s68, %s71
      %p77 = scmp.eq.s32.totalorder %s32, 0
      %p78 = por %p76, %p77
      %p79 = scmp.ne.s32.totalorder %s68, %s71
      %p80 = scmp.eq.s32.totalorder %s37, 1
      %p81 = por %p79, %p80
      %p82 = scmp.ne.s32.totalorder %s71, %s72
      %p83 = scmp.eq.s32.totalorder %s37, 0
      %p84 = por %p82, %p83
      %p85 = scmp.ne.s32.totalorder %s71, %s72
      %p86 = scmp.eq.s32.totalorder %s38, 1
      %p87 = por %p85, %p86
      %p89 = scmp.ne.s32.totalorder %s72, %s88
      %p90 = scmp.eq.s32.totalorder %s38, 0
      %p91 = por %p89, %p90
      %s93 = sadd.s32 %s92, 1
      %p96 = scmp.eq.s32.totalorder %s32, 1
      %p97 = scmp.ne.s32.totalorder %s92, %s94
      %p98 = scmp.eq.s32.totalorder %s32, 0
      %p99 = por %p97, %p98
      %p100 = scmp.ne.s32.totalorder %s92, %s94
      %p101 = scmp.eq.s32.totalorder %s37, 1
      %p102 = por %p100, %p101
      %p103 = scmp.ne.s32.totalorder %s94, %s95
      %p104 = scmp.eq.s32.totalorder %s37, 0
      %p105 = por %p103, %p104
      %p106 = scmp.ne.s32.totalorder %s94, %s95
      %p107 = scmp.eq.s32.totalorder %s38, 1
      %p108 = por %p106, %p107
      %p110 = scmp.ne.s32.totalorder %s95, %s109
      %p111 = scmp.eq.s32.totalorder %s38, 0
      %p112 = por %p110, %p111
      %s114 = sadd.s32 %s113, 1
      %p117 = scmp.eq.s32.totalorder %s32, 1
      %p118 = scmp.ne.s32.totalorder %s113, %s115
      %p119 = scmp.eq.s32.totalorder %s32, 0
      %p120 = por %p118, %p119
      %p121 = scmp.ne.s32.totalorder %s113, %s115
      %p122 = scmp.eq.s32.totalorder %s37, 1
      %p123 = por %p121, %p122
      %p124 = scmp.ne.s32.totalorder %s115, %s116
      %p125 = scmp.eq.s32.totalorder %s37, 0
      %p126 = por %p124, %p125
      %p127 = scmp.ne.s32.totalorder %s115, %s116
      %p128 = scmp.eq.s32.totalorder %s38, 1
      %p129 = por %p127, %p128
      %p131 = scmp.ne.s32.totalorder %s116, %s130
      %p132 = scmp.eq.s32.totalorder %s38, 0
      %p133 = por %p131, %p132
      %s135 = sadd.s32 %s134, 1
      %p138 = scmp.eq.s32.totalorder %s32, 1
      %p139 = scmp.ne.s32.totalorder %s134, %s136
      %p140 = scmp.eq.s32.totalorder %s32, 0
      %p141 = por %p139, %p140
      %p142 = scmp.ne.s32.totalorder %s134, %s136
      %p143 = scmp.eq.s32.totalorder %s37, 1
      %p144 = por %p142, %p143
      %p145 = scmp.ne.s32.totalorder %s136, %s137
      %p146 = scmp.eq.s32.totalorder %s37, 0
      %p147 = por %p145, %p146
      %p148 = scmp.ne.s32.totalorder %s136, %s137
      %p149 = scmp.eq.s32.totalorder %s38, 1
      %p150 = por %p148, %p149
      %p152 = scmp.ne.s32.totalorder %s137, %s151
      %p153 = scmp.eq.s32.totalorder %s38, 0
      %p154 = por %p152, %p153
      %s156 = sadd.s32 %s155, 1
      %p159 = scmp.eq.s32.totalorder %s32, 1
      %p160 = scmp.ne.s32.totalorder %s155, %s157
      %p161 = scmp.eq.s32.totalorder %s32, 0
      %p162 = por %p160, %p161
      %p163 = scmp.ne.s32.totalorder %s155, %s157
      %p164 = scmp.eq.s32.totalorder %s37, 1
      %p165 = por %p163, %p164
      %p166 = scmp.ne.s32.totalorder %s157, %s158
      %p167 = scmp.eq.s32.totalorder %s37, 0
      %p168 = por %p166, %p167
      %p169 = scmp.ne.s32.totalorder %s157, %s158
      %p170 = scmp.eq.s32.totalorder %s38, 1
      %p171 = por %p169, %p170
      %p173 = scmp.ne.s32.totalorder %s158, %s172
      %p174 = scmp.eq.s32.totalorder %s38, 0
      %p175 = por %p173, %p174
      %s177 = sadd.s32 %s176, 1
      %p180 = scmp.eq.s32.totalorder %s32, 1
      %p181 = scmp.ne.s32.totalorder %s176, %s178
      %p182 = scmp.eq.s32.totalorder %s32, 0
      %p183 = por %p181, %p182
      %p184 = scmp.ne.s32.totalorder %s176, %s178
      %p185 = scmp.eq.s32.totalorder %s37, 1
      %p186 = por %p184, %p185
      %p187 = scmp.ne.s32.totalorder %s178, %s179
      %p188 = scmp.eq.s32.totalorder %s37, 0
      %p189 = por %p187, %p188
      %p190 = scmp.ne.s32.totalorder %s178, %s179
      %p191 = scmp.eq.s32.totalorder %s38, 1
      %p192 = por %p190, %p191
      %p194 = scmp.ne.s32.totalorder %s179, %s193
      %p195 = scmp.eq.s32.totalorder %s38, 0
      %p196 = por %p194, %p195
      %s198 = sadd.s32 %s197, 1
      %p201 = scmp.eq.s32.totalorder %s32, 1
      %p202 = scmp.ne.s32.totalorder %s197, %s199
      %p203 = scmp.eq.s32.totalorder %s32, 0
      %p204 = por %p202, %p203
      %p205 = scmp.ne.s32.totalorder %s197, %s199
      %p206 = scmp.eq.s32.totalorder %s37, 1
      %p207 = por %p205, %p206
      %p208 = scmp.ne.s32.totalorder %s199, %s200
      %p209 = scmp.eq.s32.totalorder %s37, 0
      %p210 = por %p208, %p209
      %p211 = scmp.ne.s32.totalorder %s199, %s200
      %p212 = scmp.eq.s32.totalorder %s38, 1
      %p213 = por %p211, %p212
      %p215 = scmp.ne.s32.totalorder %s200, %s214
      %p216 = scmp.eq.s32.totalorder %s38, 0
      %p217 = por %p215, %p216
      %s219 = sadd.s32 %s218, 1
      %p222 = scmp.eq.s32.totalorder %s32, 1
      %p223 = scmp.ne.s32.totalorder %s218, %s220
      %p224 = scmp.eq.s32.totalorder %s32, 0
      %p225 = por %p223, %p224
      %p226 = scmp.ne.s32.totalorder %s218, %s220
      %p227 = scmp.eq.s32.totalorder %s37, 1
      %p228 = por %p226, %p227
      %p229 = scmp.ne.s32.totalorder %s220, %s221
      %p230 = scmp.eq.s32.totalorder %s37, 0
      %p231 = por %p229, %p230
      %p232 = scmp.ne.s32.totalorder %s220, %s221
      %p233 = scmp.eq.s32.totalorder %s38, 1
      %p234 = por %p232, %p233
      %p236 = scmp.ne.s32.totalorder %s221, %s235
      %p237 = scmp.eq.s32.totalorder %s38, 0
      %p238 = por %p236, %p237
      %s240 = sadd.s32 %s239, 1
      %p243 = scmp.eq.s32.totalorder %s32, 1
      %p244 = scmp.ne.s32.totalorder %s239, %s241
      %p245 = scmp.eq.s32.totalorder %s32, 0
      %p246 = por %p244, %p245
      %p247 = scmp.ne.s32.totalorder %s239, %s241
      %p248 = scmp.eq.s32.totalorder %s37, 1
      %p249 = por %p247, %p248
      %p250 = scmp.ne.s32.totalorder %s241, %s242
      %p251 = scmp.eq.s32.totalorder %s37, 0
      %p252 = por %p250, %p251
      %p253 = scmp.ne.s32.totalorder %s241, %s242
      %p254 = scmp.eq.s32.totalorder %s38, 1
      %p255 = por %p253, %p254
      %p257 = scmp.ne.s32.totalorder %s242, %s256
      %p258 = scmp.eq.s32.totalorder %s38, 0
      %p259 = por %p257, %p258
      %s261 = sadd.s32 %s260, 1
      %p264 = scmp.eq.s32.totalorder %s32, 1
      %p265 = scmp.ne.s32.totalorder %s260, %s262
      %p266 = scmp.eq.s32.totalorder %s32, 0
      %p267 = por %p265, %p266
      %p268 = scmp.ne.s32.totalorder %s260, %s262
      %p269 = scmp.eq.s32.totalorder %s37, 1
      %p270 = por %p268, %p269
      %p271 = scmp.ne.s32.totalorder %s262, %s263
      %p272 = scmp.eq.s32.totalorder %s37, 0
      %p273 = por %p271, %p272
      %p274 = scmp.ne.s32.totalorder %s262, %s263
      %p275 = scmp.eq.s32.totalorder %s38, 1
      %p276 = por %p274, %p275
      %p278 = scmp.ne.s32.totalorder %s263, %s277
      %p279 = scmp.eq.s32.totalorder %s38, 0
      %p280 = por %p278, %p279
      %s282 = sadd.s32 %s281, 1
      %p285 = scmp.eq.s32.totalorder %s32, 1
      %p286 = scmp.ne.s32.totalorder %s281, %s283
      %p287 = scmp.eq.s32.totalorder %s32, 0
      %p288 = por %p286, %p287
      %p289 = scmp.ne.s32.totalorder %s281, %s283
      %p290 = scmp.eq.s32.totalorder %s37, 1
      %p291 = por %p289, %p290
      %p292 = scmp.ne.s32.totalorder %s283, %s284
      %p293 = scmp.eq.s32.totalorder %s37, 0
      %p294 = por %p292, %p293
      %p295 = scmp.ne.s32.totalorder %s283, %s284
      %p296 = scmp.eq.s32.totalorder %s38, 1
      %p297 = por %p295, %p296
      %p299 = scmp.ne.s32.totalorder %s284, %s298
      %p300 = scmp.eq.s32.totalorder %s38, 0
      %p301 = por %p299, %p300
      %s303 = sadd.s32 %s302, 1
      %p306 = scmp.eq.s32.totalorder %s32, 1
      %p307 = scmp.ne.s32.totalorder %s302, %s304
      %p308 = scmp.eq.s32.totalorder %s32, 0
      %p309 = por %p307, %p308
      %p310 = scmp.ne.s32.totalorder %s302, %s304
      %p311 = scmp.eq.s32.totalorder %s37, 1
      %p312 = por %p310, %p311
      %p313 = scmp.ne.s32.totalorder %s304, %s305
      %p314 = scmp.eq.s32.totalorder %s37, 0
      %p315 = por %p313, %p314
      %p316 = scmp.ne.s32.totalorder %s304, %s305
      %p317 = scmp.eq.s32.totalorder %s38, 1
      %p318 = por %p316, %p317
      %p320 = scmp.ne.s32.totalorder %s305, %s319
      %p321 = scmp.eq.s32.totalorder %s38, 0
      %p322 = por %p320, %p321
      %s324 = sadd.s32 %s323, 1
      %p327 = scmp.eq.s32.totalorder %s32, 1
      %p328 = scmp.ne.s32.totalorder %s323, %s325
      %p329 = scmp.eq.s32.totalorder %s32, 0
      %p330 = por %p328, %p329
      %p331 = scmp.ne.s32.totalorder %s323, %s325
      %p332 = scmp.eq.s32.totalorder %s37, 1
      %p333 = por %p331, %p332
      %p334 = scmp.ne.s32.totalorder %s325, %s326
      %p335 = scmp.eq.s32.totalorder %s37, 0
      %p336 = por %p334, %p335
      %p337 = scmp.ne.s32.totalorder %s325, %s326
      %p338 = scmp.eq.s32.totalorder %s38, 1
      %p339 = por %p337, %p338
      %p341 = scmp.ne.s32.totalorder %s326, %s340
      %p342 = scmp.eq.s32.totalorder %s38, 0
      %p343 = por %p341, %p342
      %s345 = sadd.s32 %s344, 1
      %p348 = scmp.eq.s32.totalorder %s32, 1
      %p349 = scmp.ne.s32.totalorder %s344, %s346
      %p350 = scmp.eq.s32.totalorder %s32, 0
      %p351 = por %p349, %p350
      %p352 = scmp.ne.s32.totalorder %s344, %s346
      %p353 = scmp.eq.s32.totalorder %s37, 1
      %p354 = por %p352, %p353
      %p355 = scmp.ne.s32.totalorder %s346, %s347
      %p356 = scmp.eq.s32.totalorder %s37, 0
      %p357 = por %p355, %p356
      %p358 = scmp.ne.s32.totalorder %s346, %s347
      %p359 = scmp.eq.s32.totalorder %s38, 1
      %p360 = por %p358, %p359
      %p362 = scmp.ne.s32.totalorder %s347, %s361
      %p363 = scmp.eq.s32.totalorder %s38, 0
      %p364 = por %p362, %p363
      %s366 = sadd.s32 %s365, 1
      %p369 = scmp.eq.s32.totalorder %s32, 1
      %p370 = scmp.ne.s32.totalorder %s365, %s367
      %p371 = scmp.eq.s32.totalorder %s32, 0
      %p372 = por %p370, %p371
      %p373 = scmp.ne.s32.totalorder %s365, %s367
      %p374 = scmp.eq.s32.totalorder %s37, 1
      %p375 = por %p373, %p374
      %p376 = scmp.ne.s32.totalorder %s367, %s368
      %p377 = scmp.eq.s32.totalorder %s37, 0
      %p378 = por %p376, %p377
      %p379 = scmp.ne.s32.totalorder %s367, %s368
      %p380 = scmp.eq.s32.totalorder %s38, 1
      %p381 = por %p379, %p380
      %p383 = scmp.ne.s32.totalorder %s368, %s382
      %p384 = scmp.eq.s32.totalorder %s38, 0
      %p385 = por %p383, %p384
      %s387 = sadd.s32 %s386, 1
      %p390 = scmp.eq.s32.totalorder %s32, 1
      %p391 = scmp.ne.s32.totalorder %s386, %s388
      %p392 = scmp.eq.s32.totalorder %s32, 0
      %p393 = por %p391, %p392
      %p394 = scmp.ne.s32.totalorder %s386, %s388
      %p395 = scmp.eq.s32.totalorder %s37, 1
      %p396 = por %p394, %p395
      %p397 = scmp.ne.s32.totalorder %s388, %s389
      %p398 = scmp.eq.s32.totalorder %s37, 0
      %p399 = por %p397, %p398
      %p400 = scmp.ne.s32.totalorder %s388, %s389
      %p401 = scmp.eq.s32.totalorder %s38, 1
      %p402 = por %p400, %p401
      %p404 = scmp.ne.s32.totalorder %s389, %s403
      %p405 = scmp.eq.s32.totalorder %s38, 0
      %p406 = por %p404, %p405
      %s408 = sadd.s32 %s407, 1
      %p411 = scmp.eq.s32.totalorder %s32, 1
      %p412 = scmp.ne.s32.totalorder %s407, %s409
      %p413 = scmp.eq.s32.totalorder %s32, 0
      %p414 = por %p412, %p413
      %p415 = scmp.ne.s32.totalorder %s407, %s409
      %p416 = scmp.eq.s32.totalorder %s37, 1
      %p417 = por %p415, %p416
      %p418 = scmp.ne.s32.totalorder %s409, %s410
      %p419 = scmp.eq.s32.totalorder %s37, 0
      %p420 = por %p418, %p419
      %p421 = scmp.ne.s32.totalorder %s409, %s410
      %p422 = scmp.eq.s32.totalorder %s38, 1
      %p423 = por %p421, %p422
      %p425 = scmp.ne.s32.totalorder %s410, %s424
      %p426 = scmp.eq.s32.totalorder %s38, 0
      %p427 = por %p425, %p426
      %s429 = sadd.s32 %s428, 1
      %p432 = scmp.eq.s32.totalorder %s32, 1
      %p433 = scmp.ne.s32.totalorder %s428, %s430
      %p434 = scmp.eq.s32.totalorder %s32, 0
      %p435 = por %p433, %p434
      %p436 = scmp.ne.s32.totalorder %s428, %s430
      %p437 = scmp.eq.s32.totalorder %s37, 1
      %p438 = por %p436, %p437
      %p439 = scmp.ne.s32.totalorder %s430, %s431
      %p440 = scmp.eq.s32.totalorder %s37, 0
      %p441 = por %p439, %p440
      %p442 = scmp.ne.s32.totalorder %s430, %s431
      %p443 = scmp.eq.s32.totalorder %s38, 1
      %p444 = por %p442, %p443
      %p446 = scmp.ne.s32.totalorder %s431, %s445
      %p447 = scmp.eq.s32.totalorder %s38, 0
      %p448 = por %p446, %p447
      %s450 = sadd.s32 %s449, 1
      %p453 = scmp.eq.s32.totalorder %s32, 1
      %p454 = scmp.ne.s32.totalorder %s449, %s451
      %p455 = scmp.eq.s32.totalorder %s32, 0
      %p456 = por %p454, %p455
      %p457 = scmp.ne.s32.totalorder %s449, %s451
      %p458 = scmp.eq.s32.totalorder %s37, 1
      %p459 = por %p457, %p458
      %p460 = scmp.ne.s32.totalorder %s451, %s452
      %p461 = scmp.eq.s32.totalorder %s37, 0
      %p462 = por %p460, %p461
      %p463 = scmp.ne.s32.totalorder %s451, %s452
      %p464 = scmp.eq.s32.totalorder %s38, 1
      %p465 = por %p463, %p464
      %p467 = scmp.ne.s32.totalorder %s452, %s466
      %p468 = scmp.eq.s32.totalorder %s38, 0
      %p469 = por %p467, %p468
      %s471 = sadd.s32 %s470, 1
      %p474 = scmp.eq.s32.totalorder %s32, 1
      %p475 = scmp.ne.s32.totalorder %s470, %s472
      %p476 = scmp.eq.s32.totalorder %s32, 0
      %p477 = por %p475, %p476
      %p478 = scmp.ne.s32.totalorder %s470, %s472
      %p479 = scmp.eq.s32.totalorder %s37, 1
      %p480 = por %p478, %p479
      %p481 = scmp.ne.s32.totalorder %s472, %s473
      %p482 = scmp.eq.s32.totalorder %s37, 0
      %p483 = por %p481, %p482
      %p484 = scmp.ne.s32.totalorder %s472, %s473
      %p485 = scmp.eq.s32.totalorder %s38, 1
      %p486 = por %p484, %p485
      %p488 = scmp.ne.s32.totalorder %s473, %s487
      %p489 = scmp.eq.s32.totalorder %s38, 0
      %p490 = por %p488, %p489
      %s491 = ssub.s32 %s32, %s39
      %p492 = scmp.eq.s32.totalorder %s491, 0
      %s494 = sadd.s32 %s493, 1
      %s495 = scalar_select %p492, %s493, %s494
      %p498 = pneg %p492
      %p499 = scmp.eq.s32.totalorder %s32, 1
      %p500 = por %p498, %p499
      %p501 = scmp.ne.s32.totalorder %s493, %s496
      %p502 = scmp.eq.s32.totalorder %s32, 0
      %p503 = por %p501, %p502
      %p504 = scmp.ne.s32.totalorder %s493, %s496
      %p505 = scmp.eq.s32.totalorder %s37, 1
      %p506 = por %p504, %p505
      %p507 = scmp.ne.s32.totalorder %s496, %s497
      %p508 = scmp.eq.s32.totalorder %s37, 0
      %p509 = por %p507, %p508
      %p510 = scmp.ne.s32.totalorder %s496, %s497
      %p511 = scmp.eq.s32.totalorder %s38, 1
      %p512 = por %p510, %p511
      %p514 = scmp.ne.s32.totalorder %s497, %s513
      %p515 = scmp.eq.s32.totalorder %s38, 0
      %p516 = por %p514, %p515
      %s517 = ssub.s32 %s32, %s39
      %p518 = scmp.eq.s32.totalorder %s517, 0
      %s520 = sadd.s32 %s519, 1
      %s521 = scalar_select %p518, %s519, %s520
      %p524 = pneg %p518
      %p525 = scmp.eq.s32.totalorder %s32, 1
      %p526 = por %p524, %p525
      %p527 = scmp.ne.s32.totalorder %s519, %s522
      %p528 = scmp.eq.s32.totalorder %s32, 0
      %p529 = por %p527, %p528
      %p530 = scmp.ne.s32.totalorder %s519, %s522
      %p531 = scmp.eq.s32.totalorder %s37, 1
      %p532 = por %p530, %p531
      %p533 = scmp.ne.s32.totalorder %s522, %s523
      %p534 = scmp.eq.s32.totalorder %s37, 0
      %p535 = por %p533, %p534
      %p536 = scmp.ne.s32.totalorder %s522, %s523
      %p537 = scmp.eq.s32.totalorder %s38, 1
      %p538 = por %p536, %p537
      %p540 = scmp.ne.s32.totalorder %s523, %s539
      %p541 = scmp.eq.s32.totalorder %s38, 0
      %p542 = por %p540, %p541
      %p543 = scmp.le.s32.totalorder 1, %s32
      %p544 = scmp.lt.s32.totalorder %s32, 3
      %p545 = pnand %p543, %p544
      %p546 = pneg %p545
      // Predicated region
      $region9: #{sag_model_25d_forward.1} parent=5 // pred_check
        _
      $region10: #{sag_model_25d_forward.1} parent=5 // pred_check_branch
        %548 = sbr.rel (%p545) target = $region12
      $region11: #{sag_model_25d_forward.1} parent=5 // pred_region
        %s549 = ssub.s32 %s32, 1
        // Predicated region
        $region13: #{sag_model_25d_forward.1} parent=11 // pred_check
          %p550 = pneg %p105
        $region14: #{sag_model_25d_forward.1} parent=11 // pred_check_branch
          %552 = sbr.rel (%p550) target = $region16
        $region15: #{sag_model_25d_forward.1} parent=11 // pred_region
          _
        $region16: #{sag_model_25d_forward.1} parent=11 // pred_fallthru
          _
        // Predicated region
        $region17: #{sag_model_25d_forward.1} parent=11 // pred_check
          %p553 = pneg %p126
        $region18: #{sag_model_25d_forward.1} parent=11 // pred_check_branch
          %555 = sbr.rel (%p553) target = $region20
        $region19: #{sag_model_25d_forward.1} parent=11 // pred_region
          _
        $region20: #{sag_model_25d_forward.1} parent=11 // pred_fallthru
          _
        // Predicated region
        $region21: #{sag_model_25d_forward.1} parent=11 // pred_check
          %p556 = pneg %p147
        $region22: #{sag_model_25d_forward.1} parent=11 // pred_check_branch
          %558 = sbr.rel (%p556) target = $region24
        $region23: #{sag_model_25d_forward.1} parent=11 // pred_region
          _
        $region24: #{sag_model_25d_forward.1} parent=11 // pred_fallthru
          _
        // Predicated region
        $region25: #{sag_model_25d_forward.1} parent=11 // pred_check
          %p559 = pneg %p168
        $region26: #{sag_model_25d_forward.1} parent=11 // pred_check_branch
          %561 = sbr.rel (%p559) target = $region28
        $region27: #{sag_model_25d_forward.1} parent=11 // pred_region
          _
        $region28: #{sag_model_25d_forward.1} parent=11 // pred_fallthru
          _
        // Predicated region
        $region29: #{sag_model_25d_forward.1} parent=11 // pred_check
          %p562 = pneg %p189
        $region30: #{sag_model_25d_forward.1} parent=11 // pred_check_branch
          %564 = sbr.rel (%p562) target = $region32
        $region31: #{sag_model_25d_forward.1} parent=11 // pred_region
          _
        $region32: #{sag_model_25d_forward.1} parent=11 // pred_fallthru
          _
        // Predicated region
        $region33: #{sag_model_25d_forward.1} parent=11 // pred_check
          %p565 = pneg %p210
        $region34: #{sag_model_25d_forward.1} parent=11 // pred_check_branch
          %567 = sbr.rel (%p565) target = $region36
        $region35: #{sag_model_25d_forward.1} parent=11 // pred_region
          _
        $region36: #{sag_model_25d_forward.1} parent=11 // pred_fallthru
          _
        // Predicated region
        $region37: #{sag_model_25d_forward.1} parent=11 // pred_check
          %p568 = pneg %p231
        $region38: #{sag_model_25d_forward.1} parent=11 // pred_check_branch
          %570 = sbr.rel (%p568) target = $region40
        $region39: #{sag_model_25d_forward.1} parent=11 // pred_region
          _
        $region40: #{sag_model_25d_forward.1} parent=11 // pred_fallthru
          _
        // Predicated region
        $region41: #{sag_model_25d_forward.1} parent=11 // pred_check
          %p571 = pneg %p252
        $region42: #{sag_model_25d_forward.1} parent=11 // pred_check_branch
          %573 = sbr.rel (%p571) target = $region44
        $region43: #{sag_model_25d_forward.1} parent=11 // pred_region
          _
        $region44: #{sag_model_25d_forward.1} parent=11 // pred_fallthru
          _
        // Predicated region
        $region45: #{sag_model_25d_forward.1} parent=11 // pred_check
          %p574 = pneg %p273
        $region46: #{sag_model_25d_forward.1} parent=11 // pred_check_branch
          %576 = sbr.rel (%p574) target = $region48
        $region47: #{sag_model_25d_forward.1} parent=11 // pred_region
          _
        $region48: #{sag_model_25d_forward.1} parent=11 // pred_fallthru
          _
        // Predicated region
        $region49: #{sag_model_25d_forward.1} parent=11 // pred_check
          %p577 = pneg %p294
        $region50: #{sag_model_25d_forward.1} parent=11 // pred_check_branch
          %579 = sbr.rel (%p577) target = $region52
        $region51: #{sag_model_25d_forward.1} parent=11 // pred_region
          _
        $region52: #{sag_model_25d_forward.1} parent=11 // pred_fallthru
          _
        // Predicated region
        $region53: #{sag_model_25d_forward.1} parent=11 // pred_check
          %p580 = pneg %p315
        $region54: #{sag_model_25d_forward.1} parent=11 // pred_check_branch
          %582 = sbr.rel (%p580) target = $region56
        $region55: #{sag_model_25d_forward.1} parent=11 // pred_region
          _
        $region56: #{sag_model_25d_forward.1} parent=11 // pred_fallthru
          _
        // Predicated region
        $region57: #{sag_model_25d_forward.1} parent=11 // pred_check
          %p583 = pneg %p336
        $region58: #{sag_model_25d_forward.1} parent=11 // pred_check_branch
          %585 = sbr.rel (%p583) target = $region60
        $region59: #{sag_model_25d_forward.1} parent=11 // pred_region
          _
        $region60: #{sag_model_25d_forward.1} parent=11 // pred_fallthru
          _
        // Predicated region
        $region61: #{sag_model_25d_forward.1} parent=11 // pred_check
          %p586 = pneg %p357
        $region62: #{sag_model_25d_forward.1} parent=11 // pred_check_branch
          %588 = sbr.rel (%p586) target = $region64
        $region63: #{sag_model_25d_forward.1} parent=11 // pred_region
          _
        $region64: #{sag_model_25d_forward.1} parent=11 // pred_fallthru
          _
        // Predicated region
        $region65: #{sag_model_25d_forward.1} parent=11 // pred_check
          %p589 = pneg %p378
        $region66: #{sag_model_25d_forward.1} parent=11 // pred_check_branch
          %591 = sbr.rel (%p589) target = $region68
        $region67: #{sag_model_25d_forward.1} parent=11 // pred_region
          _
        $region68: #{sag_model_25d_forward.1} parent=11 // pred_fallthru
          _
        // Predicated region
        $region69: #{sag_model_25d_forward.1} parent=11 // pred_check
          %p592 = pneg %p399
        $region70: #{sag_model_25d_forward.1} parent=11 // pred_check_branch
          %594 = sbr.rel (%p592) target = $region72
        $region71: #{sag_model_25d_forward.1} parent=11 // pred_region
          _
        $region72: #{sag_model_25d_forward.1} parent=11 // pred_fallthru
          _
        // Predicated region
        $region73: #{sag_model_25d_forward.1} parent=11 // pred_check
          %p595 = pneg %p420
        $region74: #{sag_model_25d_forward.1} parent=11 // pred_check_branch
          %597 = sbr.rel (%p595) target = $region76
        $region75: #{sag_model_25d_forward.1} parent=11 // pred_region
          _
        $region76: #{sag_model_25d_forward.1} parent=11 // pred_fallthru
          _
        // Predicated region
        $region77: #{sag_model_25d_forward.1} parent=11 // pred_check
          %p598 = pneg %p441
        $region78: #{sag_model_25d_forward.1} parent=11 // pred_check_branch
          %600 = sbr.rel (%p598) target = $region80
        $region79: #{sag_model_25d_forward.1} parent=11 // pred_region
          _
        $region80: #{sag_model_25d_forward.1} parent=11 // pred_fallthru
          _
        // Predicated region
        $region81: #{sag_model_25d_forward.1} parent=11 // pred_check
          %p601 = pneg %p462
        $region82: #{sag_model_25d_forward.1} parent=11 // pred_check_branch
          %603 = sbr.rel (%p601) target = $region84
        $region83: #{sag_model_25d_forward.1} parent=11 // pred_region
          _
        $region84: #{sag_model_25d_forward.1} parent=11 // pred_fallthru
          _
        // Predicated region
        $region85: #{sag_model_25d_forward.1} parent=11 // pred_check
          %p604 = pneg %p483
        $region86: #{sag_model_25d_forward.1} parent=11 // pred_check_branch
          %606 = sbr.rel (%p604) target = $region88
        $region87: #{sag_model_25d_forward.1} parent=11 // pred_region
          _
        $region88: #{sag_model_25d_forward.1} parent=11 // pred_fallthru
          _
      $region12: #{sag_model_25d_forward.1} parent=5 // pred_fallthru
        _
      %p607 = scmp.lt.s32.totalorder %s32, 2
      // Predicated region
      $region89: #{sag_model_25d_forward.1} parent=5 // pred_check
        %p608 = pneg %p607
      $region90: #{sag_model_25d_forward.1} parent=5 // pred_check_branch
        %610 = sbr.rel (%p608) target = $region92
      $region91: #{sag_model_25d_forward.1} parent=5 // pred_region
        // Predicated region
        $region93: #{sag_model_25d_forward.1} parent=91 // pred_check
          %p611 = pneg %p52
        $region94: #{sag_model_25d_forward.1} parent=91 // pred_check_branch
          %613 = sbr.rel (%p611) target = $region96
        $region95: #{sag_model_25d_forward.1} parent=91 // pred_region
          %p614 = scmp.lt.s32.totalorder %s32, 1
          %s615 = scalar_select %p614, %s32, 1
          %s616 = smul.addr %s615, 64
          %s617 = smul.addr %s616, 8
          %s618 = scalar_lea.vmem %s0, %s617
        $region96: #{sag_model_25d_forward.1} parent=91 // pred_fallthru
          _
        // Predicated region
        $region97: #{sag_model_25d_forward.1} parent=91 // pred_check
          %p619 = pneg %p78
        $region98: #{sag_model_25d_forward.1} parent=91 // pred_check_branch
          %621 = sbr.rel (%p619) target = $region100
        $region99: #{sag_model_25d_forward.1} parent=91 // pred_region
          %p622 = scmp.lt.s32.totalorder %s32, 1
          %s623 = scalar_select %p622, %s32, 1
          %s624 = smul.addr %s623, 8
          %s625 = scalar_lea.vmem %s1, %s624
        $region100: #{sag_model_25d_forward.1} parent=91 // pred_fallthru
          _
      $region92: #{sag_model_25d_forward.1} parent=5 // pred_fallthru
        _
      %p626 = scmp.le.s32.totalorder 1, %s32
      %p627 = scmp.lt.s32.totalorder %s32, 3
      %p628 = pnand %p626, %p627
      %p629 = pneg %p628
      // Predicated region
      $region101: #{sag_model_25d_forward.1} parent=5 // pred_check
        _
      $region102: #{sag_model_25d_forward.1} parent=5 // pred_check_branch
        %631 = sbr.rel (%p628) target = $region104
      $region103: #{sag_model_25d_forward.1} parent=5 // pred_region
        %s632 = ssub.s32 %s32, 1
        %p633 = scmp.lt.s32.totalorder %s37, 1
        %s634 = scalar_select %p633, %s37, 1
        %s635 = smul.addr %s634, 64
        %s636 = smul.addr %s635, 8
        %s637 = scalar_lea.vmem %s0, %s636
        %p638 = pneg %p58
        %p639 = pneg %p55
        %p640 = scmp.lt.s32.totalorder %s37, 1
        %s641 = scalar_select %p640, %s37, 1
        %s642 = smul.addr %s641, 8
        %s643 = scalar_lea.vmem %s1, %s642
        %p644 = pneg %p84
        %p645 = pneg %p81
        %p646 = pneg %p105
        %p647 = pneg %p102
        %p648 = pneg %p126
        %p649 = pneg %p123
        %p650 = pneg %p147
        %p651 = pneg %p144
        %p652 = pneg %p168
        %p653 = pneg %p165
        %p654 = pneg %p189
        %p655 = pneg %p186
        %p656 = pneg %p210
        %p657 = pneg %p207
        %p658 = pneg %p231
        %p659 = pneg %p228
        %p660 = pneg %p252
        %p661 = pneg %p249
        %p662 = pneg %p273
        %p663 = pneg %p270
        %p664 = pneg %p294
        %p665 = pneg %p291
        %p666 = pneg %p315
        %p667 = pneg %p312
        %p668 = pneg %p336
        %p669 = pneg %p333
        %p670 = pneg %p357
        %p671 = pneg %p354
        %p672 = pneg %p378
        %p673 = pneg %p375
        %p674 = pneg %p399
        %p675 = pneg %p396
        %p676 = pneg %p420
        %p677 = pneg %p417
        %p678 = pneg %p441
        %p679 = pneg %p438
        %p680 = pneg %p462
        %p681 = pneg %p459
        %p682 = pneg %p483
        %p683 = pneg %p480
        %p684 = pneg %p509
        %p685 = pneg %p506
        %p686 = scmp.lt.s32.totalorder %s37, 1
        %s687 = scalar_select %p686, %s37, 1
        %s688 = smul.addr %s687, 8
        %s689 = scalar_lea.vmem %s21, %s688
        %p690 = pneg %p535
        %p691 = pneg %p532
        %s692 = sand.u32 %s522, 1
        %s693 = scalar_lea.sflag [#allocation3], %s692
        %s694 = sand.u32 %s522, 1
        %s695 = smul.addr %s694, 8
        %s696 = scalar_lea.vmem [#allocation2], %s695
        %p697 = scmp.lt.s32.totalorder %s37, 1
        %s698 = scalar_select %p697, %s37, 1
        %s699 = smul.addr %s698, 64
        %s700 = smul.addr %s699, 8
        %s701 = scalar_lea.vmem %s0, %s700
        %p702 = scmp.lt.s32.totalorder %s37, 1
        %s703 = scalar_select %p702, %s37, 1
        %s704 = smul.addr %s703, 8
        %s705 = scalar_lea.vmem %s1, %s704
        %p706 = scmp.lt.s32.totalorder %s37, 1
        %s707 = scalar_select %p706, %s37, 1
        %s708 = smul.addr %s707, 8
        %s709 = scalar_lea.vmem %s21, %s708
        %v710 = vld [vmem:[%s701] sm:$0xff]
        %v711 = vld [vmem:[%s701 + $0x8] sm:$0xff]
        %v712 = vld [vmem:[%s701 + $0x10] sm:$0xff]
        %v713 = vld [vmem:[%s701 + $0x18] sm:$0xff]
        %v714 = vld [vmem:[%s701 + $0x20] sm:$0xff]
        %v715 = vld [vmem:[%s701 + $0x28] sm:$0xff]
        %v716 = vld [vmem:[%s701 + $0x30] sm:$0xff]
        %v717 = vld [vmem:[%s701 + $0x38] sm:$0xff]
        %v718 = vld [vmem:[%s701 + $0x40] sm:$0xff]
        %v719 = vld [vmem:[%s701 + $0x48] sm:$0xff]
        %v720 = vld [vmem:[%s701 + $0x50] sm:$0xff]
        %v721 = vld [vmem:[%s701 + $0x58] sm:$0xff]
        %v722 = vld [vmem:[%s701 + $0x60] sm:$0xff]
        %v723 = vld [vmem:[%s701 + $0x68] sm:$0xff]
        %v724 = vld [vmem:[%s701 + $0x70] sm:$0xff]
        %v725 = vld [vmem:[%s701 + $0x78] sm:$0xff]
        %v726 = vld [vmem:[%s701 + $0x80] sm:$0xff]
        %v727 = vld [vmem:[%s701 + $0x88] sm:$0xff]
        %v728 = vld [vmem:[%s701 + $0x90] sm:$0xff]
        %v729 = vld [vmem:[%s701 + $0x98] sm:$0xff]
        %v730 = vld [vmem:[%s701 + $0xa0] sm:$0xff]
        %v731 = vld [vmem:[%s701 + $0xa8] sm:$0xff]
        %v732 = vld [vmem:[%s701 + $0xb0] sm:$0xff]
        %v733 = vld [vmem:[%s701 + $0xb8] sm:$0xff]
        %v734 = vld [vmem:[%s701 + $0xc0] sm:$0xff]
        %v735 = vld [vmem:[%s701 + $0xc8] sm:$0xff]
        %v736 = vld [vmem:[%s701 + $0xd0] sm:$0xff]
        %v737 = vld [vmem:[%s701 + $0xd8] sm:$0xff]
        %v738 = vld [vmem:[%s701 + $0xe0] sm:$0xff]
        %v739 = vld [vmem:[%s701 + $0xe8] sm:$0xff]
        %v740 = vld [vmem:[%s701 + $0xf0] sm:$0xff]
        %v741 = vld [vmem:[%s701 + $0xf8] sm:$0xff]
        %v742 = vld [vmem:[%s701 + $0x100] sm:$0xff]
        %v743 = vld [vmem:[%s701 + $0x108] sm:$0xff]
        %v744 = vld [vmem:[%s701 + $0x110] sm:$0xff]
        %v745 = vld [vmem:[%s701 + $0x118] sm:$0xff]
        %v746 = vld [vmem:[%s701 + $0x120] sm:$0xff]
        %v747 = vld [vmem:[%s701 + $0x128] sm:$0xff]
        %v748 = vld [vmem:[%s701 + $0x130] sm:$0xff]
        %v749 = vld [vmem:[%s701 + $0x138] sm:$0xff]
        %v750 = vld [vmem:[%s701 + $0x140] sm:$0xff]
        %v751 = vld [vmem:[%s701 + $0x148] sm:$0xff]
        %v752 = vld [vmem:[%s701 + $0x150] sm:$0xff]
        %v753 = vld [vmem:[%s701 + $0x158] sm:$0xff]
        %v754 = vld [vmem:[%s701 + $0x160] sm:$0xff]
        %v755 = vld [vmem:[%s701 + $0x168] sm:$0xff]
        %v756 = vld [vmem:[%s701 + $0x170] sm:$0xff]
        %v757 = vld [vmem:[%s701 + $0x178] sm:$0xff]
        %v758 = vld [vmem:[%s701 + $0x180] sm:$0x7]
        %v759 = vld [vmem:[%s701 + $0x188] sm:$0x7]
        %v760 = vld [vmem:[%s701 + $0x190] sm:$0x7]
        %v761 = vld [vmem:[%s701 + $0x198] sm:$0x7]
        %v762 = vld [vmem:[%s701 + $0x1a0] sm:$0x7]
        %v763 = vld [vmem:[%s701 + $0x1a8] sm:$0x7]
        %v764 = vld [vmem:[%s701 + $0x1b0] sm:$0x7]
        %v765 = vld [vmem:[%s701 + $0x1b8] sm:$0x7]
        %v766 = vld [vmem:[%s701 + $0x1c0] sm:$0x7]
        %v767 = vld [vmem:[%s701 + $0x1c8] sm:$0x7]
        %v768 = vld [vmem:[%s701 + $0x1d0] sm:$0x7]
        %v769 = vld [vmem:[%s701 + $0x1d8] sm:$0x7]
        %v770 = vld [vmem:[%s701 + $0x1e0] sm:$0x7]
        %v771 = vld [vmem:[%s701 + $0x1e8] sm:$0x7]
        %v772 = vld [vmem:[%s701 + $0x1f0] sm:$0x7]
        %v773 = vld [vmem:[%s701 + $0x1f8] sm:$0x7]
        %v774 = vld [vmem:[%s3] sm:$0xff]
        %v775 = vld [vmem:[%s3 + $0x8] sm:$0xff]
        %v776 = vld [vmem:[%s3 + $0x10] sm:$0xff]
        %v777 = vld [vmem:[%s3 + $0x18] sm:$0xff]
        %v778 = vld [vmem:[%s4] sm:$0xff]
        %v779 = vld [vmem:[%s4 + $0x8] sm:$0xff]
        %v780 = vld [vmem:[%s4 + $0x10] sm:$0xff]
        %v781 = vld [vmem:[%s4 + $0x18] sm:$0xff]
        %783 = vset.pattern.permute.xlu0 0
        %784 = vperm.xlu0 %783, %v778
        %v785 = vpop.permute.xlu0 %784
        %788 = vset.pattern.permute.xlu0 0
        %789 = vperm.xlu0 %788, %v779
        %v790 = vpop.permute.xlu0 %789
        %793 = vset.pattern.permute.xlu0 0
        %794 = vperm.xlu0 %793, %v780
        %v795 = vpop.permute.xlu0 %794
        %798 = vset.pattern.permute.xlu0 0
        %799 = vperm.xlu0 %798, %v781
        %v800 = vpop.permute.xlu0 %799
        %vm802 = vcmask 220160
        %v804 = vsel %vm802, %v774, 0
        %v807 = vsel %vm802, %v775, 0
        %v810 = vsel %vm802, %v776, 0
        %v813 = vsel %vm802, %v777, 0
        %vm815 = vcmask 1042432
        %v817 = vsel %vm815, %v758, 0
        %v820 = vsel %vm815, %v759, 0
        %v823 = vsel %vm815, %v760, 0
        %v826 = vsel %vm815, %v761, 0
        %v829 = vsel %vm815, %v762, 0
        %v832 = vsel %vm815, %v763, 0
        %v835 = vsel %vm815, %v764, 0
        %v838 = vsel %vm815, %v765, 0
        %v841 = vsel %vm815, %v766, 0
        %v844 = vsel %vm815, %v767, 0
        %v847 = vsel %vm815, %v768, 0
        %v850 = vsel %vm815, %v769, 0
        %v853 = vsel %vm815, %v770, 0
        %v856 = vsel %vm815, %v771, 0
        %v859 = vsel %vm815, %v772, 0
        %v862 = vsel %vm815, %v773, 0
        %864 = vmatprep.subr.mxu0 %v711
        %865 = vmatpush1.msra.mxu0 %v710
        %866 = vmatprep.subr.mxu0 %v727
        %867 = vmatpush1.msra.mxu0 %v726
        %868 = vmatprep.subr.mxu0 %v743
        %869 = vmatpush1.msra.mxu0 %v742
        %870 = vmatprep.subr.mxu0 %v820
        %871 = vmatpush1.msra.mxu0 %v817
        %872 = vmatprep.subr.mxu0 0.0
        %873 = vmatpush1.msra.mxu0 0.0
        %874 = vmatprep.subr.mxu0 0.0
        %875 = vmatpush1.msra.mxu0 0.0
        %876 = vmatprep.subr.mxu0 0.0
        %877 = vmatpush1.msra.mxu0 0.0
        %878 = vmatprep.subr.mxu0 0.0
        %879 = vmatpush1.msra.mxu0 0.0
        %880 = vmatprep.subr.mxu0 0.0
        %881 = vmatpush1.msra.mxu0 0.0
        %882 = vmatprep.subr.mxu0 0.0
        %883 = vmatpush1.msra.mxu0 0.0
        %884 = vmatprep.subr.mxu0 0.0
        %885 = vmatpush1.msra.mxu0 0.0
        %886 = vmatprep.subr.mxu0 0.0
        %887 = vmatpush1.msra.mxu0 0.0
        %888 = vmatprep.subr.mxu0 0.0
        %889 = vmatpush1.msra.mxu0 0.0
        %890 = vmatprep.subr.mxu0 0.0
        %891 = vmatpush1.msra.mxu0 0.0
        %892 = vmatprep.subr.mxu0 0.0
        %893 = vmatpush1.msra.mxu0 0.0
        %894 = vmatprep.subr.mxu0 0.0
        %895 = vmatpush1.msra.mxu0 0.0
        %896 = vmatprep.subr.mxu0 0.0
        %897 = vmatpush1.msra.mxu0 0.0
        %898 = vmatprep.subr.mxu0 0.0
        %899 = vmatpush1.msra.mxu0 0.0
        %900 = vmatprep.subr.mxu0 0.0
        %901 = vmatpush1.msra.mxu0 0.0
        %902 = vmatprep.subr.mxu0 0.0
        %903 = vmatpush1.msra.mxu0 0.0
        %904 = vmatprep.subr.mxu0 0.0
        %905 = vmatpush1.msra.mxu0 0.0
        %906 = vmatprep.subr.mxu0 0.0
        %907 = vmatpush1.msra.mxu0 0.0
        %908 = vmatprep.subr.mxu0 0.0
        %909 = vmatpush1.msra.mxu0 0.0
        %910 = vmatprep.subr.mxu0 0.0
        %911 = vmatpush1.msra.mxu0 0.0
        %912 = vmatprep.subr.mxu0 0.0
        %913 = vmatpush1.msra.mxu0 0.0
        %914 = vmatprep.subr.mxu0 0.0
        %915 = vmatpush1.msra.mxu0 0.0
        %916 = vmatprep.subr.mxu0 0.0
        %917 = vmatpush1.msra.mxu0 0.0
        %918 = vmatprep.subr.mxu0 0.0
        %919 = vmatpush1.msra.mxu0 0.0
        %920 = vmatprep.subr.mxu0 0.0
        %921 = vmatpush1.msra.mxu0 0.0
        %922 = vmatprep.subr.mxu0 0.0
        %923 = vmatpush1.msra.mxu0 0.0
        %924 = vmatprep.subr.mxu0 0.0
        %925 = vmatpush1.msra.mxu0 0.0
        %926 = vmatprep.subr.mxu0 0.0
        %927 = vmatpush1.msra.mxu0 0.0
        %928 = vmatprep.mubr.f32.mxu0 0.0
        %929 = vmatmul.mubr.f32.gmra.mrb[0].mxu0 %v804
        %v930 = vpop.f32.mrb[0].mxu0
        %v931 = vadd.f32 %v785, %v930
        %v932 = vpop.f32.mrb[0].mxu0
        %v933 = vadd.f32 %v785, %v932
        %934 = vmatprep.mubr.f32.mxu0 0.0
        %935 = vmatmul.mubr.f32.gmra.mrb[0].mxu0 %v807
        %v936 = vpop.f32.mrb[0].mxu0
        %v937 = vadd.f32 %v790, %v936
        %v938 = vpop.f32.mrb[0].mxu0
        %v939 = vadd.f32 %v790, %v938
        %940 = vmatprep.mubr.f32.mxu0 0.0
        %941 = vmatmul.mubr.f32.gmra.mrb[0].mxu0 %v810
        %v942 = vpop.f32.mrb[0].mxu0
        %v943 = vadd.f32 %v795, %v942
        %v944 = vpop.f32.mrb[0].mxu0
        %v945 = vadd.f32 %v795, %v944
        %946 = vmatprep.mubr.f32.mxu0 0.0
        %947 = vmatmul.mubr.f32.gmra.mrb[0].mxu0 %v813
        %v948 = vpop.f32.mrb[0].mxu0
        %v949 = vadd.f32 %v800, %v948
        %v950 = vpop.f32.mrb[0].mxu0
        %v951 = vadd.f32 %v800, %v950
        %952 = vdwg.mxu0
        %953 = vmatprep.subr.mxu0 %v713
        %954 = vmatpush1.msra.mxu0 %v712
        %955 = vmatprep.subr.mxu0 %v729
        %956 = vmatpush1.msra.mxu0 %v728
        %957 = vmatprep.subr.mxu0 %v745
        %958 = vmatpush1.msra.mxu0 %v744
        %959 = vmatprep.subr.mxu0 %v826
        %960 = vmatpush1.msra.mxu0 %v823
        %961 = vmatprep.subr.mxu0 0.0
        %962 = vmatpush1.msra.mxu0 0.0
        %963 = vmatprep.subr.mxu0 0.0
        %964 = vmatpush1.msra.mxu0 0.0
        %965 = vmatprep.subr.mxu0 0.0
        %966 = vmatpush1.msra.mxu0 0.0
        %967 = vmatprep.subr.mxu0 0.0
        %968 = vmatpush1.msra.mxu0 0.0
        %969 = vmatprep.subr.mxu0 0.0
        %970 = vmatpush1.msra.mxu0 0.0
        %971 = vmatprep.subr.mxu0 0.0
        %972 = vmatpush1.msra.mxu0 0.0
        %973 = vmatprep.subr.mxu0 0.0
        %974 = vmatpush1.msra.mxu0 0.0
        %975 = vmatprep.subr.mxu0 0.0
        %976 = vmatpush1.msra.mxu0 0.0
        %977 = vmatprep.subr.mxu0 0.0
        %978 = vmatpush1.msra.mxu0 0.0
        %979 = vmatprep.subr.mxu0 0.0
        %980 = vmatpush1.msra.mxu0 0.0
        %981 = vmatprep.subr.mxu0 0.0
        %982 = vmatpush1.msra.mxu0 0.0
        %983 = vmatprep.subr.mxu0 0.0
        %984 = vmatpush1.msra.mxu0 0.0
        %985 = vmatprep.subr.mxu0 0.0
        %986 = vmatpush1.msra.mxu0 0.0
        %987 = vmatprep.subr.mxu0 0.0
        %988 = vmatpush1.msra.mxu0 0.0
        %989 = vmatprep.subr.mxu0 0.0
        %990 = vmatpush1.msra.mxu0 0.0
        %991 = vmatprep.subr.mxu0 0.0
        %992 = vmatpush1.msra.mxu0 0.0
        %993 = vmatprep.subr.mxu0 0.0
        %994 = vmatpush1.msra.mxu0 0.0
        %995 = vmatprep.subr.mxu0 0.0
        %996 = vmatpush1.msra.mxu0 0.0
        %997 = vmatprep.subr.mxu0 0.0
        %998 = vmatpush1.msra.mxu0 0.0
        %999 = vmatprep.subr.mxu0 0.0
        %1000 = vmatpush1.msra.mxu0 0.0
        %1001 = vmatprep.subr.mxu0 0.0
        %1002 = vmatpush1.msra.mxu0 0.0
        %1003 = vmatprep.subr.mxu0 0.0
        %1004 = vmatpush1.msra.mxu0 0.0
        %1005 = vmatprep.subr.mxu0 0.0
        %1006 = vmatpush1.msra.mxu0 0.0
        %1007 = vmatprep.subr.mxu0 0.0
        %1008 = vmatpush1.msra.mxu0 0.0
        %1009 = vmatprep.subr.mxu0 0.0
        %1010 = vmatpush1.msra.mxu0 0.0
        %1011 = vmatprep.subr.mxu0 0.0
        %1012 = vmatpush1.msra.mxu0 0.0
        %1013 = vmatprep.subr.mxu0 0.0
        %1014 = vmatpush1.msra.mxu0 0.0
        %1015 = vmatprep.subr.mxu0 0.0
        %1016 = vmatpush1.msra.mxu0 0.0
        %1017 = vmatprep.mubr.f32.mxu0 0.0
        %1018 = vmatmul.mubr.f32.gmra.mrb[0].mxu0 %v804
        %v1019 = vpop.f32.mrb[0].mxu0
        %v1020 = vadd.f32 %v785, %v1019
        %v1021 = vpop.f32.mrb[0].mxu0
        %v1022 = vadd.f32 %v785, %v1021
        %1023 = vmatprep.mubr.f32.mxu0 0.0
        %1024 = vmatmul.mubr.f32.gmra.mrb[0].mxu0 %v807
        %v1025 = vpop.f32.mrb[0].mxu0
        %v1026 = vadd.f32 %v790, %v1025
        %v1027 = vpop.f32.mrb[0].mxu0
        %v1028 = vadd.f32 %v790, %v1027
        %1029 = vmatprep.mubr.f32.mxu0 0.0
        %1030 = vmatmul.mubr.f32.gmra.mrb[0].mxu0 %v810
        %v1031 = vpop.f32.mrb[0].mxu0
        %v1032 = vadd.f32 %v795, %v1031
        %v1033 = vpop.f32.mrb[0].mxu0
        %v1034 = vadd.f32 %v795, %v1033
        %1035 = vmatprep.mubr.f32.mxu0 0.0
        %1036 = vmatmul.mubr.f32.gmra.mrb[0].mxu0 %v813
        %v1037 = vpop.f32.mrb[0].mxu0
        %v1038 = vadd.f32 %v800, %v1037
        %v1039 = vpop.f32.mrb[0].mxu0
        %v1040 = vadd.f32 %v800, %v1039
        %1041 = vdwg.mxu0
        %1042 = vmatprep.subr.mxu0 %v715
        %1043 = vmatpush1.msra.mxu0 %v714
        %1044 = vmatprep.subr.mxu0 %v731
        %1045 = vmatpush1.msra.mxu0 %v730
        %1046 = vmatprep.subr.mxu0 %v747
        %1047 = vmatpush1.msra.mxu0 %v746
        %1048 = vmatprep.subr.mxu0 %v832
        %1049 = vmatpush1.msra.mxu0 %v829
        %1050 = vmatprep.subr.mxu0 0.0
        %1051 = vmatpush1.msra.mxu0 0.0
        %1052 = vmatprep.subr.mxu0 0.0
        %1053 = vmatpush1.msra.mxu0 0.0
        %1054 = vmatprep.subr.mxu0 0.0
        %1055 = vmatpush1.msra.mxu0 0.0
        %1056 = vmatprep.subr.mxu0 0.0
        %1057 = vmatpush1.msra.mxu0 0.0
        %1058 = vmatprep.subr.mxu0 0.0
        %1059 = vmatpush1.msra.mxu0 0.0
        %1060 = vmatprep.subr.mxu0 0.0
        %1061 = vmatpush1.msra.mxu0 0.0
        %1062 = vmatprep.subr.mxu0 0.0
        %1063 = vmatpush1.msra.mxu0 0.0
        %1064 = vmatprep.subr.mxu0 0.0
        %1065 = vmatpush1.msra.mxu0 0.0
        %1066 = vmatprep.subr.mxu0 0.0
        %1067 = vmatpush1.msra.mxu0 0.0
        %1068 = vmatprep.subr.mxu0 0.0
        %1069 = vmatpush1.msra.mxu0 0.0
        %1070 = vmatprep.subr.mxu0 0.0
        %1071 = vmatpush1.msra.mxu0 0.0
        %1072 = vmatprep.subr.mxu0 0.0
        %1073 = vmatpush1.msra.mxu0 0.0
        %1074 = vmatprep.subr.mxu0 0.0
        %1075 = vmatpush1.msra.mxu0 0.0
        %1076 = vmatprep.subr.mxu0 0.0
        %1077 = vmatpush1.msra.mxu0 0.0
        %1078 = vmatprep.subr.mxu0 0.0
        %1079 = vmatpush1.msra.mxu0 0.0
        %1080 = vmatprep.subr.mxu0 0.0
        %1081 = vmatpush1.msra.mxu0 0.0
        %1082 = vmatprep.subr.mxu0 0.0
        %1083 = vmatpush1.msra.mxu0 0.0
        %1084 = vmatprep.subr.mxu0 0.0
        %1085 = vmatpush1.msra.mxu0 0.0
        %1086 = vmatprep.subr.mxu0 0.0
        %1087 = vmatpush1.msra.mxu0 0.0
        %1088 = vmatprep.subr.mxu0 0.0
        %1089 = vmatpush1.msra.mxu0 0.0
        %1090 = vmatprep.subr.mxu0 0.0
        %1091 = vmatpush1.msra.mxu0 0.0
        %1092 = vmatprep.subr.mxu0 0.0
        %1093 = vmatpush1.msra.mxu0 0.0
        %1094 = vmatprep.subr.mxu0 0.0
        %1095 = vmatpush1.msra.mxu0 0.0
        %1096 = vmatprep.subr.mxu0 0.0
        %1097 = vmatpush1.msra.mxu0 0.0
        %1098 = vmatprep.subr.mxu0 0.0
        %1099 = vmatpush1.msra.mxu0 0.0
        %1100 = vmatprep.subr.mxu0 0.0
        %1101 = vmatpush1.msra.mxu0 0.0
        %1102 = vmatprep.subr.mxu0 0.0
        %1103 = vmatpush1.msra.mxu0 0.0
        %1104 = vmatprep.subr.mxu0 0.0
        %1105 = vmatpush1.msra.mxu0 0.0
        %1106 = vmatprep.mubr.f32.mxu0 0.0
        %1107 = vmatmul.mubr.f32.gmra.mrb[0].mxu0 %v804
        %v1108 = vpop.f32.mrb[0].mxu0
        %v1109 = vadd.f32 %v785, %v1108
        %v1110 = vpop.f32.mrb[0].mxu0
        %v1111 = vadd.f32 %v785, %v1110
        %1112 = vmatprep.mubr.f32.mxu0 0.0
        %1113 = vmatmul.mubr.f32.gmra.mrb[0].mxu0 %v807
        %v1114 = vpop.f32.mrb[0].mxu0
        %v1115 = vadd.f32 %v790, %v1114
        %v1116 = vpop.f32.mrb[0].mxu0
        %v1117 = vadd.f32 %v790, %v1116
        %1118 = vmatprep.mubr.f32.mxu0 0.0
        %1119 = vmatmul.mubr.f32.gmra.mrb[0].mxu0 %v810
        %v1120 = vpop.f32.mrb[0].mxu0
        %v1121 = vadd.f32 %v795, %v1120
        %v1122 = vpop.f32.mrb[0].mxu0
        %v1123 = vadd.f32 %v795, %v1122
        %1124 = vmatprep.mubr.f32.mxu0 0.0
        %1125 = vmatmul.mubr.f32.gmra.mrb[0].mxu0 %v813
        %v1126 = vpop.f32.mrb[0].mxu0
        %v1127 = vadd.f32 %v800, %v1126
        %v1128 = vpop.f32.mrb[0].mxu0
        %v1129 = vadd.f32 %v800, %v1128
        %1130 = vdwg.mxu0
        %1131 = vmatprep.subr.mxu0 %v717
        %1132 = vmatpush1.msra.mxu0 %v716
        %1133 = vmatprep.subr.mxu0 %v733
        %1134 = vmatpush1.msra.mxu0 %v732
        %1135 = vmatprep.subr.mxu0 %v749
        %1136 = vmatpush1.msra.mxu0 %v748
        %1137 = vmatprep.subr.mxu0 %v838
        %1138 = vmatpush1.msra.mxu0 %v835
        %1139 = vmatprep.subr.mxu0 0.0
        %1140 = vmatpush1.msra.mxu0 0.0
        %1141 = vmatprep.subr.mxu0 0.0
        %1142 = vmatpush1.msra.mxu0 0.0
        %1143 = vmatprep.subr.mxu0 0.0
        %1144 = vmatpush1.msra.mxu0 0.0
        %1145 = vmatprep.subr.mxu0 0.0
        %1146 = vmatpush1.msra.mxu0 0.0
        %1147 = vmatprep.subr.mxu0 0.0
        %1148 = vmatpush1.msra.mxu0 0.0
        %1149 = vmatprep.subr.mxu0 0.0
        %1150 = vmatpush1.msra.mxu0 0.0
        %1151 = vmatprep.subr.mxu0 0.0
        %1152 = vmatpush1.msra.mxu0 0.0
        %1153 = vmatprep.subr.mxu0 0.0
        %1154 = vmatpush1.msra.mxu0 0.0
        %1155 = vmatprep.subr.mxu0 0.0
        %1156 = vmatpush1.msra.mxu0 0.0
        %1157 = vmatprep.subr.mxu0 0.0
        %1158 = vmatpush1.msra.mxu0 0.0
        %1159 = vmatprep.subr.mxu0 0.0
        %1160 = vmatpush1.msra.mxu0 0.0
        %1161 = vmatprep.subr.mxu0 0.0
        %1162 = vmatpush1.msra.mxu0 0.0
        %1163 = vmatprep.subr.mxu0 0.0
        %1164 = vmatpush1.msra.mxu0 0.0
        %1165 = vmatprep.subr.mxu0 0.0
        %1166 = vmatpush1.msra.mxu0 0.0
        %1167 = vmatprep.subr.mxu0 0.0
        %1168 = vmatpush1.msra.mxu0 0.0
        %1169 = vmatprep.subr.mxu0 0.0
        %1170 = vmatpush1.msra.mxu0 0.0
        %1171 = vmatprep.subr.mxu0 0.0
        %1172 = vmatpush1.msra.mxu0 0.0
        %1173 = vmatprep.subr.mxu0 0.0
        %1174 = vmatpush1.msra.mxu0 0.0
        %1175 = vmatprep.subr.mxu0 0.0
        %1176 = vmatpush1.msra.mxu0 0.0
        %1177 = vmatprep.subr.mxu0 0.0
        %1178 = vmatpush1.msra.mxu0 0.0
        %1179 = vmatprep.subr.mxu0 0.0
        %1180 = vmatpush1.msra.mxu0 0.0
        %1181 = vmatprep.subr.mxu0 0.0
        %1182 = vmatpush1.msra.mxu0 0.0
        %1183 = vmatprep.subr.mxu0 0.0
        %1184 = vmatpush1.msra.mxu0 0.0
        %1185 = vmatprep.subr.mxu0 0.0
        %1186 = vmatpush1.msra.mxu0 0.0
        %1187 = vmatprep.subr.mxu0 0.0
        %1188 = vmatpush1.msra.mxu0 0.0
        %1189 = vmatprep.subr.mxu0 0.0
        %1190 = vmatpush1.msra.mxu0 0.0
        %1191 = vmatprep.subr.mxu0 0.0
        %1192 = vmatpush1.msra.mxu0 0.0
        %1193 = vmatprep.subr.mxu0 0.0
        %1194 = vmatpush1.msra.mxu0 0.0
        %1195 = vmatprep.mubr.f32.mxu0 0.0
        %1196 = vmatmul.mubr.f32.gmra.mrb[0].mxu0 %v804
        %v1197 = vpop.f32.mrb[0].mxu0
        %v1198 = vadd.f32 %v785, %v1197
        %v1199 = vpop.f32.mrb[0].mxu0
        %v1200 = vadd.f32 %v785, %v1199
        %1201 = vmatprep.mubr.f32.mxu0 0.0
        %1202 = vmatmul.mubr.f32.gmra.mrb[0].mxu0 %v807
        %v1203 = vpop.f32.mrb[0].mxu0
        %v1204 = vadd.f32 %v790, %v1203
        %v1205 = vpop.f32.mrb[0].mxu0
        %v1206 = vadd.f32 %v790, %v1205
        %1207 = vmatprep.mubr.f32.mxu0 0.0
        %1208 = vmatmul.mubr.f32.gmra.mrb[0].mxu0 %v810
        %v1209 = vpop.f32.mrb[0].mxu0
        %v1210 = vadd.f32 %v795, %v1209
        %v1211 = vpop.f32.mrb[0].mxu0
        %v1212 = vadd.f32 %v795, %v1211
        %1213 = vmatprep.mubr.f32.mxu0 0.0
        %1214 = vmatmul.mubr.f32.gmra.mrb[0].mxu0 %v813
        %v1215 = vpop.f32.mrb[0].mxu0
        %v1216 = vadd.f32 %v800, %v1215
        %v1217 = vpop.f32.mrb[0].mxu0
        %v1218 = vadd.f32 %v800, %v1217
        %1219 = vdwg.mxu0
        %1220 = vmatprep.subr.mxu0 %v719
        %1221 = vmatpush1.msra.mxu0 %v718
        %1222 = vmatprep.subr.mxu0 %v735
        %1223 = vmatpush1.msra.mxu0 %v734
        %1224 = vmatprep.subr.mxu0 %v751
        %1225 = vmatpush1.msra.mxu0 %v750
        %1226 = vmatprep.subr.mxu0 %v844
        %1227 = vmatpush1.msra.mxu0 %v841
        %1228 = vmatprep.subr.mxu0 0.0
        %1229 = vmatpush1.msra.mxu0 0.0
        %1230 = vmatprep.subr.mxu0 0.0
        %1231 = vmatpush1.msra.mxu0 0.0
        %1232 = vmatprep.subr.mxu0 0.0
        %1233 = vmatpush1.msra.mxu0 0.0
        %1234 = vmatprep.subr.mxu0 0.0
        %1235 = vmatpush1.msra.mxu0 0.0
        %1236 = vmatprep.subr.mxu0 0.0
        %1237 = vmatpush1.msra.mxu0 0.0
        %1238 = vmatprep.subr.mxu0 0.0
        %1239 = vmatpush1.msra.mxu0 0.0
        %1240 = vmatprep.subr.mxu0 0.0
        %1241 = vmatpush1.msra.mxu0 0.0
        %1242 = vmatprep.subr.mxu0 0.0
        %1243 = vmatpush1.msra.mxu0 0.0
        %1244 = vmatprep.subr.mxu0 0.0
        %1245 = vmatpush1.msra.mxu0 0.0
        %1246 = vmatprep.subr.mxu0 0.0
        %1247 = vmatpush1.msra.mxu0 0.0
        %1248 = vmatprep.subr.mxu0 0.0
        %1249 = vmatpush1.msra.mxu0 0.0
        %1250 = vmatprep.subr.mxu0 0.0
        %1251 = vmatpush1.msra.mxu0 0.0
        %1252 = vmatprep.subr.mxu0 0.0
        %1253 = vmatpush1.msra.mxu0 0.0
        %1254 = vmatprep.subr.mxu0 0.0
        %1255 = vmatpush1.msra.mxu0 0.0
        %1256 = vmatprep.subr.mxu0 0.0
        %1257 = vmatpush1.msra.mxu0 0.0
        %1258 = vmatprep.subr.mxu0 0.0
        %1259 = vmatpush1.msra.mxu0 0.0
        %1260 = vmatprep.subr.mxu0 0.0
        %1261 = vmatpush1.msra.mxu0 0.0
        %1262 = vmatprep.subr.mxu0 0.0
        %1263 = vmatpush1.msra.mxu0 0.0
        %1264 = vmatprep.subr.mxu0 0.0
        %1265 = vmatpush1.msra.mxu0 0.0
        %1266 = vmatprep.subr.mxu0 0.0
        %1267 = vmatpush1.msra.mxu0 0.0
        %1268 = vmatprep.subr.mxu0 0.0
        %1269 = vmatpush1.msra.mxu0 0.0
        %1270 = vmatprep.subr.mxu0 0.0
        %1271 = vmatpush1.msra.mxu0 0.0
        %1272 = vmatprep.subr.mxu0 0.0
        %1273 = vmatpush1.msra.mxu0 0.0
        %1274 = vmatprep.subr.mxu0 0.0
        %1275 = vmatpush1.msra.mxu0 0.0
        %1276 = vmatprep.subr.mxu0 0.0
        %1277 = vmatpush1.msra.mxu0 0.0
        %1278 = vmatprep.subr.mxu0 0.0
        %1279 = vmatpush1.msra.mxu0 0.0
        %1280 = vmatprep.subr.mxu0 0.0
        %1281 = vmatpush1.msra.mxu0 0.0
        %1282 = vmatprep.subr.mxu0 0.0
        %1283 = vmatpush1.msra.mxu0 0.0
        %1284 = vmatprep.mubr.f32.mxu0 0.0
        %1285 = vmatmul.mubr.f32.gmra.mrb[0].mxu0 %v804
        %v1286 = vpop.f32.mrb[0].mxu0
        %v1287 = vadd.f32 %v785, %v1286
        %v1288 = vpop.f32.mrb[0].mxu0
        %v1289 = vadd.f32 %v785, %v1288
        %1290 = vmatprep.mubr.f32.mxu0 0.0
        %1291 = vmatmul.mubr.f32.gmra.mrb[0].mxu0 %v807
        %v1292 = vpop.f32.mrb[0].mxu0
        %v1293 = vadd.f32 %v790, %v1292
        %v1294 = vpop.f32.mrb[0].mxu0
        %v1295 = vadd.f32 %v790, %v1294
        %1296 = vmatprep.mubr.f32.mxu0 0.0
        %1297 = vmatmul.mubr.f32.gmra.mrb[0].mxu0 %v810
        %v1298 = vpop.f32.mrb[0].mxu0
        %v1299 = vadd.f32 %v795, %v1298
        %v1300 = vpop.f32.mrb[0].mxu0
        %v1301 = vadd.f32 %v795, %v1300
        %1302 = vmatprep.mubr.f32.mxu0 0.0
        %1303 = vmatmul.mubr.f32.gmra.mrb[0].mxu0 %v813
        %v1304 = vpop.f32.mrb[0].mxu0
        %v1305 = vadd.f32 %v800, %v1304
        %v1306 = vpop.f32.mrb[0].mxu0
        %v1307 = vadd.f32 %v800, %v1306
        %1308 = vdwg.mxu0
        %1309 = vmatprep.subr.mxu0 %v721
        %1310 = vmatpush1.msra.mxu0 %v720
        %1311 = vmatprep.subr.mxu0 %v737
        %1312 = vmatpush1.msra.mxu0 %v736
        %1313 = vmatprep.subr.mxu0 %v753
        %1314 = vmatpush1.msra.mxu0 %v752
        %1315 = vmatprep.subr.mxu0 %v850
        %1316 = vmatpush1.msra.mxu0 %v847
        %1317 = vmatprep.subr.mxu0 0.0
        %1318 = vmatpush1.msra.mxu0 0.0
        %1319 = vmatprep.subr.mxu0 0.0
        %1320 = vmatpush1.msra.mxu0 0.0
        %1321 = vmatprep.subr.mxu0 0.0
        %1322 = vmatpush1.msra.mxu0 0.0
        %1323 = vmatprep.subr.mxu0 0.0
        %1324 = vmatpush1.msra.mxu0 0.0
        %1325 = vmatprep.subr.mxu0 0.0
        %1326 = vmatpush1.msra.mxu0 0.0
        %1327 = vmatprep.subr.mxu0 0.0
        %1328 = vmatpush1.msra.mxu0 0.0
        %1329 = vmatprep.subr.mxu0 0.0
        %1330 = vmatpush1.msra.mxu0 0.0
        %1331 = vmatprep.subr.mxu0 0.0
        %1332 = vmatpush1.msra.mxu0 0.0
        %1333 = vmatprep.subr.mxu0 0.0
        %1334 = vmatpush1.msra.mxu0 0.0
        %1335 = vmatprep.subr.mxu0 0.0
        %1336 = vmatpush1.msra.mxu0 0.0
        %1337 = vmatprep.subr.mxu0 0.0
        %1338 = vmatpush1.msra.mxu0 0.0
        %1339 = vmatprep.subr.mxu0 0.0
        %1340 = vmatpush1.msra.mxu0 0.0
        %1341 = vmatprep.subr.mxu0 0.0
        %1342 = vmatpush1.msra.mxu0 0.0
        %1343 = vmatprep.subr.mxu0 0.0
        %1344 = vmatpush1.msra.mxu0 0.0
        %1345 = vmatprep.subr.mxu0 0.0
        %1346 = vmatpush1.msra.mxu0 0.0
        %1347 = vmatprep.subr.mxu0 0.0
        %1348 = vmatpush1.msra.mxu0 0.0
        %1349 = vmatprep.subr.mxu0 0.0
        %1350 = vmatpush1.msra.mxu0 0.0
        %1351 = vmatprep.subr.mxu0 0.0
        %1352 = vmatpush1.msra.mxu0 0.0
        %1353 = vmatprep.subr.mxu0 0.0
        %1354 = vmatpush1.msra.mxu0 0.0
        %1355 = vmatprep.subr.mxu0 0.0
        %1356 = vmatpush1.msra.mxu0 0.0
        %1357 = vmatprep.subr.mxu0 0.0
        %1358 = vmatpush1.msra.mxu0 0.0
        %1359 = vmatprep.subr.mxu0 0.0
        %1360 = vmatpush1.msra.mxu0 0.0
        %1361 = vmatprep.subr.mxu0 0.0
        %1362 = vmatpush1.msra.mxu0 0.0
        %1363 = vmatprep.subr.mxu0 0.0
        %1364 = vmatpush1.msra.mxu0 0.0
        %1365 = vmatprep.subr.mxu0 0.0
        %1366 = vmatpush1.msra.mxu0 0.0
        %1367 = vmatprep.subr.mxu0 0.0
        %1368 = vmatpush1.msra.mxu0 0.0
        %1369 = vmatprep.subr.mxu0 0.0
        %1370 = vmatpush1.msra.mxu0 0.0
        %1371 = vmatprep.subr.mxu0 0.0
        %1372 = vmatpush1.msra.mxu0 0.0
        %1373 = vmatprep.mubr.f32.mxu0 0.0
        %1374 = vmatmul.mubr.f32.gmra.mrb[0].mxu0 %v804
        %v1375 = vpop.f32.mrb[0].mxu0
        %v1376 = vadd.f32 %v785, %v1375
        %v1377 = vpop.f32.mrb[0].mxu0
        %v1378 = vadd.f32 %v785, %v1377
        %1379 = vmatprep.mubr.f32.mxu0 0.0
        %1380 = vmatmul.mubr.f32.gmra.mrb[0].mxu0 %v807
        %v1381 = vpop.f32.mrb[0].mxu0
        %v1382 = vadd.f32 %v790, %v1381
        %v1383 = vpop.f32.mrb[0].mxu0
        %v1384 = vadd.f32 %v790, %v1383
        %1385 = vmatprep.mubr.f32.mxu0 0.0
        %1386 = vmatmul.mubr.f32.gmra.mrb[0].mxu0 %v810
        %v1387 = vpop.f32.mrb[0].mxu0
        %v1388 = vadd.f32 %v795, %v1387
        %v1389 = vpop.f32.mrb[0].mxu0
        %v1390 = vadd.f32 %v795, %v1389
        %1391 = vmatprep.mubr.f32.mxu0 0.0
        %1392 = vmatmul.mubr.f32.gmra.mrb[0].mxu0 %v813
        %v1393 = vpop.f32.mrb[0].mxu0
        %v1394 = vadd.f32 %v800, %v1393
        %v1395 = vpop.f32.mrb[0].mxu0
        %v1396 = vadd.f32 %v800, %v1395
        %1397 = vdwg.mxu0
        %1398 = vmatprep.subr.mxu0 %v723
        %1399 = vmatpush1.msra.mxu0 %v722
        %1400 = vmatprep.subr.mxu0 %v739
        %1401 = vmatpush1.msra.mxu0 %v738
        %1402 = vmatprep.subr.mxu0 %v755
        %1403 = vmatpush1.msra.mxu0 %v754
        %1404 = vmatprep.subr.mxu0 %v856
        %1405 = vmatpush1.msra.mxu0 %v853
        %1406 = vmatprep.subr.mxu0 0.0
        %1407 = vmatpush1.msra.mxu0 0.0
        %1408 = vmatprep.subr.mxu0 0.0
        %1409 = vmatpush1.msra.mxu0 0.0
        %1410 = vmatprep.subr.mxu0 0.0
        %1411 = vmatpush1.msra.mxu0 0.0
        %1412 = vmatprep.subr.mxu0 0.0
        %1413 = vmatpush1.msra.mxu0 0.0
        %1414 = vmatprep.subr.mxu0 0.0
        %1415 = vmatpush1.msra.mxu0 0.0
        %1416 = vmatprep.subr.mxu0 0.0
        %1417 = vmatpush1.msra.mxu0 0.0
        %1418 = vmatprep.subr.mxu0 0.0
        %1419 = vmatpush1.msra.mxu0 0.0
        %1420 = vmatprep.subr.mxu0 0.0
        %1421 = vmatpush1.msra.mxu0 0.0
        %1422 = vmatprep.subr.mxu0 0.0
        %1423 = vmatpush1.msra.mxu0 0.0
        %1424 = vmatprep.subr.mxu0 0.0
        %1425 = vmatpush1.msra.mxu0 0.0
        %1426 = vmatprep.subr.mxu0 0.0
        %1427 = vmatpush1.msra.mxu0 0.0
        %1428 = vmatprep.subr.mxu0 0.0
        %1429 = vmatpush1.msra.mxu0 0.0
        %1430 = vmatprep.subr.mxu0 0.0
        %1431 = vmatpush1.msra.mxu0 0.0
        %1432 = vmatprep.subr.mxu0 0.0
        %1433 = vmatpush1.msra.mxu0 0.0
        %1434 = vmatprep.subr.mxu0 0.0
        %1435 = vmatpush1.msra.mxu0 0.0
        %1436 = vmatprep.subr.mxu0 0.0
        %1437 = vmatpush1.msra.mxu0 0.0
        %1438 = vmatprep.subr.mxu0 0.0
        %1439 = vmatpush1.msra.mxu0 0.0
        %1440 = vmatprep.subr.mxu0 0.0
        %1441 = vmatpush1.msra.mxu0 0.0
        %1442 = vmatprep.subr.mxu0 0.0
        %1443 = vmatpush1.msra.mxu0 0.0
        %1444 = vmatprep.subr.mxu0 0.0
        %1445 = vmatpush1.msra.mxu0 0.0
        %1446 = vmatprep.subr.mxu0 0.0
        %1447 = vmatpush1.msra.mxu0 0.0
        %1448 = vmatprep.subr.mxu0 0.0
        %1449 = vmatpush1.msra.mxu0 0.0
        %1450 = vmatprep.subr.mxu0 0.0
        %1451 = vmatpush1.msra.mxu0 0.0
        %1452 = vmatprep.subr.mxu0 0.0
        %1453 = vmatpush1.msra.mxu0 0.0
        %1454 = vmatprep.subr.mxu0 0.0
        %1455 = vmatpush1.msra.mxu0 0.0
        %1456 = vmatprep.subr.mxu0 0.0
        %1457 = vmatpush1.msra.mxu0 0.0
        %1458 = vmatprep.subr.mxu0 0.0
        %1459 = vmatpush1.msra.mxu0 0.0
        %1460 = vmatprep.subr.mxu0 0.0
        %1461 = vmatpush1.msra.mxu0 0.0
        %1462 = vmatprep.mubr.f32.mxu0 0.0
        %1463 = vmatmul.mubr.f32.gmra.mrb[0].mxu0 %v804
        %v1464 = vpop.f32.mrb[0].mxu0
        %v1465 = vadd.f32 %v785, %v1464
        %v1466 = vpop.f32.mrb[0].mxu0
        %v1467 = vadd.f32 %v785, %v1466
        %1468 = vmatprep.mubr.f32.mxu0 0.0
        %1469 = vmatmul.mubr.f32.gmra.mrb[0].mxu0 %v807
        %v1470 = vpop.f32.mrb[0].mxu0
        %v1471 = vadd.f32 %v790, %v1470
        %v1472 = vpop.f32.mrb[0].mxu0
        %v1473 = vadd.f32 %v790, %v1472
        %1474 = vmatprep.mubr.f32.mxu0 0.0
        %1475 = vmatmul.mubr.f32.gmra.mrb[0].mxu0 %v810
        %v1476 = vpop.f32.mrb[0].mxu0
        %v1477 = vadd.f32 %v795, %v1476
        %v1478 = vpop.f32.mrb[0].mxu0
        %v1479 = vadd.f32 %v795, %v1478
        %1480 = vmatprep.mubr.f32.mxu0 0.0
        %1481 = vmatmul.mubr.f32.gmra.mrb[0].mxu0 %v813
        %v1482 = vpop.f32.mrb[0].mxu0
        %v1483 = vadd.f32 %v800, %v1482
        %v1484 = vpop.f32.mrb[0].mxu0
        %v1485 = vadd.f32 %v800, %v1484
        %1486 = vdwg.mxu0
        %1487 = vmatprep.subr.mxu0 %v725
        %1488 = vmatpush1.msra.mxu0 %v724
        %1489 = vmatprep.subr.mxu0 %v741
        %1490 = vmatpush1.msra.mxu0 %v740
        %1491 = vmatprep.subr.mxu0 %v757
        %1492 = vmatpush1.msra.mxu0 %v756
        %1493 = vmatprep.subr.mxu0 %v862
        %1494 = vmatpush1.msra.mxu0 %v859
        %1495 = vmatprep.subr.mxu0 0.0
        %1496 = vmatpush1.msra.mxu0 0.0
        %1497 = vmatprep.subr.mxu0 0.0
        %1498 = vmatpush1.msra.mxu0 0.0
        %1499 = vmatprep.subr.mxu0 0.0
        %1500 = vmatpush1.msra.mxu0 0.0
        %1501 = vmatprep.subr.mxu0 0.0
        %1502 = vmatpush1.msra.mxu0 0.0
        %1503 = vmatprep.subr.mxu0 0.0
        %1504 = vmatpush1.msra.mxu0 0.0
        %1505 = vmatprep.subr.mxu0 0.0
        %1506 = vmatpush1.msra.mxu0 0.0
        %1507 = vmatprep.subr.mxu0 0.0
        %1508 = vmatpush1.msra.mxu0 0.0
        %1509 = vmatprep.subr.mxu0 0.0
        %1510 = vmatpush1.msra.mxu0 0.0
        %1511 = vmatprep.subr.mxu0 0.0
        %1512 = vmatpush1.msra.mxu0 0.0
        %1513 = vmatprep.subr.mxu0 0.0
        %1514 = vmatpush1.msra.mxu0 0.0
        %1515 = vmatprep.subr.mxu0 0.0
        %1516 = vmatpush1.msra.mxu0 0.0
        %1517 = vmatprep.subr.mxu0 0.0
        %1518 = vmatpush1.msra.mxu0 0.0
        %1519 = vmatprep.subr.mxu0 0.0
        %1520 = vmatpush1.msra.mxu0 0.0
        %1521 = vmatprep.subr.mxu0 0.0
        %1522 = vmatpush1.msra.mxu0 0.0
        %1523 = vmatprep.subr.mxu0 0.0
        %1524 = vmatpush1.msra.mxu0 0.0
        %1525 = vmatprep.subr.mxu0 0.0
        %1526 = vmatpush1.msra.mxu0 0.0
        %1527 = vmatprep.subr.mxu0 0.0
        %1528 = vmatpush1.msra.mxu0 0.0
        %1529 = vmatprep.subr.mxu0 0.0
        %1530 = vmatpush1.msra.mxu0 0.0
        %1531 = vmatprep.subr.mxu0 0.0
        %1532 = vmatpush1.msra.mxu0 0.0
        %1533 = vmatprep.subr.mxu0 0.0
        %1534 = vmatpush1.msra.mxu0 0.0
        %1535 = vmatprep.subr.mxu0 0.0
        %1536 = vmatpush1.msra.mxu0 0.0
        %1537 = vmatprep.subr.mxu0 0.0
        %1538 = vmatpush1.msra.mxu0 0.0
        %1539 = vmatprep.subr.mxu0 0.0
        %1540 = vmatpush1.msra.mxu0 0.0
        %1541 = vmatprep.subr.mxu0 0.0
        %1542 = vmatpush1.msra.mxu0 0.0
        %1543 = vmatprep.subr.mxu0 0.0
        %1544 = vmatpush1.msra.mxu0 0.0
        %1545 = vmatprep.subr.mxu0 0.0
        %1546 = vmatpush1.msra.mxu0 0.0
        %1547 = vmatprep.subr.mxu0 0.0
        %1548 = vmatpush1.msra.mxu0 0.0
        %1549 = vmatprep.subr.mxu0 0.0
        %1550 = vmatpush1.msra.mxu0 0.0
        %1551 = vmatprep.mubr.f32.mxu0 0.0
        %1552 = vmatmul.mubr.f32.gmra.mrb[0].mxu0 %v804
        %v1553 = vpop.f32.mrb[0].mxu0
        %v1554 = vadd.f32 %v785, %v1553
        %v1555 = vpop.f32.mrb[0].mxu0
        %v1556 = vadd.f32 %v785, %v1555
        %1557 = vmatprep.mubr.f32.mxu0 0.0
        %1558 = vmatmul.mubr.f32.gmra.mrb[0].mxu0 %v807
        %v1559 = vpop.f32.mrb[0].mxu0
        %v1560 = vadd.f32 %v790, %v1559
        %v1561 = vpop.f32.mrb[0].mxu0
        %v1562 = vadd.f32 %v790, %v1561
        %1563 = vmatprep.mubr.f32.mxu0 0.0
        %1564 = vmatmul.mubr.f32.gmra.mrb[0].mxu0 %v810
        %v1565 = vpop.f32.mrb[0].mxu0
        %v1566 = vadd.f32 %v795, %v1565
        %v1567 = vpop.f32.mrb[0].mxu0
        %v1568 = vadd.f32 %v795, %v1567
        %1569 = vmatprep.mubr.f32.mxu0 0.0
        %1570 = vmatmul.mubr.f32.gmra.mrb[0].mxu0 %v813
        %v1571 = vpop.f32.mrb[0].mxu0
        %v1572 = vadd.f32 %v800, %v1571
        %v1573 = vpop.f32.mrb[0].mxu0
        %v1574 = vadd.f32 %v800, %v1573
        %1575 = vdwg.mxu0
        %v1576 = vmax.f32 %v931, 0.0
        %v1577 = vmax.f32 %v933, 0.0
        %v1578 = vmax.f32 %v1020, 0.0
        %v1579 = vmax.f32 %v1022, 0.0
        %v1580 = vmax.f32 %v1109, 0.0
        %v1581 = vmax.f32 %v1111, 0.0
        %v1582 = vmax.f32 %v1198, 0.0
        %v1583 = vmax.f32 %v1200, 0.0
        %v1584 = vmax.f32 %v1287, 0.0
        %v1585 = vmax.f32 %v1289, 0.0
        %v1586 = vmax.f32 %v1376, 0.0
        %v1587 = vmax.f32 %v1378, 0.0
        %v1588 = vmax.f32 %v1465, 0.0
        %v1589 = vmax.f32 %v1467, 0.0
        %v1590 = vmax.f32 %v1554, 0.0
        %v1591 = vmax.f32 %v1556, 0.0
        %v1592 = vmax.f32 %v937, 0.0
        %v1593 = vmax.f32 %v939, 0.0
        %v1594 = vmax.f32 %v1026, 0.0
        %v1595 = vmax.f32 %v1028, 0.0
        %v1596 = vmax.f32 %v1115, 0.0
        %v1597 = vmax.f32 %v1117, 0.0
        %v1598 = vmax.f32 %v1204, 0.0
        %v1599 = vmax.f32 %v1206, 0.0
        %v1600 = vmax.f32 %v1293, 0.0
        %v1601 = vmax.f32 %v1295, 0.0
        %v1602 = vmax.f32 %v1382, 0.0
        %v1603 = vmax.f32 %v1384, 0.0
        %v1604 = vmax.f32 %v1471, 0.0
        %v1605 = vmax.f32 %v1473, 0.0
        %v1606 = vmax.f32 %v1560, 0.0
        %v1607 = vmax.f32 %v1562, 0.0
        %v1608 = vmax.f32 %v943, 0.0
        %v1609 = vmax.f32 %v945, 0.0
        %v1610 = vmax.f32 %v1032, 0.0
        %v1611 = vmax.f32 %v1034, 0.0
        %v1612 = vmax.f32 %v1121, 0.0
        %v1613 = vmax.f32 %v1123, 0.0
        %v1614 = vmax.f32 %v1210, 0.0
        %v1615 = vmax.f32 %v1212, 0.0
        %v1616 = vmax.f32 %v1299, 0.0
        %v1617 = vmax.f32 %v1301, 0.0
        %v1618 = vmax.f32 %v1388, 0.0
        %v1619 = vmax.f32 %v1390, 0.0
        %v1620 = vmax.f32 %v1477, 0.0
        %v1621 = vmax.f32 %v1479, 0.0
        %v1622 = vmax.f32 %v1566, 0.0
        %v1623 = vmax.f32 %v1568, 0.0
        %v1624 = vmax.f32 %v949, 0.0
        %v1625 = vmax.f32 %v951, 0.0
        %v1626 = vmax.f32 %v1038, 0.0
        %v1627 = vmax.f32 %v1040, 0.0
        %v1628 = vmax.f32 %v1127, 0.0
        %v1629 = vmax.f32 %v1129, 0.0
        %v1630 = vmax.f32 %v1216, 0.0
        %v1631 = vmax.f32 %v1218, 0.0
        %v1632 = vmax.f32 %v1305, 0.0
        %v1633 = vmax.f32 %v1307, 0.0
        %v1634 = vmax.f32 %v1394, 0.0
        %v1635 = vmax.f32 %v1396, 0.0
        %v1636 = vmax.f32 %v1483, 0.0
        %v1637 = vmax.f32 %v1485, 0.0
        %v1638 = vmax.f32 %v1572, 0.0
        %v1639 = vmax.f32 %v1574, 0.0
        %v1640 = vld [vmem:[%s2] sm:$0xff]
        %v1641 = vld [vmem:[%s2 + $0x8] sm:$0xff]
        %v1642 = vld [vmem:[%s2 + $0x10] sm:$0xff]
        %v1643 = vld [vmem:[%s2 + $0x18] sm:$0xff]
        %v1644 = vld [vmem:[%s2 + $0x20] sm:$0xff]
        %v1645 = vld [vmem:[%s2 + $0x28] sm:$0xff]
        %v1646 = vld [vmem:[%s2 + $0x30] sm:$0xff]
        %v1647 = vld [vmem:[%s2 + $0x38] sm:$0xff]
        %v1648 = vld [vmem:[%s2 + $0x40] sm:$0xff]
        %v1649 = vld [vmem:[%s2 + $0x48] sm:$0xff]
        %v1650 = vld [vmem:[%s2 + $0x50] sm:$0xff]
        %v1651 = vld [vmem:[%s2 + $0x58] sm:$0xff]
        %v1652 = vld [vmem:[%s2 + $0x60] sm:$0xff]
        %v1653 = vld [vmem:[%s2 + $0x68] sm:$0xff]
        %v1654 = vld [vmem:[%s2 + $0x70] sm:$0xff]
        %v1655 = vld [vmem:[%s2 + $0x78] sm:$0xff]
        %v1656 = vld [vmem:[%s2 + $0x80] sm:$0xff]
        %v1657 = vld [vmem:[%s2 + $0x88] sm:$0xff]
        %v1658 = vld [vmem:[%s2 + $0x90] sm:$0xff]
        %v1659 = vld [vmem:[%s2 + $0x98] sm:$0xff]
        %v1660 = vld [vmem:[%s2 + $0xa0] sm:$0xff]
        %v1661 = vld [vmem:[%s2 + $0xa8] sm:$0xff]
        %v1662 = vld [vmem:[%s2 + $0xb0] sm:$0xff]
        %v1663 = vld [vmem:[%s2 + $0xb8] sm:$0xff]
        %v1664 = vld [vmem:[%s2 + $0xc0] sm:$0xff]
        %v1665 = vld [vmem:[%s2 + $0xc8] sm:$0xff]
        %v1666 = vld [vmem:[%s2 + $0xd0] sm:$0xff]
        %v1667 = vld [vmem:[%s2 + $0xd8] sm:$0xff]
        %v1668 = vld [vmem:[%s2 + $0xe0] sm:$0xff]
        %v1669 = vld [vmem:[%s2 + $0xe8] sm:$0xff]
        %v1670 = vld [vmem:[%s2 + $0xf0] sm:$0xff]
        %v1671 = vld [vmem:[%s2 + $0xf8] sm:$0xff]
        %v1672 = vld [vmem:[%s2 + $0x100] sm:$0xff]
        %v1673 = vld [vmem:[%s2 + $0x108] sm:$0xff]
        %v1674 = vld [vmem:[%s2 + $0x110] sm:$0xff]
        %v1675 = vld [vmem:[%s2 + $0x118] sm:$0xff]
        %v1676 = vld [vmem:[%s2 + $0x120] sm:$0xff]
        %v1677 = vld [vmem:[%s2 + $0x128] sm:$0xff]
        %v1678 = vld [vmem:[%s2 + $0x130] sm:$0xff]
        %v1679 = vld [vmem:[%s2 + $0x138] sm:$0xff]
        %v1680 = vld [vmem:[%s2 + $0x140] sm:$0xff]
        %v1681 = vld [vmem:[%s2 + $0x148] sm:$0xff]
        %v1682 = vld [vmem:[%s2 + $0x150] sm:$0xff]
        %v1683 = vld [vmem:[%s2 + $0x158] sm:$0xff]
        %v1684 = vld [vmem:[%s2 + $0x160] sm:$0xff]
        %v1685 = vld [vmem:[%s2 + $0x168] sm:$0xff]
        %v1686 = vld [vmem:[%s2 + $0x170] sm:$0xff]
        %v1687 = vld [vmem:[%s2 + $0x178] sm:$0xff]
        %v1688 = vld [vmem:[%s2 + $0x180] sm:$0xff]
        %v1689 = vld [vmem:[%s2 + $0x188] sm:$0xff]
        %v1690 = vld [vmem:[%s2 + $0x190] sm:$0xff]
        %v1691 = vld [vmem:[%s2 + $0x198] sm:$0xff]
        %v1692 = vld [vmem:[%s2 + $0x1a0] sm:$0xff]
        %v1693 = vld [vmem:[%s2 + $0x1a8] sm:$0xff]
        %v1694 = vld [vmem:[%s2 + $0x1b0] sm:$0xff]
        %v1695 = vld [vmem:[%s2 + $0x1b8] sm:$0xff]
        %v1696 = vld [vmem:[%s2 + $0x1c0] sm:$0xff]
        %v1697 = vld [vmem:[%s2 + $0x1c8] sm:$0xff]
        %v1698 = vld [vmem:[%s2 + $0x1d0] sm:$0xff]
        %v1699 = vld [vmem:[%s2 + $0x1d8] sm:$0xff]
        %v1700 = vld [vmem:[%s2 + $0x1e0] sm:$0xff]
        %v1701 = vld [vmem:[%s2 + $0x1e8] sm:$0xff]
        %v1702 = vld [vmem:[%s2 + $0x1f0] sm:$0xff]
        %v1703 = vld [vmem:[%s2 + $0x1f8] sm:$0xff]
        %v1704 = vld [vmem:[%s2 + $0x200] sm:$0xff]
        %v1705 = vld [vmem:[%s2 + $0x208] sm:$0xff]
        %v1706 = vld [vmem:[%s2 + $0x210] sm:$0xff]
        %v1707 = vld [vmem:[%s2 + $0x218] sm:$0xff]
        %v1708 = vld [vmem:[%s2 + $0x220] sm:$0xff]
        %v1709 = vld [vmem:[%s2 + $0x228] sm:$0xff]
        %v1710 = vld [vmem:[%s2 + $0x230] sm:$0xff]
        %v1711 = vld [vmem:[%s2 + $0x238] sm:$0xff]
        %v1712 = vld [vmem:[%s2 + $0x240] sm:$0xff]
        %v1713 = vld [vmem:[%s2 + $0x248] sm:$0xff]
        %v1714 = vld [vmem:[%s2 + $0x250] sm:$0xff]
        %v1715 = vld [vmem:[%s2 + $0x258] sm:$0xff]
        %v1716 = vld [vmem:[%s2 + $0x260] sm:$0xff]
        %v1717 = vld [vmem:[%s2 + $0x268] sm:$0xff]
        %v1718 = vld [vmem:[%s2 + $0x270] sm:$0xff]
        %v1719 = vld [vmem:[%s2 + $0x278] sm:$0xff]
        %v1720 = vld [vmem:[%s2 + $0x280] sm:$0xff]
        %v1721 = vld [vmem:[%s2 + $0x288] sm:$0xff]
        %v1722 = vld [vmem:[%s2 + $0x290] sm:$0xff]
        %v1723 = vld [vmem:[%s2 + $0x298] sm:$0xff]
        %v1724 = vld [vmem:[%s2 + $0x2a0] sm:$0xff]
        %v1725 = vld [vmem:[%s2 + $0x2a8] sm:$0xff]
        %v1726 = vld [vmem:[%s2 + $0x2b0] sm:$0xff]
        %v1727 = vld [vmem:[%s2 + $0x2b8] sm:$0xff]
        %v1728 = vld [vmem:[%s2 + $0x2c0] sm:$0xff]
        %v1729 = vld [vmem:[%s2 + $0x2c8] sm:$0xff]
        %v1730 = vld [vmem:[%s2 + $0x2d0] sm:$0xff]
        %v1731 = vld [vmem:[%s2 + $0x2d8] sm:$0xff]
        %v1732 = vld [vmem:[%s2 + $0x2e0] sm:$0xff]
        %v1733 = vld [vmem:[%s2 + $0x2e8] sm:$0xff]
        %v1734 = vld [vmem:[%s2 + $0x2f0] sm:$0xff]
        %v1735 = vld [vmem:[%s2 + $0x2f8] sm:$0xff]
        %v1736 = vld [vmem:[%s2 + $0x300] sm:$0xff]
        %v1737 = vld [vmem:[%s2 + $0x308] sm:$0xff]
        %v1738 = vld [vmem:[%s2 + $0x310] sm:$0xff]
        %v1739 = vld [vmem:[%s2 + $0x318] sm:$0xff]
        %v1740 = vld [vmem:[%s2 + $0x320] sm:$0xff]
        %v1741 = vld [vmem:[%s2 + $0x328] sm:$0xff]
        %v1742 = vld [vmem:[%s2 + $0x330] sm:$0xff]
        %v1743 = vld [vmem:[%s2 + $0x338] sm:$0xff]
        %v1744 = vld [vmem:[%s2 + $0x340] sm:$0xff]
        %v1745 = vld [vmem:[%s2 + $0x348] sm:$0xff]
        %v1746 = vld [vmem:[%s2 + $0x350] sm:$0xff]
        %v1747 = vld [vmem:[%s2 + $0x358] sm:$0xff]
        %v1748 = vld [vmem:[%s2 + $0x360] sm:$0xff]
        %v1749 = vld [vmem:[%s2 + $0x368] sm:$0xff]
        %v1750 = vld [vmem:[%s2 + $0x370] sm:$0xff]
        %v1751 = vld [vmem:[%s2 + $0x378] sm:$0xff]
        %v1752 = vld [vmem:[%s2 + $0x380] sm:$0xff]
        %v1753 = vld [vmem:[%s2 + $0x388] sm:$0xff]
        %v1754 = vld [vmem:[%s2 + $0x390] sm:$0xff]
        %v1755 = vld [vmem:[%s2 + $0x398] sm:$0xff]
        %v1756 = vld [vmem:[%s2 + $0x3a0] sm:$0xff]
        %v1757 = vld [vmem:[%s2 + $0x3a8] sm:$0xff]
        %v1758 = vld [vmem:[%s2 + $0x3b0] sm:$0xff]
        %v1759 = vld [vmem:[%s2 + $0x3b8] sm:$0xff]
        %v1760 = vld [vmem:[%s2 + $0x3c0] sm:$0xff]
        %v1761 = vld [vmem:[%s2 + $0x3c8] sm:$0xff]
        %v1762 = vld [vmem:[%s2 + $0x3d0] sm:$0xff]
        %v1763 = vld [vmem:[%s2 + $0x3d8] sm:$0xff]
        %v1764 = vld [vmem:[%s2 + $0x3e0] sm:$0xff]
        %v1765 = vld [vmem:[%s2 + $0x3e8] sm:$0xff]
        %v1766 = vld [vmem:[%s2 + $0x3f0] sm:$0xff]
        %v1767 = vld [vmem:[%s2 + $0x3f8] sm:$0xff]
        %v1768 = vld [vmem:[%s2 + $0x400] sm:$0xff]
        %v1769 = vld [vmem:[%s2 + $0x408] sm:$0xff]
        %v1770 = vld [vmem:[%s2 + $0x410] sm:$0xff]
        %v1771 = vld [vmem:[%s2 + $0x418] sm:$0xff]
        %v1772 = vld [vmem:[%s2 + $0x420] sm:$0xff]
        %v1773 = vld [vmem:[%s2 + $0x428] sm:$0xff]
        %v1774 = vld [vmem:[%s2 + $0x430] sm:$0xff]
        %v1775 = vld [vmem:[%s2 + $0x438] sm:$0xff]
        %v1776 = vld [vmem:[%s2 + $0x440] sm:$0xff]
        %v1777 = vld [vmem:[%s2 + $0x448] sm:$0xff]
        %v1778 = vld [vmem:[%s2 + $0x450] sm:$0xff]
        %v1779 = vld [vmem:[%s2 + $0x458] sm:$0xff]
        %v1780 = vld [vmem:[%s2 + $0x460] sm:$0xff]
        %v1781 = vld [vmem:[%s2 + $0x468] sm:$0xff]
        %v1782 = vld [vmem:[%s2 + $0x470] sm:$0xff]
        %v1783 = vld [vmem:[%s2 + $0x478] sm:$0xff]
        %v1784 = vld [vmem:[%s2 + $0x480] sm:$0xff]
        %v1785 = vld [vmem:[%s2 + $0x488] sm:$0xff]
        %v1786 = vld [vmem:[%s2 + $0x490] sm:$0xff]
        %v1787 = vld [vmem:[%s2 + $0x498] sm:$0xff]
        %v1788 = vld [vmem:[%s2 + $0x4a0] sm:$0xff]
        %v1789 = vld [vmem:[%s2 + $0x4a8] sm:$0xff]
        %v1790 = vld [vmem:[%s2 + $0x4b0] sm:$0xff]
        %v1791 = vld [vmem:[%s2 + $0x4b8] sm:$0xff]
        %v1792 = vld [vmem:[%s2 + $0x4c0] sm:$0xff]
        %v1793 = vld [vmem:[%s2 + $0x4c8] sm:$0xff]
        %v1794 = vld [vmem:[%s2 + $0x4d0] sm:$0xff]
        %v1795 = vld [vmem:[%s2 + $0x4d8] sm:$0xff]
        %v1796 = vld [vmem:[%s2 + $0x4e0] sm:$0xff]
        %v1797 = vld [vmem:[%s2 + $0x4e8] sm:$0xff]
        %v1798 = vld [vmem:[%s2 + $0x4f0] sm:$0xff]
        %v1799 = vld [vmem:[%s2 + $0x4f8] sm:$0xff]
        %v1800 = vld [vmem:[%s2 + $0x500] sm:$0xff]
        %v1801 = vld [vmem:[%s2 + $0x508] sm:$0xff]
        %v1802 = vld [vmem:[%s2 + $0x510] sm:$0xff]
        %v1803 = vld [vmem:[%s2 + $0x518] sm:$0xff]
        %v1804 = vld [vmem:[%s2 + $0x520] sm:$0xff]
        %v1805 = vld [vmem:[%s2 + $0x528] sm:$0xff]
        %v1806 = vld [vmem:[%s2 + $0x530] sm:$0xff]
        %v1807 = vld [vmem:[%s2 + $0x538] sm:$0xff]
        %v1808 = vld [vmem:[%s2 + $0x540] sm:$0xff]
        %v1809 = vld [vmem:[%s2 + $0x548] sm:$0xff]
        %v1810 = vld [vmem:[%s2 + $0x550] sm:$0xff]
        %v1811 = vld [vmem:[%s2 + $0x558] sm:$0xff]
        %v1812 = vld [vmem:[%s2 + $0x560] sm:$0xff]
        %v1813 = vld [vmem:[%s2 + $0x568] sm:$0xff]
        %v1814 = vld [vmem:[%s2 + $0x570] sm:$0xff]
        %v1815 = vld [vmem:[%s2 + $0x578] sm:$0xff]
        %v1816 = vld [vmem:[%s2 + $0x580] sm:$0xff]
        %v1817 = vld [vmem:[%s2 + $0x588] sm:$0xff]
        %v1818 = vld [vmem:[%s2 + $0x590] sm:$0xff]
        %v1819 = vld [vmem:[%s2 + $0x598] sm:$0xff]
        %v1820 = vld [vmem:[%s2 + $0x5a0] sm:$0xff]
        %v1821 = vld [vmem:[%s2 + $0x5a8] sm:$0xff]
        %v1822 = vld [vmem:[%s2 + $0x5b0] sm:$0xff]
        %v1823 = vld [vmem:[%s2 + $0x5b8] sm:$0xff]
        %v1824 = vld [vmem:[%s2 + $0x5c0] sm:$0xff]
        %v1825 = vld [vmem:[%s2 + $0x5c8] sm:$0xff]
        %v1826 = vld [vmem:[%s2 + $0x5d0] sm:$0xff]
        %v1827 = vld [vmem:[%s2 + $0x5d8] sm:$0xff]
        %v1828 = vld [vmem:[%s2 + $0x5e0] sm:$0xff]
        %v1829 = vld [vmem:[%s2 + $0x5e8] sm:$0xff]
        %v1830 = vld [vmem:[%s2 + $0x5f0] sm:$0xff]
        %v1831 = vld [vmem:[%s2 + $0x5f8] sm:$0xff]
        %v1832 = vld [vmem:[%s2 + $0x600] sm:$0xff]
        %v1833 = vld [vmem:[%s2 + $0x608] sm:$0xff]
        %v1834 = vld [vmem:[%s2 + $0x610] sm:$0xff]
        %v1835 = vld [vmem:[%s2 + $0x618] sm:$0xff]
        %v1836 = vld [vmem:[%s2 + $0x620] sm:$0xff]
        %v1837 = vld [vmem:[%s2 + $0x628] sm:$0xff]
        %v1838 = vld [vmem:[%s2 + $0x630] sm:$0xff]
        %v1839 = vld [vmem:[%s2 + $0x638] sm:$0xff]
        %v1840 = vld [vmem:[%s2 + $0x640] sm:$0xff]
        %v1841 = vld [vmem:[%s2 + $0x648] sm:$0xff]
        %v1842 = vld [vmem:[%s2 + $0x650] sm:$0xff]
        %v1843 = vld [vmem:[%s2 + $0x658] sm:$0xff]
        %v1844 = vld [vmem:[%s2 + $0x660] sm:$0xff]
        %v1845 = vld [vmem:[%s2 + $0x668] sm:$0xff]
        %v1846 = vld [vmem:[%s2 + $0x670] sm:$0xff]
        %v1847 = vld [vmem:[%s2 + $0x678] sm:$0xff]
        %v1848 = vld [vmem:[%s2 + $0x680] sm:$0xff]
        %v1849 = vld [vmem:[%s2 + $0x688] sm:$0xff]
        %v1850 = vld [vmem:[%s2 + $0x690] sm:$0xff]
        %v1851 = vld [vmem:[%s2 + $0x698] sm:$0xff]
        %v1852 = vld [vmem:[%s2 + $0x6a0] sm:$0xff]
        %v1853 = vld [vmem:[%s2 + $0x6a8] sm:$0xff]
        %v1854 = vld [vmem:[%s2 + $0x6b0] sm:$0xff]
        %v1855 = vld [vmem:[%s2 + $0x6b8] sm:$0xff]
        %v1856 = vld [vmem:[%s2 + $0x6c0] sm:$0xff]
        %v1857 = vld [vmem:[%s2 + $0x6c8] sm:$0xff]
        %v1858 = vld [vmem:[%s2 + $0x6d0] sm:$0xff]
        %v1859 = vld [vmem:[%s2 + $0x6d8] sm:$0xff]
        %v1860 = vld [vmem:[%s2 + $0x6e0] sm:$0xff]
        %v1861 = vld [vmem:[%s2 + $0x6e8] sm:$0xff]
        %v1862 = vld [vmem:[%s2 + $0x6f0] sm:$0xff]
        %v1863 = vld [vmem:[%s2 + $0x6f8] sm:$0xff]
        %v1864 = vld [vmem:[%s2 + $0x700] sm:$0xff]
        %v1865 = vld [vmem:[%s2 + $0x708] sm:$0xff]
        %v1866 = vld [vmem:[%s2 + $0x710] sm:$0xff]
        %v1867 = vld [vmem:[%s2 + $0x718] sm:$0xff]
        %v1868 = vld [vmem:[%s2 + $0x720] sm:$0xff]
        %v1869 = vld [vmem:[%s2 + $0x728] sm:$0xff]
        %v1870 = vld [vmem:[%s2 + $0x730] sm:$0xff]
        %v1871 = vld [vmem:[%s2 + $0x738] sm:$0xff]
        %v1872 = vld [vmem:[%s2 + $0x740] sm:$0xff]
        %v1873 = vld [vmem:[%s2 + $0x748] sm:$0xff]
        %v1874 = vld [vmem:[%s2 + $0x750] sm:$0xff]
        %v1875 = vld [vmem:[%s2 + $0x758] sm:$0xff]
        %v1876 = vld [vmem:[%s2 + $0x760] sm:$0xff]
        %v1877 = vld [vmem:[%s2 + $0x768] sm:$0xff]
        %v1878 = vld [vmem:[%s2 + $0x770] sm:$0xff]
        %v1879 = vld [vmem:[%s2 + $0x778] sm:$0xff]
        %v1880 = vld [vmem:[%s2 + $0x780] sm:$0xff]
        %v1881 = vld [vmem:[%s2 + $0x788] sm:$0xff]
        %v1882 = vld [vmem:[%s2 + $0x790] sm:$0xff]
        %v1883 = vld [vmem:[%s2 + $0x798] sm:$0xff]
        %v1884 = vld [vmem:[%s2 + $0x7a0] sm:$0xff]
        %v1885 = vld [vmem:[%s2 + $0x7a8] sm:$0xff]
        %v1886 = vld [vmem:[%s2 + $0x7b0] sm:$0xff]
        %v1887 = vld [vmem:[%s2 + $0x7b8] sm:$0xff]
        %v1888 = vld [vmem:[%s2 + $0x7c0] sm:$0xff]
        %v1889 = vld [vmem:[%s2 + $0x7c8] sm:$0xff]
        %v1890 = vld [vmem:[%s2 + $0x7d0] sm:$0xff]
        %v1891 = vld [vmem:[%s2 + $0x7d8] sm:$0xff]
        %v1892 = vld [vmem:[%s2 + $0x7e0] sm:$0xff]
        %v1893 = vld [vmem:[%s2 + $0x7e8] sm:$0xff]
        %v1894 = vld [vmem:[%s2 + $0x7f0] sm:$0xff]
        %v1895 = vld [vmem:[%s2 + $0x7f8] sm:$0xff]
        %1896 = vmatprep.subr.mxu0 0.0
        %1897 = vmatpush1.msra.mxu0 %v1640
        %1898 = vmatprep.subr.mxu0 0.0
        %1899 = vmatpush1.msra.mxu0 %v1641
        %1900 = vmatprep.subr.mxu0 0.0
        %1901 = vmatpush1.msra.mxu0 %v1642
        %1902 = vmatprep.subr.mxu0 0.0
        %1903 = vmatpush1.msra.mxu0 %v1643
        %1904 = vmatprep.subr.mxu0 0.0
        %1905 = vmatpush1.msra.mxu0 %v1644
        %1906 = vmatprep.subr.mxu0 0.0
        %1907 = vmatpush1.msra.mxu0 %v1645
        %1908 = vmatprep.subr.mxu0 0.0
        %1909 = vmatpush1.msra.mxu0 %v1646
        %1910 = vmatprep.subr.mxu0 0.0
        %1911 = vmatpush1.msra.mxu0 %v1647
        %1912 = vmatprep.subr.mxu0 0.0
        %1913 = vmatpush1.msra.mxu0 %v1648
        %1914 = vmatprep.subr.mxu0 0.0
        %1915 = vmatpush1.msra.mxu0 %v1649
        %1916 = vmatprep.subr.mxu0 0.0
        %1917 = vmatpush1.msra.mxu0 %v1650
        %1918 = vmatprep.subr.mxu0 0.0
        %1919 = vmatpush1.msra.mxu0 %v1651
        %1920 = vmatprep.subr.mxu0 0.0
        %1921 = vmatpush1.msra.mxu0 %v1652
        %1922 = vmatprep.subr.mxu0 0.0
        %1923 = vmatpush1.msra.mxu0 %v1653
        %1924 = vmatprep.subr.mxu0 0.0
        %1925 = vmatpush1.msra.mxu0 %v1654
        %1926 = vmatprep.subr.mxu0 0.0
        %1927 = vmatpush1.msra.mxu0 %v1655
        %1928 = vmatprep.subr.mxu0 0.0
        %1929 = vmatpush1.msra.mxu0 %v1656
        %1930 = vmatprep.subr.mxu0 0.0
        %1931 = vmatpush1.msra.mxu0 %v1657
        %1932 = vmatprep.subr.mxu0 0.0
        %1933 = vmatpush1.msra.mxu0 %v1658
        %1934 = vmatprep.subr.mxu0 0.0
        %1935 = vmatpush1.msra.mxu0 %v1659
        %1936 = vmatprep.subr.mxu0 0.0
        %1937 = vmatpush1.msra.mxu0 %v1660
        %1938 = vmatprep.subr.mxu0 0.0
        %1939 = vmatpush1.msra.mxu0 %v1661
        %1940 = vmatprep.subr.mxu0 0.0
        %1941 = vmatpush1.msra.mxu0 %v1662
        %1942 = vmatprep.subr.mxu0 0.0
        %1943 = vmatpush1.msra.mxu0 %v1663
        %1944 = vmatprep.subr.mxu0 0.0
        %1945 = vmatpush1.msra.mxu0 %v1664
        %1946 = vmatprep.subr.mxu0 0.0
        %1947 = vmatpush1.msra.mxu0 %v1665
        %1948 = vmatprep.subr.mxu0 0.0
        %1949 = vmatpush1.msra.mxu0 %v1666
        %1950 = vmatprep.subr.mxu0 0.0
        %1951 = vmatpush1.msra.mxu0 %v1667
        %1952 = vmatprep.subr.mxu0 0.0
        %1953 = vmatpush1.msra.mxu0 %v1668
        %1954 = vmatprep.subr.mxu0 0.0
        %1955 = vmatpush1.msra.mxu0 %v1669
        %1956 = vmatprep.subr.mxu0 0.0
        %1957 = vmatpush1.msra.mxu0 %v1670
        %1958 = vmatprep.subr.mxu0 0.0
        %1959 = vmatpush1.msra.mxu0 %v1671
        %1960 = vmatprep.mubr.f32.mxu0 %v1577
        %1961 = vmatmul.mubr.f32.gmra.mrb[0].mxu0 %v1576
        %v1962 = vpop.f32.mrb[0].mxu0
        %v1963 = vadd.f32 0.0, %v1962
        %v1964 = vpop.f32.mrb[0].mxu0
        %1965 = vmatprep.mubr.f32.mxu0 %v1593
        %1966 = vmatmul.mubr.f32.gmra.mrb[0].mxu0 %v1592
        %v1967 = vpop.f32.mrb[0].mxu0
        %v1968 = vadd.f32 0.0, %v1967
        %v1969 = vpop.f32.mrb[0].mxu0
        %1970 = vmatprep.mubr.f32.mxu0 %v1609
        %1971 = vmatmul.mubr.f32.gmra.mrb[0].mxu0 %v1608
        %v1972 = vpop.f32.mrb[0].mxu0
        %v1973 = vadd.f32 0.0, %v1972
        %v1974 = vpop.f32.mrb[0].mxu0
        %1975 = vmatprep.mubr.f32.mxu0 %v1625
        %1976 = vmatmul.mubr.f32.gmra.mrb[0].mxu0 %v1624
        %v1977 = vpop.f32.mrb[0].mxu0
        %v1978 = vadd.f32 0.0, %v1977
        %v1979 = vpop.f32.mrb[0].mxu0
        %1980 = vdwg.mxu0
        %1981 = vmatprep.subr.mxu0 0.0
        %1982 = vmatpush1.msra.mxu0 %v1672
        %1983 = vmatprep.subr.mxu0 0.0
        %1984 = vmatpush1.msra.mxu0 %v1673
        %1985 = vmatprep.subr.mxu0 0.0
        %1986 = vmatpush1.msra.mxu0 %v1674
        %1987 = vmatprep.subr.mxu0 0.0
        %1988 = vmatpush1.msra.mxu0 %v1675
        %1989 = vmatprep.subr.mxu0 0.0
        %1990 = vmatpush1.msra.mxu0 %v1676
        %1991 = vmatprep.subr.mxu0 0.0
        %1992 = vmatpush1.msra.mxu0 %v1677
        %1993 = vmatprep.subr.mxu0 0.0
        %1994 = vmatpush1.msra.mxu0 %v1678
        %1995 = vmatprep.subr.mxu0 0.0
        %1996 = vmatpush1.msra.mxu0 %v1679
        %1997 = vmatprep.subr.mxu0 0.0
        %1998 = vmatpush1.msra.mxu0 %v1680
        %1999 = vmatprep.subr.mxu0 0.0
        %2000 = vmatpush1.msra.mxu0 %v1681
        %2001 = vmatprep.subr.mxu0 0.0
        %2002 = vmatpush1.msra.mxu0 %v1682
        %2003 = vmatprep.subr.mxu0 0.0
        %2004 = vmatpush1.msra.mxu0 %v1683
        %2005 = vmatprep.subr.mxu0 0.0
        %2006 = vmatpush1.msra.mxu0 %v1684
        %2007 = vmatprep.subr.mxu0 0.0
        %2008 = vmatpush1.msra.mxu0 %v1685
        %2009 = vmatprep.subr.mxu0 0.0
        %2010 = vmatpush1.msra.mxu0 %v1686
        %2011 = vmatprep.subr.mxu0 0.0
        %2012 = vmatpush1.msra.mxu0 %v1687
        %2013 = vmatprep.subr.mxu0 0.0
        %2014 = vmatpush1.msra.mxu0 %v1688
        %2015 = vmatprep.subr.mxu0 0.0
        %2016 = vmatpush1.msra.mxu0 %v1689
        %2017 = vmatprep.subr.mxu0 0.0
        %2018 = vmatpush1.msra.mxu0 %v1690
        %2019 = vmatprep.subr.mxu0 0.0
        %2020 = vmatpush1.msra.mxu0 %v1691
        %2021 = vmatprep.subr.mxu0 0.0
        %2022 = vmatpush1.msra.mxu0 %v1692
        %2023 = vmatprep.subr.mxu0 0.0
        %2024 = vmatpush1.msra.mxu0 %v1693
        %2025 = vmatprep.subr.mxu0 0.0
        %2026 = vmatpush1.msra.mxu0 %v1694
        %2027 = vmatprep.subr.mxu0 0.0
        %2028 = vmatpush1.msra.mxu0 %v1695
        %2029 = vmatprep.subr.mxu0 0.0
        %2030 = vmatpush1.msra.mxu0 %v1696
        %2031 = vmatprep.subr.mxu0 0.0
        %2032 = vmatpush1.msra.mxu0 %v1697
        %2033 = vmatprep.subr.mxu0 0.0
        %2034 = vmatpush1.msra.mxu0 %v1698
        %2035 = vmatprep.subr.mxu0 0.0
        %2036 = vmatpush1.msra.mxu0 %v1699
        %2037 = vmatprep.subr.mxu0 0.0
        %2038 = vmatpush1.msra.mxu0 %v1700
        %2039 = vmatprep.subr.mxu0 0.0
        %2040 = vmatpush1.msra.mxu0 %v1701
        %2041 = vmatprep.subr.mxu0 0.0
        %2042 = vmatpush1.msra.mxu0 %v1702
        %2043 = vmatprep.subr.mxu0 0.0
        %2044 = vmatpush1.msra.mxu0 %v1703
        %2045 = vmatprep.mubr.f32.mxu0 %v1579
        %2046 = vmatmul.mubr.f32.gmra.mrb[0].mxu0 %v1578
        %v2047 = vpop.f32.mrb[0].mxu0
        %v2048 = vadd.f32 %v1963, %v2047
        %v2049 = vpop.f32.mrb[0].mxu0
        %2050 = vmatprep.mubr.f32.mxu0 %v1595
        %2051 = vmatmul.mubr.f32.gmra.mrb[0].mxu0 %v1594
        %v2052 = vpop.f32.mrb[0].mxu0
        %v2053 = vadd.f32 %v1968, %v2052
        %v2054 = vpop.f32.mrb[0].mxu0
        %2055 = vmatprep.mubr.f32.mxu0 %v1611
        %2056 = vmatmul.mubr.f32.gmra.mrb[0].mxu0 %v1610
        %v2057 = vpop.f32.mrb[0].mxu0
        %v2058 = vadd.f32 %v1973, %v2057
        %v2059 = vpop.f32.mrb[0].mxu0
        %2060 = vmatprep.mubr.f32.mxu0 %v1627
        %2061 = vmatmul.mubr.f32.gmra.mrb[0].mxu0 %v1626
        %v2062 = vpop.f32.mrb[0].mxu0
        %v2063 = vadd.f32 %v1978, %v2062
        %v2064 = vpop.f32.mrb[0].mxu0
        %2065 = vdwg.mxu0
        %2066 = vmatprep.subr.mxu0 0.0
        %2067 = vmatpush1.msra.mxu0 %v1704
        %2068 = vmatprep.subr.mxu0 0.0
        %2069 = vmatpush1.msra.mxu0 %v1705
        %2070 = vmatprep.subr.mxu0 0.0
        %2071 = vmatpush1.msra.mxu0 %v1706
        %2072 = vmatprep.subr.mxu0 0.0
        %2073 = vmatpush1.msra.mxu0 %v1707
        %2074 = vmatprep.subr.mxu0 0.0
        %2075 = vmatpush1.msra.mxu0 %v1708
        %2076 = vmatprep.subr.mxu0 0.0
        %2077 = vmatpush1.msra.mxu0 %v1709
        %2078 = vmatprep.subr.mxu0 0.0
        %2079 = vmatpush1.msra.mxu0 %v1710
        %2080 = vmatprep.subr.mxu0 0.0
        %2081 = vmatpush1.msra.mxu0 %v1711
        %2082 = vmatprep.subr.mxu0 0.0
        %2083 = vmatpush1.msra.mxu0 %v1712
        %2084 = vmatprep.subr.mxu0 0.0
        %2085 = vmatpush1.msra.mxu0 %v1713
        %2086 = vmatprep.subr.mxu0 0.0
        %2087 = vmatpush1.msra.mxu0 %v1714
        %2088 = vmatprep.subr.mxu0 0.0
        %2089 = vmatpush1.msra.mxu0 %v1715
        %2090 = vmatprep.subr.mxu0 0.0
        %2091 = vmatpush1.msra.mxu0 %v1716
        %2092 = vmatprep.subr.mxu0 0.0
        %2093 = vmatpush1.msra.mxu0 %v1717
        %2094 = vmatprep.subr.mxu0 0.0
        %2095 = vmatpush1.msra.mxu0 %v1718
        %2096 = vmatprep.subr.mxu0 0.0
        %2097 = vmatpush1.msra.mxu0 %v1719
        %2098 = vmatprep.subr.mxu0 0.0
        %2099 = vmatpush1.msra.mxu0 %v1720
        %2100 = vmatprep.subr.mxu0 0.0
        %2101 = vmatpush1.msra.mxu0 %v1721
        %2102 = vmatprep.subr.mxu0 0.0
        %2103 = vmatpush1.msra.mxu0 %v1722
        %2104 = vmatprep.subr.mxu0 0.0
        %2105 = vmatpush1.msra.mxu0 %v1723
        %2106 = vmatprep.subr.mxu0 0.0
        %2107 = vmatpush1.msra.mxu0 %v1724
        %2108 = vmatprep.subr.mxu0 0.0
        %2109 = vmatpush1.msra.mxu0 %v1725
        %2110 = vmatprep.subr.mxu0 0.0
        %2111 = vmatpush1.msra.mxu0 %v1726
        %2112 = vmatprep.subr.mxu0 0.0
        %2113 = vmatpush1.msra.mxu0 %v1727
        %2114 = vmatprep.subr.mxu0 0.0
        %2115 = vmatpush1.msra.mxu0 %v1728
        %2116 = vmatprep.subr.mxu0 0.0
        %2117 = vmatpush1.msra.mxu0 %v1729
        %2118 = vmatprep.subr.mxu0 0.0
        %2119 = vmatpush1.msra.mxu0 %v1730
        %2120 = vmatprep.subr.mxu0 0.0
        %2121 = vmatpush1.msra.mxu0 %v1731
        %2122 = vmatprep.subr.mxu0 0.0
        %2123 = vmatpush1.msra.mxu0 %v1732
        %2124 = vmatprep.subr.mxu0 0.0
        %2125 = vmatpush1.msra.mxu0 %v1733
        %2126 = vmatprep.subr.mxu0 0.0
        %2127 = vmatpush1.msra.mxu0 %v1734
        %2128 = vmatprep.subr.mxu0 0.0
        %2129 = vmatpush1.msra.mxu0 %v1735
        %2130 = vmatprep.mubr.f32.mxu0 %v1581
        %2131 = vmatmul.mubr.f32.gmra.mrb[0].mxu0 %v1580
        %v2132 = vpop.f32.mrb[0].mxu0
        %v2133 = vadd.f32 %v2048, %v2132
        %v2134 = vpop.f32.mrb[0].mxu0
        %2135 = vmatprep.mubr.f32.mxu0 %v1597
        %2136 = vmatmul.mubr.f32.gmra.mrb[0].mxu0 %v1596
        %v2137 = vpop.f32.mrb[0].mxu0
        %v2138 = vadd.f32 %v2053, %v2137
        %v2139 = vpop.f32.mrb[0].mxu0
        %2140 = vmatprep.mubr.f32.mxu0 %v1613
        %2141 = vmatmul.mubr.f32.gmra.mrb[0].mxu0 %v1612
        %v2142 = vpop.f32.mrb[0].mxu0
        %v2143 = vadd.f32 %v2058, %v2142
        %v2144 = vpop.f32.mrb[0].mxu0
        %2145 = vmatprep.mubr.f32.mxu0 %v1629
        %2146 = vmatmul.mubr.f32.gmra.mrb[0].mxu0 %v1628
        %v2147 = vpop.f32.mrb[0].mxu0
        %v2148 = vadd.f32 %v2063, %v2147
        %v2149 = vpop.f32.mrb[0].mxu0
        %2150 = vdwg.mxu0
        %2151 = vmatprep.subr.mxu0 0.0
        %2152 = vmatpush1.msra.mxu0 %v1736
        %2153 = vmatprep.subr.mxu0 0.0
        %2154 = vmatpush1.msra.mxu0 %v1737
        %2155 = vmatprep.subr.mxu0 0.0
        %2156 = vmatpush1.msra.mxu0 %v1738
        %2157 = vmatprep.subr.mxu0 0.0
        %2158 = vmatpush1.msra.mxu0 %v1739
        %2159 = vmatprep.subr.mxu0 0.0
        %2160 = vmatpush1.msra.mxu0 %v1740
        %2161 = vmatprep.subr.mxu0 0.0
        %2162 = vmatpush1.msra.mxu0 %v1741
        %2163 = vmatprep.subr.mxu0 0.0
        %2164 = vmatpush1.msra.mxu0 %v1742
        %2165 = vmatprep.subr.mxu0 0.0
        %2166 = vmatpush1.msra.mxu0 %v1743
        %2167 = vmatprep.subr.mxu0 0.0
        %2168 = vmatpush1.msra.mxu0 %v1744
        %2169 = vmatprep.subr.mxu0 0.0
        %2170 = vmatpush1.msra.mxu0 %v1745
        %2171 = vmatprep.subr.mxu0 0.0
        %2172 = vmatpush1.msra.mxu0 %v1746
        %2173 = vmatprep.subr.mxu0 0.0
        %2174 = vmatpush1.msra.mxu0 %v1747
        %2175 = vmatprep.subr.mxu0 0.0
        %2176 = vmatpush1.msra.mxu0 %v1748
        %2177 = vmatprep.subr.mxu0 0.0
        %2178 = vmatpush1.msra.mxu0 %v1749
        %2179 = vmatprep.subr.mxu0 0.0
        %2180 = vmatpush1.msra.mxu0 %v1750
        %2181 = vmatprep.subr.mxu0 0.0
        %2182 = vmatpush1.msra.mxu0 %v1751
        %2183 = vmatprep.subr.mxu0 0.0
        %2184 = vmatpush1.msra.mxu0 %v1752
        %2185 = vmatprep.subr.mxu0 0.0
        %2186 = vmatpush1.msra.mxu0 %v1753
        %2187 = vmatprep.subr.mxu0 0.0
        %2188 = vmatpush1.msra.mxu0 %v1754
        %2189 = vmatprep.subr.mxu0 0.0
        %2190 = vmatpush1.msra.mxu0 %v1755
        %2191 = vmatprep.subr.mxu0 0.0
        %2192 = vmatpush1.msra.mxu0 %v1756
        %2193 = vmatprep.subr.mxu0 0.0
        %2194 = vmatpush1.msra.mxu0 %v1757
        %2195 = vmatprep.subr.mxu0 0.0
        %2196 = vmatpush1.msra.mxu0 %v1758
        %2197 = vmatprep.subr.mxu0 0.0
        %2198 = vmatpush1.msra.mxu0 %v1759
        %2199 = vmatprep.subr.mxu0 0.0
        %2200 = vmatpush1.msra.mxu0 %v1760
        %2201 = vmatprep.subr.mxu0 0.0
        %2202 = vmatpush1.msra.mxu0 %v1761
        %2203 = vmatprep.subr.mxu0 0.0
        %2204 = vmatpush1.msra.mxu0 %v1762
        %2205 = vmatprep.subr.mxu0 0.0
        %2206 = vmatpush1.msra.mxu0 %v1763
        %2207 = vmatprep.subr.mxu0 0.0
        %2208 = vmatpush1.msra.mxu0 %v1764
        %2209 = vmatprep.subr.mxu0 0.0
        %2210 = vmatpush1.msra.mxu0 %v1765
        %2211 = vmatprep.subr.mxu0 0.0
        %2212 = vmatpush1.msra.mxu0 %v1766
        %2213 = vmatprep.subr.mxu0 0.0
        %2214 = vmatpush1.msra.mxu0 %v1767
        %2215 = vmatprep.mubr.f32.mxu0 %v1583
        %2216 = vmatmul.mubr.f32.gmra.mrb[0].mxu0 %v1582
        %v2217 = vpop.f32.mrb[0].mxu0
        %v2218 = vadd.f32 %v2133, %v2217
        %v2219 = vpop.f32.mrb[0].mxu0
        %2220 = vmatprep.mubr.f32.mxu0 %v1599
        %2221 = vmatmul.mubr.f32.gmra.mrb[0].mxu0 %v1598
        %v2222 = vpop.f32.mrb[0].mxu0
        %v2223 = vadd.f32 %v2138, %v2222
        %v2224 = vpop.f32.mrb[0].mxu0
        %2225 = vmatprep.mubr.f32.mxu0 %v1615
        %2226 = vmatmul.mubr.f32.gmra.mrb[0].mxu0 %v1614
        %v2227 = vpop.f32.mrb[0].mxu0
        %v2228 = vadd.f32 %v2143, %v2227
        %v2229 = vpop.f32.mrb[0].mxu0
        %2230 = vmatprep.mubr.f32.mxu0 %v1631
        %2231 = vmatmul.mubr.f32.gmra.mrb[0].mxu0 %v1630
        %v2232 = vpop.f32.mrb[0].mxu0
        %v2233 = vadd.f32 %v2148, %v2232
        %v2234 = vpop.f32.mrb[0].mxu0
        %2235 = vdwg.mxu0
        %2236 = vmatprep.subr.mxu0 0.0
        %2237 = vmatpush1.msra.mxu0 %v1768
        %2238 = vmatprep.subr.mxu0 0.0
        %2239 = vmatpush1.msra.mxu0 %v1769
        %2240 = vmatprep.subr.mxu0 0.0
        %2241 = vmatpush1.msra.mxu0 %v1770
        %2242 = vmatprep.subr.mxu0 0.0
        %2243 = vmatpush1.msra.mxu0 %v1771
        %2244 = vmatprep.subr.mxu0 0.0
        %2245 = vmatpush1.msra.mxu0 %v1772
        %2246 = vmatprep.subr.mxu0 0.0
        %2247 = vmatpush1.msra.mxu0 %v1773
        %2248 = vmatprep.subr.mxu0 0.0
        %2249 = vmatpush1.msra.mxu0 %v1774
        %2250 = vmatprep.subr.mxu0 0.0
        %2251 = vmatpush1.msra.mxu0 %v1775
        %2252 = vmatprep.subr.mxu0 0.0
        %2253 = vmatpush1.msra.mxu0 %v1776
        %2254 = vmatprep.subr.mxu0 0.0
        %2255 = vmatpush1.msra.mxu0 %v1777
        %2256 = vmatprep.subr.mxu0 0.0
        %2257 = vmatpush1.msra.mxu0 %v1778
        %2258 = vmatprep.subr.mxu0 0.0
        %2259 = vmatpush1.msra.mxu0 %v1779
        %2260 = vmatprep.subr.mxu0 0.0
        %2261 = vmatpush1.msra.mxu0 %v1780
        %2262 = vmatprep.subr.mxu0 0.0
        %2263 = vmatpush1.msra.mxu0 %v1781
        %2264 = vmatprep.subr.mxu0 0.0
        %2265 = vmatpush1.msra.mxu0 %v1782
        %2266 = vmatprep.subr.mxu0 0.0
        %2267 = vmatpush1.msra.mxu0 %v1783
        %2268 = vmatprep.subr.mxu0 0.0
        %2269 = vmatpush1.msra.mxu0 %v1784
        %2270 = vmatprep.subr.mxu0 0.0
        %2271 = vmatpush1.msra.mxu0 %v1785
        %2272 = vmatprep.subr.mxu0 0.0
        %2273 = vmatpush1.msra.mxu0 %v1786
        %2274 = vmatprep.subr.mxu0 0.0
        %2275 = vmatpush1.msra.mxu0 %v1787
        %2276 = vmatprep.subr.mxu0 0.0
        %2277 = vmatpush1.msra.mxu0 %v1788
        %2278 = vmatprep.subr.mxu0 0.0
        %2279 = vmatpush1.msra.mxu0 %v1789
        %2280 = vmatprep.subr.mxu0 0.0
        %2281 = vmatpush1.msra.mxu0 %v1790
        %2282 = vmatprep.subr.mxu0 0.0
        %2283 = vmatpush1.msra.mxu0 %v1791
        %2284 = vmatprep.subr.mxu0 0.0
        %2285 = vmatpush1.msra.mxu0 %v1792
        %2286 = vmatprep.subr.mxu0 0.0
        %2287 = vmatpush1.msra.mxu0 %v1793
        %2288 = vmatprep.subr.mxu0 0.0
        %2289 = vmatpush1.msra.mxu0 %v1794
        %2290 = vmatprep.subr.mxu0 0.0
        %2291 = vmatpush1.msra.mxu0 %v1795
        %2292 = vmatprep.subr.mxu0 0.0
        %2293 = vmatpush1.msra.mxu0 %v1796
        %2294 = vmatprep.subr.mxu0 0.0
        %2295 = vmatpush1.msra.mxu0 %v1797
        %2296 = vmatprep.subr.mxu0 0.0
        %2297 = vmatpush1.msra.mxu0 %v1798
        %2298 = vmatprep.subr.mxu0 0.0
        %2299 = vmatpush1.msra.mxu0 %v1799
        %2300 = vmatprep.mubr.f32.mxu0 %v1585
        %2301 = vmatmul.mubr.f32.gmra.mrb[0].mxu0 %v1584
        %v2302 = vpop.f32.mrb[0].mxu0
        %v2303 = vadd.f32 %v2218, %v2302
        %v2304 = vpop.f32.mrb[0].mxu0
        %2305 = vmatprep.mubr.f32.mxu0 %v1601
        %2306 = vmatmul.mubr.f32.gmra.mrb[0].mxu0 %v1600
        %v2307 = vpop.f32.mrb[0].mxu0
        %v2308 = vadd.f32 %v2223, %v2307
        %v2309 = vpop.f32.mrb[0].mxu0
        %2310 = vmatprep.mubr.f32.mxu0 %v1617
        %2311 = vmatmul.mubr.f32.gmra.mrb[0].mxu0 %v1616
        %v2312 = vpop.f32.mrb[0].mxu0
        %v2313 = vadd.f32 %v2228, %v2312
        %v2314 = vpop.f32.mrb[0].mxu0
        %2315 = vmatprep.mubr.f32.mxu0 %v1633
        %2316 = vmatmul.mubr.f32.gmra.mrb[0].mxu0 %v1632
        %v2317 = vpop.f32.mrb[0].mxu0
        %v2318 = vadd.f32 %v2233, %v2317
        %v2319 = vpop.f32.mrb[0].mxu0
        %2320 = vdwg.mxu0
        %2321 = vmatprep.subr.mxu0 0.0
        %2322 = vmatpush1.msra.mxu0 %v1800
        %2323 = vmatprep.subr.mxu0 0.0
        %2324 = vmatpush1.msra.mxu0 %v1801
        %2325 = vmatprep.subr.mxu0 0.0
        %2326 = vmatpush1.msra.mxu0 %v1802
        %2327 = vmatprep.subr.mxu0 0.0
        %2328 = vmatpush1.msra.mxu0 %v1803
        %2329 = vmatprep.subr.mxu0 0.0
        %2330 = vmatpush1.msra.mxu0 %v1804
        %2331 = vmatprep.subr.mxu0 0.0
        %2332 = vmatpush1.msra.mxu0 %v1805
        %2333 = vmatprep.subr.mxu0 0.0
        %2334 = vmatpush1.msra.mxu0 %v1806
        %2335 = vmatprep.subr.mxu0 0.0
        %2336 = vmatpush1.msra.mxu0 %v1807
        %2337 = vmatprep.subr.mxu0 0.0
        %2338 = vmatpush1.msra.mxu0 %v1808
        %2339 = vmatprep.subr.mxu0 0.0
        %2340 = vmatpush1.msra.mxu0 %v1809
        %2341 = vmatprep.subr.mxu0 0.0
        %2342 = vmatpush1.msra.mxu0 %v1810
        %2343 = vmatprep.subr.mxu0 0.0
        %2344 = vmatpush1.msra.mxu0 %v1811
        %2345 = vmatprep.subr.mxu0 0.0
        %2346 = vmatpush1.msra.mxu0 %v1812
        %2347 = vmatprep.subr.mxu0 0.0
        %2348 = vmatpush1.msra.mxu0 %v1813
        %2349 = vmatprep.subr.mxu0 0.0
        %2350 = vmatpush1.msra.mxu0 %v1814
        %2351 = vmatprep.subr.mxu0 0.0
        %2352 = vmatpush1.msra.mxu0 %v1815
        %2353 = vmatprep.subr.mxu0 0.0
        %2354 = vmatpush1.msra.mxu0 %v1816
        %2355 = vmatprep.subr.mxu0 0.0
        %2356 = vmatpush1.msra.mxu0 %v1817
        %2357 = vmatprep.subr.mxu0 0.0
        %2358 = vmatpush1.msra.mxu0 %v1818
        %2359 = vmatprep.subr.mxu0 0.0
        %2360 = vmatpush1.msra.mxu0 %v1819
        %2361 = vmatprep.subr.mxu0 0.0
        %2362 = vmatpush1.msra.mxu0 %v1820
        %2363 = vmatprep.subr.mxu0 0.0
        %2364 = vmatpush1.msra.mxu0 %v1821
        %2365 = vmatprep.subr.mxu0 0.0
        %2366 = vmatpush1.msra.mxu0 %v1822
        %2367 = vmatprep.subr.mxu0 0.0
        %2368 = vmatpush1.msra.mxu0 %v1823
        %2369 = vmatprep.subr.mxu0 0.0
        %2370 = vmatpush1.msra.mxu0 %v1824
        %2371 = vmatprep.subr.mxu0 0.0
        %2372 = vmatpush1.msra.mxu0 %v1825
        %2373 = vmatprep.subr.mxu0 0.0
        %2374 = vmatpush1.msra.mxu0 %v1826
        %2375 = vmatprep.subr.mxu0 0.0
        %2376 = vmatpush1.msra.mxu0 %v1827
        %2377 = vmatprep.subr.mxu0 0.0
        %2378 = vmatpush1.msra.mxu0 %v1828
        %2379 = vmatprep.subr.mxu0 0.0
        %2380 = vmatpush1.msra.mxu0 %v1829
        %2381 = vmatprep.subr.mxu0 0.0
        %2382 = vmatpush1.msra.mxu0 %v1830
        %2383 = vmatprep.subr.mxu0 0.0
        %2384 = vmatpush1.msra.mxu0 %v1831
        %2385 = vmatprep.mubr.f32.mxu0 %v1587
        %2386 = vmatmul.mubr.f32.gmra.mrb[0].mxu0 %v1586
        %v2387 = vpop.f32.mrb[0].mxu0
        %v2388 = vadd.f32 %v2303, %v2387
        %v2389 = vpop.f32.mrb[0].mxu0
        %2390 = vmatprep.mubr.f32.mxu0 %v1603
        %2391 = vmatmul.mubr.f32.gmra.mrb[0].mxu0 %v1602
        %v2392 = vpop.f32.mrb[0].mxu0
        %v2393 = vadd.f32 %v2308, %v2392
        %v2394 = vpop.f32.mrb[0].mxu0
        %2395 = vmatprep.mubr.f32.mxu0 %v1619
        %2396 = vmatmul.mubr.f32.gmra.mrb[0].mxu0 %v1618
        %v2397 = vpop.f32.mrb[0].mxu0
        %v2398 = vadd.f32 %v2313, %v2397
        %v2399 = vpop.f32.mrb[0].mxu0
        %2400 = vmatprep.mubr.f32.mxu0 %v1635
        %2401 = vmatmul.mubr.f32.gmra.mrb[0].mxu0 %v1634
        %v2402 = vpop.f32.mrb[0].mxu0
        %v2403 = vadd.f32 %v2318, %v2402
        %v2404 = vpop.f32.mrb[0].mxu0
        %2405 = vdwg.mxu0
        %2406 = vmatprep.subr.mxu0 0.0
        %2407 = vmatpush1.msra.mxu0 %v1832
        %2408 = vmatprep.subr.mxu0 0.0
        %2409 = vmatpush1.msra.mxu0 %v1833
        %2410 = vmatprep.subr.mxu0 0.0
        %2411 = vmatpush1.msra.mxu0 %v1834
        %2412 = vmatprep.subr.mxu0 0.0
        %2413 = vmatpush1.msra.mxu0 %v1835
        %2414 = vmatprep.subr.mxu0 0.0
        %2415 = vmatpush1.msra.mxu0 %v1836
        %2416 = vmatprep.subr.mxu0 0.0
        %2417 = vmatpush1.msra.mxu0 %v1837
        %2418 = vmatprep.subr.mxu0 0.0
        %2419 = vmatpush1.msra.mxu0 %v1838
        %2420 = vmatprep.subr.mxu0 0.0
        %2421 = vmatpush1.msra.mxu0 %v1839
        %2422 = vmatprep.subr.mxu0 0.0
        %2423 = vmatpush1.msra.mxu0 %v1840
        %2424 = vmatprep.subr.mxu0 0.0
        %2425 = vmatpush1.msra.mxu0 %v1841
        %2426 = vmatprep.subr.mxu0 0.0
        %2427 = vmatpush1.msra.mxu0 %v1842
        %2428 = vmatprep.subr.mxu0 0.0
        %2429 = vmatpush1.msra.mxu0 %v1843
        %2430 = vmatprep.subr.mxu0 0.0
        %2431 = vmatpush1.msra.mxu0 %v1844
        %2432 = vmatprep.subr.mxu0 0.0
        %2433 = vmatpush1.msra.mxu0 %v1845
        %2434 = vmatprep.subr.mxu0 0.0
        %2435 = vmatpush1.msra.mxu0 %v1846
        %2436 = vmatprep.subr.mxu0 0.0
        %2437 = vmatpush1.msra.mxu0 %v1847
        %2438 = vmatprep.subr.mxu0 0.0
        %2439 = vmatpush1.msra.mxu0 %v1848
        %2440 = vmatprep.subr.mxu0 0.0
        %2441 = vmatpush1.msra.mxu0 %v1849
        %2442 = vmatprep.subr.mxu0 0.0
        %2443 = vmatpush1.msra.mxu0 %v1850
        %2444 = vmatprep.subr.mxu0 0.0
        %2445 = vmatpush1.msra.mxu0 %v1851
        %2446 = vmatprep.subr.mxu0 0.0
        %2447 = vmatpush1.msra.mxu0 %v1852
        %2448 = vmatprep.subr.mxu0 0.0
        %2449 = vmatpush1.msra.mxu0 %v1853
        %2450 = vmatprep.subr.mxu0 0.0
        %2451 = vmatpush1.msra.mxu0 %v1854
        %2452 = vmatprep.subr.mxu0 0.0
        %2453 = vmatpush1.msra.mxu0 %v1855
        %2454 = vmatprep.subr.mxu0 0.0
        %2455 = vmatpush1.msra.mxu0 %v1856
        %2456 = vmatprep.subr.mxu0 0.0
        %2457 = vmatpush1.msra.mxu0 %v1857
        %2458 = vmatprep.subr.mxu0 0.0
        %2459 = vmatpush1.msra.mxu0 %v1858
        %2460 = vmatprep.subr.mxu0 0.0
        %2461 = vmatpush1.msra.mxu0 %v1859
        %2462 = vmatprep.subr.mxu0 0.0
        %2463 = vmatpush1.msra.mxu0 %v1860
        %2464 = vmatprep.subr.mxu0 0.0
        %2465 = vmatpush1.msra.mxu0 %v1861
        %2466 = vmatprep.subr.mxu0 0.0
        %2467 = vmatpush1.msra.mxu0 %v1862
        %2468 = vmatprep.subr.mxu0 0.0
        %2469 = vmatpush1.msra.mxu0 %v1863
        %2470 = vmatprep.mubr.f32.mxu0 %v1589
        %2471 = vmatmul.mubr.f32.gmra.mrb[0].mxu0 %v1588
        %v2472 = vpop.f32.mrb[0].mxu0
        %v2473 = vadd.f32 %v2388, %v2472
        %v2474 = vpop.f32.mrb[0].mxu0
        %2475 = vmatprep.mubr.f32.mxu0 %v1605
        %2476 = vmatmul.mubr.f32.gmra.mrb[0].mxu0 %v1604
        %v2477 = vpop.f32.mrb[0].mxu0
        %v2478 = vadd.f32 %v2393, %v2477
        %v2479 = vpop.f32.mrb[0].mxu0
        %2480 = vmatprep.mubr.f32.mxu0 %v1621
        %2481 = vmatmul.mubr.f32.gmra.mrb[0].mxu0 %v1620
        %v2482 = vpop.f32.mrb[0].mxu0
        %v2483 = vadd.f32 %v2398, %v2482
        %v2484 = vpop.f32.mrb[0].mxu0
        %2485 = vmatprep.mubr.f32.mxu0 %v1637
        %2486 = vmatmul.mubr.f32.gmra.mrb[0].mxu0 %v1636
        %v2487 = vpop.f32.mrb[0].mxu0
        %v2488 = vadd.f32 %v2403, %v2487
        %v2489 = vpop.f32.mrb[0].mxu0
        %2490 = vdwg.mxu0
        %2491 = vmatprep.subr.mxu0 0.0
        %2492 = vmatpush1.msra.mxu0 %v1864
        %2493 = vmatprep.subr.mxu0 0.0
        %2494 = vmatpush1.msra.mxu0 %v1865
        %2495 = vmatprep.subr.mxu0 0.0
        %2496 = vmatpush1.msra.mxu0 %v1866
        %2497 = vmatprep.subr.mxu0 0.0
        %2498 = vmatpush1.msra.mxu0 %v1867
        %2499 = vmatprep.subr.mxu0 0.0
        %2500 = vmatpush1.msra.mxu0 %v1868
        %2501 = vmatprep.subr.mxu0 0.0
        %2502 = vmatpush1.msra.mxu0 %v1869
        %2503 = vmatprep.subr.mxu0 0.0
        %2504 = vmatpush1.msra.mxu0 %v1870
        %2505 = vmatprep.subr.mxu0 0.0
        %2506 = vmatpush1.msra.mxu0 %v1871
        %2507 = vmatprep.subr.mxu0 0.0
        %2508 = vmatpush1.msra.mxu0 %v1872
        %2509 = vmatprep.subr.mxu0 0.0
        %2510 = vmatpush1.msra.mxu0 %v1873
        %2511 = vmatprep.subr.mxu0 0.0
        %2512 = vmatpush1.msra.mxu0 %v1874
        %2513 = vmatprep.subr.mxu0 0.0
        %2514 = vmatpush1.msra.mxu0 %v1875
        %2515 = vmatprep.subr.mxu0 0.0
        %2516 = vmatpush1.msra.mxu0 %v1876
        %2517 = vmatprep.subr.mxu0 0.0
        %2518 = vmatpush1.msra.mxu0 %v1877
        %2519 = vmatprep.subr.mxu0 0.0
        %2520 = vmatpush1.msra.mxu0 %v1878
        %2521 = vmatprep.subr.mxu0 0.0
        %2522 = vmatpush1.msra.mxu0 %v1879
        %2523 = vmatprep.subr.mxu0 0.0
        %2524 = vmatpush1.msra.mxu0 %v1880
        %2525 = vmatprep.subr.mxu0 0.0
        %2526 = vmatpush1.msra.mxu0 %v1881
        %2527 = vmatprep.subr.mxu0 0.0
        %2528 = vmatpush1.msra.mxu0 %v1882
        %2529 = vmatprep.subr.mxu0 0.0
        %2530 = vmatpush1.msra.mxu0 %v1883
        %2531 = vmatprep.subr.mxu0 0.0
        %2532 = vmatpush1.msra.mxu0 %v1884
        %2533 = vmatprep.subr.mxu0 0.0
        %2534 = vmatpush1.msra.mxu0 %v1885
        %2535 = vmatprep.subr.mxu0 0.0
        %2536 = vmatpush1.msra.mxu0 %v1886
        %2537 = vmatprep.subr.mxu0 0.0
        %2538 = vmatpush1.msra.mxu0 %v1887
        %2539 = vmatprep.subr.mxu0 0.0
        %2540 = vmatpush1.msra.mxu0 %v1888
        %2541 = vmatprep.subr.mxu0 0.0
        %2542 = vmatpush1.msra.mxu0 %v1889
        %2543 = vmatprep.subr.mxu0 0.0
        %2544 = vmatpush1.msra.mxu0 %v1890
        %2545 = vmatprep.subr.mxu0 0.0
        %2546 = vmatpush1.msra.mxu0 %v1891
        %2547 = vmatprep.subr.mxu0 0.0
        %2548 = vmatpush1.msra.mxu0 %v1892
        %2549 = vmatprep.subr.mxu0 0.0
        %2550 = vmatpush1.msra.mxu0 %v1893
        %2551 = vmatprep.subr.mxu0 0.0
        %2552 = vmatpush1.msra.mxu0 %v1894
        %2553 = vmatprep.subr.mxu0 0.0
        %2554 = vmatpush1.msra.mxu0 %v1895
        %2555 = vmatprep.mubr.f32.mxu0 %v1591
        %2556 = vmatmul.mubr.f32.gmra.mrb[0].mxu0 %v1590
        %v2557 = vpop.f32.mrb[0].mxu0
        %v2558 = vadd.f32 %v2473, %v2557
        %v2559 = vpop.f32.mrb[0].mxu0
        %2560 = vmatprep.mubr.f32.mxu0 %v1607
        %2561 = vmatmul.mubr.f32.gmra.mrb[0].mxu0 %v1606
        %v2562 = vpop.f32.mrb[0].mxu0
        %v2563 = vadd.f32 %v2478, %v2562
        %v2564 = vpop.f32.mrb[0].mxu0
        %2565 = vmatprep.mubr.f32.mxu0 %v1623
        %2566 = vmatmul.mubr.f32.gmra.mrb[0].mxu0 %v1622
        %v2567 = vpop.f32.mrb[0].mxu0
        %v2568 = vadd.f32 %v2483, %v2567
        %v2569 = vpop.f32.mrb[0].mxu0
        %2570 = vmatprep.mubr.f32.mxu0 %v1639
        %2571 = vmatmul.mubr.f32.gmra.mrb[0].mxu0 %v1638
        %v2572 = vpop.f32.mrb[0].mxu0
        %v2573 = vadd.f32 %v2488, %v2572
        %v2574 = vpop.f32.mrb[0].mxu0
        %2575 = vdwg.mxu0
        %2576 = vxpose.xlu0.b32.start [1/16] %v2558, 128
        %2577 = vxpose.xlu0.b32.cont [2/16] %v2563, 128
        %2578 = vxpose.xlu0.b32.cont [3/16] %v2568, 128
        %2579 = vxpose.xlu0.b32.cont [4/16] %v2573, 128
        %2580 = vxpose.xlu0.b32.cont [5/16] 0.0, 128
        %2581 = vxpose.xlu0.b32.cont [6/16] 0.0, 128
        %2582 = vxpose.xlu0.b32.cont [7/16] 0.0, 128
        %2583 = vxpose.xlu0.b32.cont [8/16] 0.0, 128
        %2584 = vxpose.xlu0.b32.cont [9/16] 0.0, 128
        %2585 = vxpose.xlu0.b32.cont [10/16] 0.0, 128
        %2586 = vxpose.xlu0.b32.cont [11/16] 0.0, 128
        %2587 = vxpose.xlu0.b32.cont [12/16] 0.0, 128
        %2588 = vxpose.xlu0.b32.cont [13/16] 0.0, 128
        %2589 = vxpose.xlu0.b32.cont [14/16] 0.0, 128
        %2590 = vxpose.xlu0.b32.cont [15/16] 0.0, 128
        %2591 = vxpose.xlu0.b32.end [16/16] 0.0, 128
        %v2592 = vpop.trf.xlu0
        %v2593 = vpop.trf.xlu0
        %v2594 = vpop.trf.xlu0
        %v2595 = vpop.trf.xlu0
        %v2596 = vpop.trf.xlu0
        %v2597 = vpop.trf.xlu0
        %v2598 = vpop.trf.xlu0
        %v2599 = vpop.trf.xlu0
        %v2600 = vpop.trf.xlu0
        %v2601 = vpop.trf.xlu0
        %v2602 = vpop.trf.xlu0
        %v2603 = vpop.trf.xlu0
        %v2604 = vpop.trf.xlu0
        %v2605 = vpop.trf.xlu0
        %v2606 = vpop.trf.xlu0
        %v2607 = vpop.trf.xlu0
        %v2608 = vld [vmem:[%s5] sm:$0xff]
        %v2609 = vld [vmem:[%s5 + $0x8] sm:$0xff]
        %v2610 = vld [vmem:[%s5 + $0x10] sm:$0xff]
        %v2611 = vld [vmem:[%s5 + $0x18] sm:$0xff]
        %v2612 = vld [vmem:[%s5 + $0x20] sm:$0xff]
        %v2613 = vld [vmem:[%s5 + $0x28] sm:$0xff]
        %v2614 = vld [vmem:[%s5 + $0x30] sm:$0xff]
        %v2615 = vld [vmem:[%s5 + $0x38] sm:$0xff]
        %v2616 = vld [vmem:[%s5 + $0x40] sm:$0xff]
        %v2617 = vld [vmem:[%s5 + $0x48] sm:$0xff]
        %v2618 = vld [vmem:[%s5 + $0x50] sm:$0xff]
        %v2619 = vld [vmem:[%s5 + $0x58] sm:$0xff]
        %v2620 = vld [vmem:[%s5 + $0x60] sm:$0xff]
        %v2621 = vld [vmem:[%s5 + $0x68] sm:$0xff]
        %v2622 = vld [vmem:[%s5 + $0x70] sm:$0xff]
        %v2623 = vld [vmem:[%s5 + $0x78] sm:$0xff]
        %v2624 = vld [vmem:[%s6] sm:$0xf]
        %v2626 = vlaneseq
        %v2627 = vshrl.u32 %v2626, 7
        %v2628 = vsub.s32 0, %v2627
        %v2629 = vrot.slane %v2624, %v2628
        %v2630 = vlaneseq
        %v2631 = vshrl.u32 %v2630, 7
        %v2632 = vsub.s32 1, %v2631
        %v2633 = vrot.slane %v2624, %v2632
        %v2634 = vlaneseq
        %v2635 = vshrl.u32 %v2634, 7
        %v2636 = vsub.s32 2, %v2635
        %v2637 = vrot.slane %v2624, %v2636
        %v2638 = vlaneseq
        %v2639 = vshrl.u32 %v2638, 7
        %v2640 = vsub.s32 3, %v2639
        %v2641 = vrot.slane %v2624, %v2640
        %vm2646 = vcmask 261120
        %v2648 = vsel %vm2646, %v2592, 0
        %2650 = vmatprep.subr.mxu0 %v2609
        %2651 = vmatpush1.msra.mxu0 %v2608
        %2652 = vmatprep.subr.mxu0 %v2613
        %2653 = vmatpush1.msra.mxu0 %v2612
        %2654 = vmatprep.subr.mxu0 %v2617
        %2655 = vmatpush1.msra.mxu0 %v2616
        %2656 = vmatprep.subr.mxu0 %v2621
        %2657 = vmatpush1.msra.mxu0 %v2620
        %2658 = vmatprep.subr.mxu0 0.0
        %2659 = vmatpush1.msra.mxu0 0.0
        %2660 = vmatprep.subr.mxu0 0.0
        %2661 = vmatpush1.msra.mxu0 0.0
        %2662 = vmatprep.subr.mxu0 0.0
        %2663 = vmatpush1.msra.mxu0 0.0
        %2664 = vmatprep.subr.mxu0 0.0
        %2665 = vmatpush1.msra.mxu0 0.0
        %2666 = vmatprep.subr.mxu0 0.0
        %2667 = vmatpush1.msra.mxu0 0.0
        %2668 = vmatprep.subr.mxu0 0.0
        %2669 = vmatpush1.msra.mxu0 0.0
        %2670 = vmatprep.subr.mxu0 0.0
        %2671 = vmatpush1.msra.mxu0 0.0
        %2672 = vmatprep.subr.mxu0 0.0
        %2673 = vmatpush1.msra.mxu0 0.0
        %2674 = vmatprep.subr.mxu0 0.0
        %2675 = vmatpush1.msra.mxu0 0.0
        %2676 = vmatprep.subr.mxu0 0.0
        %2677 = vmatpush1.msra.mxu0 0.0
        %2678 = vmatprep.subr.mxu0 0.0
        %2679 = vmatpush1.msra.mxu0 0.0
        %2680 = vmatprep.subr.mxu0 0.0
        %2681 = vmatpush1.msra.mxu0 0.0
        %2682 = vmatprep.subr.mxu0 0.0
        %2683 = vmatpush1.msra.mxu0 0.0
        %2684 = vmatprep.subr.mxu0 0.0
        %2685 = vmatpush1.msra.mxu0 0.0
        %2686 = vmatprep.subr.mxu0 0.0
        %2687 = vmatpush1.msra.mxu0 0.0
        %2688 = vmatprep.subr.mxu0 0.0
        %2689 = vmatpush1.msra.mxu0 0.0
        %2690 = vmatprep.subr.mxu0 0.0
        %2691 = vmatpush1.msra.mxu0 0.0
        %2692 = vmatprep.subr.mxu0 0.0
        %2693 = vmatpush1.msra.mxu0 0.0
        %2694 = vmatprep.subr.mxu0 0.0
        %2695 = vmatpush1.msra.mxu0 0.0
        %2696 = vmatprep.subr.mxu0 0.0
        %2697 = vmatpush1.msra.mxu0 0.0
        %2698 = vmatprep.subr.mxu0 0.0
        %2699 = vmatpush1.msra.mxu0 0.0
        %2700 = vmatprep.subr.mxu0 0.0
        %2701 = vmatpush1.msra.mxu0 0.0
        %2702 = vmatprep.subr.mxu0 0.0
        %2703 = vmatpush1.msra.mxu0 0.0
        %2704 = vmatprep.subr.mxu0 0.0
        %2705 = vmatpush1.msra.mxu0 0.0
        %2706 = vmatprep.subr.mxu0 0.0
        %2707 = vmatpush1.msra.mxu0 0.0
        %2708 = vmatprep.subr.mxu0 0.0
        %2709 = vmatpush1.msra.mxu0 0.0
        %2710 = vmatprep.subr.mxu0 0.0
        %2711 = vmatpush1.msra.mxu0 0.0
        %2712 = vmatprep.subr.mxu0 0.0
        %2713 = vmatpush1.msra.mxu0 0.0
        %2714 = vmatprep.mubr.f32.mxu0 0.0
        %2715 = vmatmul.mubr.f32.gmra.mrb[0].mxu0 %v2648
        %v2716 = vpop.f32.mrb[0].mxu0
        %v2717 = vadd.f32 %v2629, %v2716
        %v2718 = vpop.f32.mrb[0].mxu0
        %v2719 = vadd.f32 %v2633, %v2718
        %2720 = vdwg.mxu0
        %2721 = vmatprep.subr.mxu0 %v2611
        %2722 = vmatpush1.msra.mxu0 %v2610
        %2723 = vmatprep.subr.mxu0 %v2615
        %2724 = vmatpush1.msra.mxu0 %v2614
        %2725 = vmatprep.subr.mxu0 %v2619
        %2726 = vmatpush1.msra.mxu0 %v2618
        %2727 = vmatprep.subr.mxu0 %v2623
        %2728 = vmatpush1.msra.mxu0 %v2622
        %2729 = vmatprep.subr.mxu0 0.0
        %2730 = vmatpush1.msra.mxu0 0.0
        %2731 = vmatprep.subr.mxu0 0.0
        %2732 = vmatpush1.msra.mxu0 0.0
        %2733 = vmatprep.subr.mxu0 0.0
        %2734 = vmatpush1.msra.mxu0 0.0
        %2735 = vmatprep.subr.mxu0 0.0
        %2736 = vmatpush1.msra.mxu0 0.0
        %2737 = vmatprep.subr.mxu0 0.0
        %2738 = vmatpush1.msra.mxu0 0.0
        %2739 = vmatprep.subr.mxu0 0.0
        %2740 = vmatpush1.msra.mxu0 0.0
        %2741 = vmatprep.subr.mxu0 0.0
        %2742 = vmatpush1.msra.mxu0 0.0
        %2743 = vmatprep.subr.mxu0 0.0
        %2744 = vmatpush1.msra.mxu0 0.0
        %2745 = vmatprep.subr.mxu0 0.0
        %2746 = vmatpush1.msra.mxu0 0.0
        %2747 = vmatprep.subr.mxu0 0.0
        %2748 = vmatpush1.msra.mxu0 0.0
        %2749 = vmatprep.subr.mxu0 0.0
        %2750 = vmatpush1.msra.mxu0 0.0
        %2751 = vmatprep.subr.mxu0 0.0
        %2752 = vmatpush1.msra.mxu0 0.0
        %2753 = vmatprep.subr.mxu0 0.0
        %2754 = vmatpush1.msra.mxu0 0.0
        %2755 = vmatprep.subr.mxu0 0.0
        %2756 = vmatpush1.msra.mxu0 0.0
        %2757 = vmatprep.subr.mxu0 0.0
        %2758 = vmatpush1.msra.mxu0 0.0
        %2759 = vmatprep.subr.mxu0 0.0
        %2760 = vmatpush1.msra.mxu0 0.0
        %2761 = vmatprep.subr.mxu0 0.0
        %2762 = vmatpush1.msra.mxu0 0.0
        %2763 = vmatprep.subr.mxu0 0.0
        %2764 = vmatpush1.msra.mxu0 0.0
        %2765 = vmatprep.subr.mxu0 0.0
        %2766 = vmatpush1.msra.mxu0 0.0
        %2767 = vmatprep.subr.mxu0 0.0
        %2768 = vmatpush1.msra.mxu0 0.0
        %2769 = vmatprep.subr.mxu0 0.0
        %2770 = vmatpush1.msra.mxu0 0.0
        %2771 = vmatprep.subr.mxu0 0.0
        %2772 = vmatpush1.msra.mxu0 0.0
        %2773 = vmatprep.subr.mxu0 0.0
        %2774 = vmatpush1.msra.mxu0 0.0
        %2775 = vmatprep.subr.mxu0 0.0
        %2776 = vmatpush1.msra.mxu0 0.0
        %2777 = vmatprep.subr.mxu0 0.0
        %2778 = vmatpush1.msra.mxu0 0.0
        %2779 = vmatprep.subr.mxu0 0.0
        %2780 = vmatpush1.msra.mxu0 0.0
        %2781 = vmatprep.subr.mxu0 0.0
        %2782 = vmatpush1.msra.mxu0 0.0
        %2783 = vmatprep.subr.mxu0 0.0
        %2784 = vmatpush1.msra.mxu0 0.0
        %2785 = vmatprep.mubr.f32.mxu0 0.0
        %2786 = vmatmul.mubr.f32.gmra.mrb[0].mxu0 %v2648
        %v2787 = vpop.f32.mrb[0].mxu0
        %v2788 = vadd.f32 %v2637, %v2787
        %v2789 = vpop.f32.mrb[0].mxu0
        %v2790 = vadd.f32 %v2641, %v2789
        %2791 = vdwg.mxu0
        %v2792 = vld [vmem:[%s705] sm:$0xff]
        %v2793 = vld [vmem:[%s7] sm:$0xff]
        %v2794 = vld [vmem:[%s7 + $0x8] sm:$0xff]
        %v2795 = vld [vmem:[%s7 + $0x10] sm:$0xff]
        %v2796 = vld [vmem:[%s7 + $0x18] sm:$0xff]
        %v2797 = vld [vmem:[%s7 + $0x20] sm:$0xff]
        %v2798 = vld [vmem:[%s7 + $0x28] sm:$0xff]
        %v2799 = vld [vmem:[%s7 + $0x30] sm:$0xff]
        %v2800 = vld [vmem:[%s7 + $0x38] sm:$0xff]
        %v2801 = vld [vmem:[%s8] sm:$0x1]
        %v2803 = vlaneseq
        %v2804 = vshrl.u32 %v2803, 7
        %v2805 = vsub.s32 0, %v2804
        %v2806 = vrot.slane %v2801, %v2805
        %vm2808 = vcmask 523264
        %v2810 = vsel %vm2808, %v2792, 0
        %2812 = vmatprep.subr.mxu0 0.0
        %2813 = vmatpush1.msra.mxu0 %v2793
        %2814 = vmatprep.subr.mxu0 0.0
        %2815 = vmatpush1.msra.mxu0 %v2794
        %2816 = vmatprep.subr.mxu0 0.0
        %2817 = vmatpush1.msra.mxu0 %v2795
        %2818 = vmatprep.subr.mxu0 0.0
        %2819 = vmatpush1.msra.mxu0 %v2796
        %2820 = vmatprep.subr.mxu0 0.0
        %2821 = vmatpush1.msra.mxu0 %v2797
        %2822 = vmatprep.subr.mxu0 0.0
        %2823 = vmatpush1.msra.mxu0 %v2798
        %2824 = vmatprep.subr.mxu0 0.0
        %2825 = vmatpush1.msra.mxu0 %v2799
        %2826 = vmatprep.subr.mxu0 0.0
        %2827 = vmatpush1.msra.mxu0 %v2800
        %2828 = vmatprep.subr.mxu0 0.0
        %2829 = vmatpush1.msra.mxu0 0.0
        %2830 = vmatprep.subr.mxu0 0.0
        %2831 = vmatpush1.msra.mxu0 0.0
        %2832 = vmatprep.subr.mxu0 0.0
        %2833 = vmatpush1.msra.mxu0 0.0
        %2834 = vmatprep.subr.mxu0 0.0
        %2835 = vmatpush1.msra.mxu0 0.0
        %2836 = vmatprep.subr.mxu0 0.0
        %2837 = vmatpush1.msra.mxu0 0.0
        %2838 = vmatprep.subr.mxu0 0.0
        %2839 = vmatpush1.msra.mxu0 0.0
        %2840 = vmatprep.subr.mxu0 0.0
        %2841 = vmatpush1.msra.mxu0 0.0
        %2842 = vmatprep.subr.mxu0 0.0
        %2843 = vmatpush1.msra.mxu0 0.0
        %2844 = vmatprep.subr.mxu0 0.0
        %2845 = vmatpush1.msra.mxu0 0.0
        %2846 = vmatprep.subr.mxu0 0.0
        %2847 = vmatpush1.msra.mxu0 0.0
        %2848 = vmatprep.subr.mxu0 0.0
        %2849 = vmatpush1.msra.mxu0 0.0
        %2850 = vmatprep.subr.mxu0 0.0
        %2851 = vmatpush1.msra.mxu0 0.0
        %2852 = vmatprep.subr.mxu0 0.0
        %2853 = vmatpush1.msra.mxu0 0.0
        %2854 = vmatprep.subr.mxu0 0.0
        %2855 = vmatpush1.msra.mxu0 0.0
        %2856 = vmatprep.subr.mxu0 0.0
        %2857 = vmatpush1.msra.mxu0 0.0
        %2858 = vmatprep.subr.mxu0 0.0
        %2859 = vmatpush1.msra.mxu0 0.0
        %2860 = vmatprep.subr.mxu0 0.0
        %2861 = vmatpush1.msra.mxu0 0.0
        %2862 = vmatprep.subr.mxu0 0.0
        %2863 = vmatpush1.msra.mxu0 0.0
        %2864 = vmatprep.subr.mxu0 0.0
        %2865 = vmatpush1.msra.mxu0 0.0
        %2866 = vmatprep.subr.mxu0 0.0
        %2867 = vmatpush1.msra.mxu0 0.0
        %2868 = vmatprep.subr.mxu0 0.0
        %2869 = vmatpush1.msra.mxu0 0.0
        %2870 = vmatprep.subr.mxu0 0.0
        %2871 = vmatpush1.msra.mxu0 0.0
        %2872 = vmatprep.subr.mxu0 0.0
        %2873 = vmatpush1.msra.mxu0 0.0
        %2874 = vmatprep.subr.mxu0 0.0
        %2875 = vmatpush1.msra.mxu0 0.0
        %2876 = vmatprep.mubr.f32.mxu0 0.0
        %2877 = vmatmul.mubr.f32.gmra.mrb[0].mxu0 %v2810
        %v2878 = vpop.f32.mrb[0].mxu0
        %v2879 = vadd.f32 %v2806, %v2878
        %v2880 = vpop.f32.mrb[0].mxu0
        %2881 = vdwg.mxu0
        %vm2882 = vcmp.gt.f32.partialorder %v2879, 0.0
        %v2883 = vmul.f32 %v2879, 0.01
        %v2884 = vsel %vm2882, %v2879, %v2883
        %v2885 = vld [vmem:[%s9] sm:$0xff]
        %v2886 = vld [vmem:[%s9 + $0x8] sm:$0xff]
        %v2887 = vld [vmem:[%s9 + $0x10] sm:$0xff]
        %v2888 = vld [vmem:[%s9 + $0x18] sm:$0xff]
        %v2889 = vld [vmem:[%s9 + $0x20] sm:$0xff]
        %v2890 = vld [vmem:[%s9 + $0x28] sm:$0xff]
        %v2891 = vld [vmem:[%s9 + $0x30] sm:$0xff]
        %v2892 = vld [vmem:[%s9 + $0x38] sm:$0xff]
        %v2893 = vld [vmem:[%s9 + $0x40] sm:$0xff]
        %v2894 = vld [vmem:[%s9 + $0x48] sm:$0xff]
        %v2895 = vld [vmem:[%s9 + $0x50] sm:$0xff]
        %v2896 = vld [vmem:[%s9 + $0x58] sm:$0xff]
        %v2897 = vld [vmem:[%s9 + $0x60] sm:$0xff]
        %v2898 = vld [vmem:[%s9 + $0x68] sm:$0xff]
        %v2899 = vld [vmem:[%s9 + $0x70] sm:$0xff]
        %v2900 = vld [vmem:[%s9 + $0x78] sm:$0xff]
        %v2901 = vld [vmem:[%s9 + $0x80] sm:$0xff]
        %v2902 = vld [vmem:[%s9 + $0x88] sm:$0xff]
        %v2903 = vld [vmem:[%s9 + $0x90] sm:$0xff]
        %v2904 = vld [vmem:[%s9 + $0x98] sm:$0xff]
        %v2905 = vld [vmem:[%s9 + $0xa0] sm:$0xff]
        %v2906 = vld [vmem:[%s9 + $0xa8] sm:$0xff]
        %v2907 = vld [vmem:[%s9 + $0xb0] sm:$0xff]
        %v2908 = vld [vmem:[%s9 + $0xb8] sm:$0xff]
        %v2909 = vld [vmem:[%s9 + $0xc0] sm:$0xff]
        %v2910 = vld [vmem:[%s9 + $0xc8] sm:$0xff]
        %v2911 = vld [vmem:[%s9 + $0xd0] sm:$0xff]
        %v2912 = vld [vmem:[%s9 + $0xd8] sm:$0xff]
        %v2913 = vld [vmem:[%s9 + $0xe0] sm:$0xff]
        %v2914 = vld [vmem:[%s9 + $0xe8] sm:$0xff]
        %v2915 = vld [vmem:[%s9 + $0xf0] sm:$0xff]
        %v2916 = vld [vmem:[%s9 + $0xf8] sm:$0xff]
        %v2917 = vld [vmem:[%s10] sm:$0x3]
        %v2919 = vlaneseq
        %v2920 = vshrl.u32 %v2919, 7
        %v2921 = vsub.s32 0, %v2920
        %v2922 = vrot.slane %v2917, %v2921
        %v2923 = vlaneseq
        %v2924 = vshrl.u32 %v2923, 7
        %v2925 = vsub.s32 1, %v2924
        %v2926 = vrot.slane %v2917, %v2925
        %2929 = vmatprep.subr.mxu0 %v2886
        %2930 = vmatpush1.msra.mxu0 %v2885
        %2931 = vmatprep.subr.mxu0 %v2888
        %2932 = vmatpush1.msra.mxu0 %v2887
        %2933 = vmatprep.subr.mxu0 %v2890
        %2934 = vmatpush1.msra.mxu0 %v2889
        %2935 = vmatprep.subr.mxu0 %v2892
        %2936 = vmatpush1.msra.mxu0 %v2891
        %2937 = vmatprep.subr.mxu0 %v2894
        %2938 = vmatpush1.msra.mxu0 %v2893
        %2939 = vmatprep.subr.mxu0 %v2896
        %2940 = vmatpush1.msra.mxu0 %v2895
        %2941 = vmatprep.subr.mxu0 %v2898
        %2942 = vmatpush1.msra.mxu0 %v2897
        %2943 = vmatprep.subr.mxu0 %v2900
        %2944 = vmatpush1.msra.mxu0 %v2899
        %2945 = vmatprep.subr.mxu0 %v2902
        %2946 = vmatpush1.msra.mxu0 %v2901
        %2947 = vmatprep.subr.mxu0 %v2904
        %2948 = vmatpush1.msra.mxu0 %v2903
        %2949 = vmatprep.subr.mxu0 %v2906
        %2950 = vmatpush1.msra.mxu0 %v2905
        %2951 = vmatprep.subr.mxu0 %v2908
        %2952 = vmatpush1.msra.mxu0 %v2907
        %2953 = vmatprep.subr.mxu0 %v2910
        %2954 = vmatpush1.msra.mxu0 %v2909
        %2955 = vmatprep.subr.mxu0 %v2912
        %2956 = vmatpush1.msra.mxu0 %v2911
        %2957 = vmatprep.subr.mxu0 %v2914
        %2958 = vmatpush1.msra.mxu0 %v2913
        %2959 = vmatprep.subr.mxu0 %v2916
        %2960 = vmatpush1.msra.mxu0 %v2915
        %2961 = vmatprep.subr.mxu0 0.0
        %2962 = vmatpush1.msra.mxu0 0.0
        %2963 = vmatprep.subr.mxu0 0.0
        %2964 = vmatpush1.msra.mxu0 0.0
        %2965 = vmatprep.subr.mxu0 0.0
        %2966 = vmatpush1.msra.mxu0 0.0
        %2967 = vmatprep.subr.mxu0 0.0
        %2968 = vmatpush1.msra.mxu0 0.0
        %2969 = vmatprep.subr.mxu0 0.0
        %2970 = vmatpush1.msra.mxu0 0.0
        %2971 = vmatprep.subr.mxu0 0.0
        %2972 = vmatpush1.msra.mxu0 0.0
        %2973 = vmatprep.subr.mxu0 0.0
        %2974 = vmatpush1.msra.mxu0 0.0
        %2975 = vmatprep.subr.mxu0 0.0
        %2976 = vmatpush1.msra.mxu0 0.0
        %2977 = vmatprep.subr.mxu0 0.0
        %2978 = vmatpush1.msra.mxu0 0.0
        %2979 = vmatprep.subr.mxu0 0.0
        %2980 = vmatpush1.msra.mxu0 0.0
        %2981 = vmatprep.subr.mxu0 0.0
        %2982 = vmatpush1.msra.mxu0 0.0
        %2983 = vmatprep.subr.mxu0 0.0
        %2984 = vmatpush1.msra.mxu0 0.0
        %2985 = vmatprep.subr.mxu0 0.0
        %2986 = vmatpush1.msra.mxu0 0.0
        %2987 = vmatprep.subr.mxu0 0.0
        %2988 = vmatpush1.msra.mxu0 0.0
        %2989 = vmatprep.subr.mxu0 0.0
        %2990 = vmatpush1.msra.mxu0 0.0
        %2991 = vmatprep.subr.mxu0 0.0
        %2992 = vmatpush1.msra.mxu0 0.0
        %2993 = vmatprep.mubr.f32.mxu0 0.0
        %2994 = vmatmul.mubr.f32.gmra.mrb[0].mxu0 %v2884
        %v2995 = vpop.f32.mrb[0].mxu0
        %v2996 = vadd.f32 %v2922, %v2995
        %v2997 = vpop.f32.mrb[0].mxu0
        %v2998 = vadd.f32 %v2926, %v2997
        %2999 = vdwg.mxu0
        %vm3000 = vcmp.gt.f32.partialorder %v2996, 0.0
        %vm3001 = vcmp.gt.f32.partialorder %v2998, 0.0
        %v3002 = vmul.f32 %v2996, 0.01
        %v3003 = vmul.f32 %v2998, 0.01
        %v3004 = vsel %vm3000, %v2996, %v3002
        %v3005 = vsel %vm3001, %v2998, %v3003
        %v3006 = vld [vmem:[%s11] sm:$0xff]
        %v3007 = vld [vmem:[%s11 + $0x8] sm:$0xff]
        %v3008 = vld [vmem:[%s11 + $0x10] sm:$0xff]
        %v3009 = vld [vmem:[%s11 + $0x18] sm:$0xff]
        %v3010 = vld [vmem:[%s11 + $0x20] sm:$0xff]
        %v3011 = vld [vmem:[%s11 + $0x28] sm:$0xff]
        %v3012 = vld [vmem:[%s11 + $0x30] sm:$0xff]
        %v3013 = vld [vmem:[%s11 + $0x38] sm:$0xff]
        %v3014 = vld [vmem:[%s11 + $0x40] sm:$0xff]
        %v3015 = vld [vmem:[%s11 + $0x48] sm:$0xff]
        %v3016 = vld [vmem:[%s11 + $0x50] sm:$0xff]
        %v3017 = vld [vmem:[%s11 + $0x58] sm:$0xff]
        %v3018 = vld [vmem:[%s11 + $0x60] sm:$0xff]
        %v3019 = vld [vmem:[%s11 + $0x68] sm:$0xff]
        %v3020 = vld [vmem:[%s11 + $0x70] sm:$0xff]
        %v3021 = vld [vmem:[%s11 + $0x78] sm:$0xff]
        %v3022 = vld [vmem:[%s11 + $0x80] sm:$0xff]
        %v3023 = vld [vmem:[%s11 + $0x88] sm:$0xff]
        %v3024 = vld [vmem:[%s11 + $0x90] sm:$0xff]
        %v3025 = vld [vmem:[%s11 + $0x98] sm:$0xff]
        %v3026 = vld [vmem:[%s11 + $0xa0] sm:$0xff]
        %v3027 = vld [vmem:[%s11 + $0xa8] sm:$0xff]
        %v3028 = vld [vmem:[%s11 + $0xb0] sm:$0xff]
        %v3029 = vld [vmem:[%s11 + $0xb8] sm:$0xff]
        %v3030 = vld [vmem:[%s11 + $0xc0] sm:$0xff]
        %v3031 = vld [vmem:[%s11 + $0xc8] sm:$0xff]
        %v3032 = vld [vmem:[%s11 + $0xd0] sm:$0xff]
        %v3033 = vld [vmem:[%s11 + $0xd8] sm:$0xff]
        %v3034 = vld [vmem:[%s11 + $0xe0] sm:$0xff]
        %v3035 = vld [vmem:[%s11 + $0xe8] sm:$0xff]
        %v3036 = vld [vmem:[%s11 + $0xf0] sm:$0xff]
        %v3037 = vld [vmem:[%s11 + $0xf8] sm:$0xff]
        %v3038 = vld [vmem:[%s11 + $0x100] sm:$0xff]
        %v3039 = vld [vmem:[%s11 + $0x108] sm:$0xff]
        %v3040 = vld [vmem:[%s11 + $0x110] sm:$0xff]
        %v3041 = vld [vmem:[%s11 + $0x118] sm:$0xff]
        %v3042 = vld [vmem:[%s11 + $0x120] sm:$0xff]
        %v3043 = vld [vmem:[%s11 + $0x128] sm:$0xff]
        %v3044 = vld [vmem:[%s11 + $0x130] sm:$0xff]
        %v3045 = vld [vmem:[%s11 + $0x138] sm:$0xff]
        %v3046 = vld [vmem:[%s11 + $0x140] sm:$0xff]
        %v3047 = vld [vmem:[%s11 + $0x148] sm:$0xff]
        %v3048 = vld [vmem:[%s11 + $0x150] sm:$0xff]
        %v3049 = vld [vmem:[%s11 + $0x158] sm:$0xff]
        %v3050 = vld [vmem:[%s11 + $0x160] sm:$0xff]
        %v3051 = vld [vmem:[%s11 + $0x168] sm:$0xff]
        %v3052 = vld [vmem:[%s11 + $0x170] sm:$0xff]
        %v3053 = vld [vmem:[%s11 + $0x178] sm:$0xff]
        %v3054 = vld [vmem:[%s11 + $0x180] sm:$0xff]
        %v3055 = vld [vmem:[%s11 + $0x188] sm:$0xff]
        %v3056 = vld [vmem:[%s11 + $0x190] sm:$0xff]
        %v3057 = vld [vmem:[%s11 + $0x198] sm:$0xff]
        %v3058 = vld [vmem:[%s11 + $0x1a0] sm:$0xff]
        %v3059 = vld [vmem:[%s11 + $0x1a8] sm:$0xff]
        %v3060 = vld [vmem:[%s11 + $0x1b0] sm:$0xff]
        %v3061 = vld [vmem:[%s11 + $0x1b8] sm:$0xff]
        %v3062 = vld [vmem:[%s11 + $0x1c0] sm:$0xff]
        %v3063 = vld [vmem:[%s11 + $0x1c8] sm:$0xff]
        %v3064 = vld [vmem:[%s11 + $0x1d0] sm:$0xff]
        %v3065 = vld [vmem:[%s11 + $0x1d8] sm:$0xff]
        %v3066 = vld [vmem:[%s11 + $0x1e0] sm:$0xff]
        %v3067 = vld [vmem:[%s11 + $0x1e8] sm:$0xff]
        %v3068 = vld [vmem:[%s11 + $0x1f0] sm:$0xff]
        %v3069 = vld [vmem:[%s11 + $0x1f8] sm:$0xff]
        %v3070 = vld [vmem:[%s11 + $0x200] sm:$0xff]
        %v3071 = vld [vmem:[%s11 + $0x208] sm:$0xff]
        %v3072 = vld [vmem:[%s11 + $0x210] sm:$0xff]
        %v3073 = vld [vmem:[%s11 + $0x218] sm:$0xff]
        %v3074 = vld [vmem:[%s11 + $0x220] sm:$0xff]
        %v3075 = vld [vmem:[%s11 + $0x228] sm:$0xff]
        %v3076 = vld [vmem:[%s11 + $0x230] sm:$0xff]
        %v3077 = vld [vmem:[%s11 + $0x238] sm:$0xff]
        %v3078 = vld [vmem:[%s11 + $0x240] sm:$0xff]
        %v3079 = vld [vmem:[%s11 + $0x248] sm:$0xff]
        %v3080 = vld [vmem:[%s11 + $0x250] sm:$0xff]
        %v3081 = vld [vmem:[%s11 + $0x258] sm:$0xff]
        %v3082 = vld [vmem:[%s11 + $0x260] sm:$0xff]
        %v3083 = vld [vmem:[%s11 + $0x268] sm:$0xff]
        %v3084 = vld [vmem:[%s11 + $0x270] sm:$0xff]
        %v3085 = vld [vmem:[%s11 + $0x278] sm:$0xff]
        %v3086 = vld [vmem:[%s11 + $0x280] sm:$0xff]
        %v3087 = vld [vmem:[%s11 + $0x288] sm:$0xff]
        %v3088 = vld [vmem:[%s11 + $0x290] sm:$0xff]
        %v3089 = vld [vmem:[%s11 + $0x298] sm:$0xff]
        %v3090 = vld [vmem:[%s11 + $0x2a0] sm:$0xff]
        %v3091 = vld [vmem:[%s11 + $0x2a8] sm:$0xff]
        %v3092 = vld [vmem:[%s11 + $0x2b0] sm:$0xff]
        %v3093 = vld [vmem:[%s11 + $0x2b8] sm:$0xff]
        %v3094 = vld [vmem:[%s11 + $0x2c0] sm:$0xff]
        %v3095 = vld [vmem:[%s11 + $0x2c8] sm:$0xff]
        %v3096 = vld [vmem:[%s11 + $0x2d0] sm:$0xff]
        %v3097 = vld [vmem:[%s11 + $0x2d8] sm:$0xff]
        %v3098 = vld [vmem:[%s11 + $0x2e0] sm:$0xff]
        %v3099 = vld [vmem:[%s11 + $0x2e8] sm:$0xff]
        %v3100 = vld [vmem:[%s11 + $0x2f0] sm:$0xff]
        %v3101 = vld [vmem:[%s11 + $0x2f8] sm:$0xff]
        %v3102 = vld [vmem:[%s11 + $0x300] sm:$0xff]
        %v3103 = vld [vmem:[%s11 + $0x308] sm:$0xff]
        %v3104 = vld [vmem:[%s11 + $0x310] sm:$0xff]
        %v3105 = vld [vmem:[%s11 + $0x318] sm:$0xff]
        %v3106 = vld [vmem:[%s11 + $0x320] sm:$0xff]
        %v3107 = vld [vmem:[%s11 + $0x328] sm:$0xff]
        %v3108 = vld [vmem:[%s11 + $0x330] sm:$0xff]
        %v3109 = vld [vmem:[%s11 + $0x338] sm:$0xff]
        %v3110 = vld [vmem:[%s11 + $0x340] sm:$0xff]
        %v3111 = vld [vmem:[%s11 + $0x348] sm:$0xff]
        %v3112 = vld [vmem:[%s11 + $0x350] sm:$0xff]
        %v3113 = vld [vmem:[%s11 + $0x358] sm:$0xff]
        %v3114 = vld [vmem:[%s11 + $0x360] sm:$0xff]
        %v3115 = vld [vmem:[%s11 + $0x368] sm:$0xff]
        %v3116 = vld [vmem:[%s11 + $0x370] sm:$0xff]
        %v3117 = vld [vmem:[%s11 + $0x378] sm:$0xff]
        %v3118 = vld [vmem:[%s11 + $0x380] sm:$0xff]
        %v3119 = vld [vmem:[%s11 + $0x388] sm:$0xff]
        %v3120 = vld [vmem:[%s11 + $0x390] sm:$0xff]
        %v3121 = vld [vmem:[%s11 + $0x398] sm:$0xff]
        %v3122 = vld [vmem:[%s11 + $0x3a0] sm:$0xff]
        %v3123 = vld [vmem:[%s11 + $0x3a8] sm:$0xff]
        %v3124 = vld [vmem:[%s11 + $0x3b0] sm:$0xff]
        %v3125 = vld [vmem:[%s11 + $0x3b8] sm:$0xff]
        %v3126 = vld [vmem:[%s11 + $0x3c0] sm:$0xff]
        %v3127 = vld [vmem:[%s11 + $0x3c8] sm:$0xff]
        %v3128 = vld [vmem:[%s11 + $0x3d0] sm:$0xff]
        %v3129 = vld [vmem:[%s11 + $0x3d8] sm:$0xff]
        %v3130 = vld [vmem:[%s11 + $0x3e0] sm:$0xff]
        %v3131 = vld [vmem:[%s11 + $0x3e8] sm:$0xff]
        %v3132 = vld [vmem:[%s11 + $0x3f0] sm:$0xff]
        %v3133 = vld [vmem:[%s11 + $0x3f8] sm:$0xff]
        %v3134 = vld [vmem:[%s12] sm:$0xf]
        %v3136 = vlaneseq
        %v3137 = vshrl.u32 %v3136, 7
        %v3138 = vsub.s32 0, %v3137
        %v3139 = vrot.slane %v3134, %v3138
        %v3140 = vlaneseq
        %v3141 = vshrl.u32 %v3140, 7
        %v3142 = vsub.s32 1, %v3141
        %v3143 = vrot.slane %v3134, %v3142
        %v3144 = vlaneseq
        %v3145 = vshrl.u32 %v3144, 7
        %v3146 = vsub.s32 2, %v3145
        %v3147 = vrot.slane %v3134, %v3146
        %v3148 = vlaneseq
        %v3149 = vshrl.u32 %v3148, 7
        %v3150 = vsub.s32 3, %v3149
        %v3151 = vrot.slane %v3134, %v3150
        %3156 = vmatprep.subr.mxu0 %v3007
        %3157 = vmatpush1.msra.mxu0 %v3006
        %3158 = vmatprep.subr.mxu0 %v3011
        %3159 = vmatpush1.msra.mxu0 %v3010
        %3160 = vmatprep.subr.mxu0 %v3015
        %3161 = vmatpush1.msra.mxu0 %v3014
        %3162 = vmatprep.subr.mxu0 %v3019
        %3163 = vmatpush1.msra.mxu0 %v3018
        %3164 = vmatprep.subr.mxu0 %v3023
        %3165 = vmatpush1.msra.mxu0 %v3022
        %3166 = vmatprep.subr.mxu0 %v3027
        %3167 = vmatpush1.msra.mxu0 %v3026
        %3168 = vmatprep.subr.mxu0 %v3031
        %3169 = vmatpush1.msra.mxu0 %v3030
        %3170 = vmatprep.subr.mxu0 %v3035
        %3171 = vmatpush1.msra.mxu0 %v3034
        %3172 = vmatprep.subr.mxu0 %v3039
        %3173 = vmatpush1.msra.mxu0 %v3038
        %3174 = vmatprep.subr.mxu0 %v3043
        %3175 = vmatpush1.msra.mxu0 %v3042
        %3176 = vmatprep.subr.mxu0 %v3047
        %3177 = vmatpush1.msra.mxu0 %v3046
        %3178 = vmatprep.subr.mxu0 %v3051
        %3179 = vmatpush1.msra.mxu0 %v3050
        %3180 = vmatprep.subr.mxu0 %v3055
        %3181 = vmatpush1.msra.mxu0 %v3054
        %3182 = vmatprep.subr.mxu0 %v3059
        %3183 = vmatpush1.msra.mxu0 %v3058
        %3184 = vmatprep.subr.mxu0 %v3063
        %3185 = vmatpush1.msra.mxu0 %v3062
        %3186 = vmatprep.subr.mxu0 %v3067
        %3187 = vmatpush1.msra.mxu0 %v3066
        %3188 = vmatprep.subr.mxu0 %v3071
        %3189 = vmatpush1.msra.mxu0 %v3070
        %3190 = vmatprep.subr.mxu0 %v3075
        %3191 = vmatpush1.msra.mxu0 %v3074
        %3192 = vmatprep.subr.mxu0 %v3079
        %3193 = vmatpush1.msra.mxu0 %v3078
        %3194 = vmatprep.subr.mxu0 %v3083
        %3195 = vmatpush1.msra.mxu0 %v3082
        %3196 = vmatprep.subr.mxu0 %v3087
        %3197 = vmatpush1.msra.mxu0 %v3086
        %3198 = vmatprep.subr.mxu0 %v3091
        %3199 = vmatpush1.msra.mxu0 %v3090
        %3200 = vmatprep.subr.mxu0 %v3095
        %3201 = vmatpush1.msra.mxu0 %v3094
        %3202 = vmatprep.subr.mxu0 %v3099
        %3203 = vmatpush1.msra.mxu0 %v3098
        %3204 = vmatprep.subr.mxu0 %v3103
        %3205 = vmatpush1.msra.mxu0 %v3102
        %3206 = vmatprep.subr.mxu0 %v3107
        %3207 = vmatpush1.msra.mxu0 %v3106
        %3208 = vmatprep.subr.mxu0 %v3111
        %3209 = vmatpush1.msra.mxu0 %v3110
        %3210 = vmatprep.subr.mxu0 %v3115
        %3211 = vmatpush1.msra.mxu0 %v3114
        %3212 = vmatprep.subr.mxu0 %v3119
        %3213 = vmatpush1.msra.mxu0 %v3118
        %3214 = vmatprep.subr.mxu0 %v3123
        %3215 = vmatpush1.msra.mxu0 %v3122
        %3216 = vmatprep.subr.mxu0 %v3127
        %3217 = vmatpush1.msra.mxu0 %v3126
        %3218 = vmatprep.subr.mxu0 %v3131
        %3219 = vmatpush1.msra.mxu0 %v3130
        %3220 = vmatprep.mubr.f32.mxu0 %v3005
        %3221 = vmatmul.mubr.f32.gmra.mrb[0].mxu0 %v3004
        %v3222 = vpop.f32.mrb[0].mxu0
        %v3223 = vadd.f32 %v3139, %v3222
        %v3224 = vpop.f32.mrb[0].mxu0
        %v3225 = vadd.f32 %v3143, %v3224
        %3226 = vdwg.mxu0
        %3227 = vmatprep.subr.mxu0 %v3009
        %3228 = vmatpush1.msra.mxu0 %v3008
        %3229 = vmatprep.subr.mxu0 %v3013
        %3230 = vmatpush1.msra.mxu0 %v3012
        %3231 = vmatprep.subr.mxu0 %v3017
        %3232 = vmatpush1.msra.mxu0 %v3016
        %3233 = vmatprep.subr.mxu0 %v3021
        %3234 = vmatpush1.msra.mxu0 %v3020
        %3235 = vmatprep.subr.mxu0 %v3025
        %3236 = vmatpush1.msra.mxu0 %v3024
        %3237 = vmatprep.subr.mxu0 %v3029
        %3238 = vmatpush1.msra.mxu0 %v3028
        %3239 = vmatprep.subr.mxu0 %v3033
        %3240 = vmatpush1.msra.mxu0 %v3032
        %3241 = vmatprep.subr.mxu0 %v3037
        %3242 = vmatpush1.msra.mxu0 %v3036
        %3243 = vmatprep.subr.mxu0 %v3041
        %3244 = vmatpush1.msra.mxu0 %v3040
        %3245 = vmatprep.subr.mxu0 %v3045
        %3246 = vmatpush1.msra.mxu0 %v3044
        %3247 = vmatprep.subr.mxu0 %v3049
        %3248 = vmatpush1.msra.mxu0 %v3048
        %3249 = vmatprep.subr.mxu0 %v3053
        %3250 = vmatpush1.msra.mxu0 %v3052
        %3251 = vmatprep.subr.mxu0 %v3057
        %3252 = vmatpush1.msra.mxu0 %v3056
        %3253 = vmatprep.subr.mxu0 %v3061
        %3254 = vmatpush1.msra.mxu0 %v3060
        %3255 = vmatprep.subr.mxu0 %v3065
        %3256 = vmatpush1.msra.mxu0 %v3064
        %3257 = vmatprep.subr.mxu0 %v3069
        %3258 = vmatpush1.msra.mxu0 %v3068
        %3259 = vmatprep.subr.mxu0 %v3073
        %3260 = vmatpush1.msra.mxu0 %v3072
        %3261 = vmatprep.subr.mxu0 %v3077
        %3262 = vmatpush1.msra.mxu0 %v3076
        %3263 = vmatprep.subr.mxu0 %v3081
        %3264 = vmatpush1.msra.mxu0 %v3080
        %3265 = vmatprep.subr.mxu0 %v3085
        %3266 = vmatpush1.msra.mxu0 %v3084
        %3267 = vmatprep.subr.mxu0 %v3089
        %3268 = vmatpush1.msra.mxu0 %v3088
        %3269 = vmatprep.subr.mxu0 %v3093
        %3270 = vmatpush1.msra.mxu0 %v3092
        %3271 = vmatprep.subr.mxu0 %v3097
        %3272 = vmatpush1.msra.mxu0 %v3096
        %3273 = vmatprep.subr.mxu0 %v3101
        %3274 = vmatpush1.msra.mxu0 %v3100
        %3275 = vmatprep.subr.mxu0 %v3105
        %3276 = vmatpush1.msra.mxu0 %v3104
        %3277 = vmatprep.subr.mxu0 %v3109
        %3278 = vmatpush1.msra.mxu0 %v3108
        %3279 = vmatprep.subr.mxu0 %v3113
        %3280 = vmatpush1.msra.mxu0 %v3112
        %3281 = vmatprep.subr.mxu0 %v3117
        %3282 = vmatpush1.msra.mxu0 %v3116
        %3283 = vmatprep.subr.mxu0 %v3121
        %3284 = vmatpush1.msra.mxu0 %v3120
        %3285 = vmatprep.subr.mxu0 %v3125
        %3286 = vmatpush1.msra.mxu0 %v3124
        %3287 = vmatprep.subr.mxu0 %v3129
        %3288 = vmatpush1.msra.mxu0 %v3128
        %3289 = vmatprep.subr.mxu0 %v3133
        %3290 = vmatpush1.msra.mxu0 %v3132
        %3291 = vmatprep.mubr.f32.mxu0 %v3005
        %3292 = vmatmul.mubr.f32.gmra.mrb[0].mxu0 %v3004
        %v3293 = vpop.f32.mrb[0].mxu0
        %v3294 = vadd.f32 %v3147, %v3293
        %v3295 = vpop.f32.mrb[0].mxu0
        %v3296 = vadd.f32 %v3151, %v3295
        %3297 = vdwg.mxu0
        %v3298 = vsub.f32 0.0, %v3223
        %v3299 = vsub.f32 0.0, %v3225
        %v3300 = vsub.f32 0.0, %v3294
        %v3301 = vsub.f32 0.0, %v3296
        %v3302 = vmul.f32 %v3298, 1.442695
        %v3303 = vpow.pop %v3302
        %v3304 = vmul.f32 %v3299, 1.442695
        %v3305 = vpow.pop %v3304
        %v3306 = vmul.f32 %v3300, 1.442695
        %v3307 = vpow.pop %v3306
        %v3308 = vmul.f32 %v3301, 1.442695
        %v3309 = vpow.pop %v3308
        %v3310 = vadd.f32 %v3303, 1.0
        %v3311 = vadd.f32 %v3305, 1.0
        %v3312 = vadd.f32 %v3307, 1.0
        %v3313 = vadd.f32 %v3309, 1.0
        %v3314 = vrcp.pop %v3310
        %v3315 = vmul.f32 1.0, %v3314
        %v3316 = vrcp.pop %v3311
        %v3317 = vmul.f32 1.0, %v3316
        %v3318 = vrcp.pop %v3312
        %v3319 = vmul.f32 1.0, %v3318
        %v3320 = vrcp.pop %v3313
        %v3321 = vmul.f32 1.0, %v3320
        %v3322 = vmul.f32 %v2717, %v3315
        %v3323 = vmul.f32 %v2719, %v3317
        %v3324 = vmul.f32 %v2788, %v3319
        %v3325 = vmul.f32 %v2790, %v3321
        %v3326 = vld [vmem:[%s13] sm:$0xff]
        %v3327 = vld [vmem:[%s13 + $0x8] sm:$0xff]
        %v3328 = vld [vmem:[%s13 + $0x10] sm:$0xff]
        %v3329 = vld [vmem:[%s13 + $0x18] sm:$0xff]
        %v3330 = vld [vmem:[%s13 + $0x20] sm:$0xff]
        %v3331 = vld [vmem:[%s13 + $0x28] sm:$0xff]
        %v3332 = vld [vmem:[%s13 + $0x30] sm:$0xff]
        %v3333 = vld [vmem:[%s13 + $0x38] sm:$0xff]
        %v3334 = vld [vmem:[%s13 + $0x40] sm:$0xff]
        %v3335 = vld [vmem:[%s13 + $0x48] sm:$0xff]
        %v3336 = vld [vmem:[%s13 + $0x50] sm:$0xff]
        %v3337 = vld [vmem:[%s13 + $0x58] sm:$0xff]
        %v3338 = vld [vmem:[%s13 + $0x60] sm:$0xff]
        %v3339 = vld [vmem:[%s13 + $0x68] sm:$0xff]
        %v3340 = vld [vmem:[%s13 + $0x70] sm:$0xff]
        %v3341 = vld [vmem:[%s13 + $0x78] sm:$0xff]
        %v3342 = vld [vmem:[%s13 + $0x80] sm:$0xff]
        %v3343 = vld [vmem:[%s13 + $0x88] sm:$0xff]
        %v3344 = vld [vmem:[%s13 + $0x90] sm:$0xff]
        %v3345 = vld [vmem:[%s13 + $0x98] sm:$0xff]
        %v3346 = vld [vmem:[%s13 + $0xa0] sm:$0xff]
        %v3347 = vld [vmem:[%s13 + $0xa8] sm:$0xff]
        %v3348 = vld [vmem:[%s13 + $0xb0] sm:$0xff]
        %v3349 = vld [vmem:[%s13 + $0xb8] sm:$0xff]
        %v3350 = vld [vmem:[%s13 + $0xc0] sm:$0xff]
        %v3351 = vld [vmem:[%s13 + $0xc8] sm:$0xff]
        %v3352 = vld [vmem:[%s13 + $0xd0] sm:$0xff]
        %v3353 = vld [vmem:[%s13 + $0xd8] sm:$0xff]
        %v3354 = vld [vmem:[%s13 + $0xe0] sm:$0xff]
        %v3355 = vld [vmem:[%s13 + $0xe8] sm:$0xff]
        %v3356 = vld [vmem:[%s13 + $0xf0] sm:$0xff]
        %v3357 = vld [vmem:[%s13 + $0xf8] sm:$0xff]
        %v3358 = vld [vmem:[%s13 + $0x100] sm:$0xff]
        %v3359 = vld [vmem:[%s13 + $0x108] sm:$0xff]
        %v3360 = vld [vmem:[%s13 + $0x110] sm:$0xff]
        %v3361 = vld [vmem:[%s13 + $0x118] sm:$0xff]
        %v3362 = vld [vmem:[%s13 + $0x120] sm:$0xff]
        %v3363 = vld [vmem:[%s13 + $0x128] sm:$0xff]
        %v3364 = vld [vmem:[%s13 + $0x130] sm:$0xff]
        %v3365 = vld [vmem:[%s13 + $0x138] sm:$0xff]
        %v3366 = vld [vmem:[%s13 + $0x140] sm:$0xff]
        %v3367 = vld [vmem:[%s13 + $0x148] sm:$0xff]
        %v3368 = vld [vmem:[%s13 + $0x150] sm:$0xff]
        %v3369 = vld [vmem:[%s13 + $0x158] sm:$0xff]
        %v3370 = vld [vmem:[%s13 + $0x160] sm:$0xff]
        %v3371 = vld [vmem:[%s13 + $0x168] sm:$0xff]
        %v3372 = vld [vmem:[%s13 + $0x170] sm:$0xff]
        %v3373 = vld [vmem:[%s13 + $0x178] sm:$0xff]
        %v3374 = vld [vmem:[%s13 + $0x180] sm:$0xff]
        %v3375 = vld [vmem:[%s13 + $0x188] sm:$0xff]
        %v3376 = vld [vmem:[%s13 + $0x190] sm:$0xff]
        %v3377 = vld [vmem:[%s13 + $0x198] sm:$0xff]
        %v3378 = vld [vmem:[%s13 + $0x1a0] sm:$0xff]
        %v3379 = vld [vmem:[%s13 + $0x1a8] sm:$0xff]
        %v3380 = vld [vmem:[%s13 + $0x1b0] sm:$0xff]
        %v3381 = vld [vmem:[%s13 + $0x1b8] sm:$0xff]
        %v3382 = vld [vmem:[%s13 + $0x1c0] sm:$0xff]
        %v3383 = vld [vmem:[%s13 + $0x1c8] sm:$0xff]
        %v3384 = vld [vmem:[%s13 + $0x1d0] sm:$0xff]
        %v3385 = vld [vmem:[%s13 + $0x1d8] sm:$0xff]
        %v3386 = vld [vmem:[%s13 + $0x1e0] sm:$0xff]
        %v3387 = vld [vmem:[%s13 + $0x1e8] sm:$0xff]
        %v3388 = vld [vmem:[%s13 + $0x1f0] sm:$0xff]
        %v3389 = vld [vmem:[%s13 + $0x1f8] sm:$0xff]
        %v3390 = vld [vmem:[%s13 + $0x200] sm:$0xff]
        %v3391 = vld [vmem:[%s13 + $0x208] sm:$0xff]
        %v3392 = vld [vmem:[%s13 + $0x210] sm:$0xff]
        %v3393 = vld [vmem:[%s13 + $0x218] sm:$0xff]
        %v3394 = vld [vmem:[%s13 + $0x220] sm:$0xff]
        %v3395 = vld [vmem:[%s13 + $0x228] sm:$0xff]
        %v3396 = vld [vmem:[%s13 + $0x230] sm:$0xff]
        %v3397 = vld [vmem:[%s13 + $0x238] sm:$0xff]
        %v3398 = vld [vmem:[%s13 + $0x240] sm:$0xff]
        %v3399 = vld [vmem:[%s13 + $0x248] sm:$0xff]
        %v3400 = vld [vmem:[%s13 + $0x250] sm:$0xff]
        %v3401 = vld [vmem:[%s13 + $0x258] sm:$0xff]
        %v3402 = vld [vmem:[%s13 + $0x260] sm:$0xff]
        %v3403 = vld [vmem:[%s13 + $0x268] sm:$0xff]
        %v3404 = vld [vmem:[%s13 + $0x270] sm:$0xff]
        %v3405 = vld [vmem:[%s13 + $0x278] sm:$0xff]
        %v3406 = vld [vmem:[%s13 + $0x280] sm:$0xff]
        %v3407 = vld [vmem:[%s13 + $0x288] sm:$0xff]
        %v3408 = vld [vmem:[%s13 + $0x290] sm:$0xff]
        %v3409 = vld [vmem:[%s13 + $0x298] sm:$0xff]
        %v3410 = vld [vmem:[%s13 + $0x2a0] sm:$0xff]
        %v3411 = vld [vmem:[%s13 + $0x2a8] sm:$0xff]
        %v3412 = vld [vmem:[%s13 + $0x2b0] sm:$0xff]
        %v3413 = vld [vmem:[%s13 + $0x2b8] sm:$0xff]
        %v3414 = vld [vmem:[%s13 + $0x2c0] sm:$0xff]
        %v3415 = vld [vmem:[%s13 + $0x2c8] sm:$0xff]
        %v3416 = vld [vmem:[%s13 + $0x2d0] sm:$0xff]
        %v3417 = vld [vmem:[%s13 + $0x2d8] sm:$0xff]
        %v3418 = vld [vmem:[%s13 + $0x2e0] sm:$0xff]
        %v3419 = vld [vmem:[%s13 + $0x2e8] sm:$0xff]
        %v3420 = vld [vmem:[%s13 + $0x2f0] sm:$0xff]
        %v3421 = vld [vmem:[%s13 + $0x2f8] sm:$0xff]
        %v3422 = vld [vmem:[%s13 + $0x300] sm:$0xff]
        %v3423 = vld [vmem:[%s13 + $0x308] sm:$0xff]
        %v3424 = vld [vmem:[%s13 + $0x310] sm:$0xff]
        %v3425 = vld [vmem:[%s13 + $0x318] sm:$0xff]
        %v3426 = vld [vmem:[%s13 + $0x320] sm:$0xff]
        %v3427 = vld [vmem:[%s13 + $0x328] sm:$0xff]
        %v3428 = vld [vmem:[%s13 + $0x330] sm:$0xff]
        %v3429 = vld [vmem:[%s13 + $0x338] sm:$0xff]
        %v3430 = vld [vmem:[%s13 + $0x340] sm:$0xff]
        %v3431 = vld [vmem:[%s13 + $0x348] sm:$0xff]
        %v3432 = vld [vmem:[%s13 + $0x350] sm:$0xff]
        %v3433 = vld [vmem:[%s13 + $0x358] sm:$0xff]
        %v3434 = vld [vmem:[%s13 + $0x360] sm:$0xff]
        %v3435 = vld [vmem:[%s13 + $0x368] sm:$0xff]
        %v3436 = vld [vmem:[%s13 + $0x370] sm:$0xff]
        %v3437 = vld [vmem:[%s13 + $0x378] sm:$0xff]
        %v3438 = vld [vmem:[%s13 + $0x380] sm:$0xff]
        %v3439 = vld [vmem:[%s13 + $0x388] sm:$0xff]
        %v3440 = vld [vmem:[%s13 + $0x390] sm:$0xff]
        %v3441 = vld [vmem:[%s13 + $0x398] sm:$0xff]
        %v3442 = vld [vmem:[%s13 + $0x3a0] sm:$0xff]
        %v3443 = vld [vmem:[%s13 + $0x3a8] sm:$0xff]
        %v3444 = vld [vmem:[%s13 + $0x3b0] sm:$0xff]
        %v3445 = vld [vmem:[%s13 + $0x3b8] sm:$0xff]
        %v3446 = vld [vmem:[%s13 + $0x3c0] sm:$0xff]
        %v3447 = vld [vmem:[%s13 + $0x3c8] sm:$0xff]
        %v3448 = vld [vmem:[%s13 + $0x3d0] sm:$0xff]
        %v3449 = vld [vmem:[%s13 + $0x3d8] sm:$0xff]
        %v3450 = vld [vmem:[%s13 + $0x3e0] sm:$0xff]
        %v3451 = vld [vmem:[%s13 + $0x3e8] sm:$0xff]
        %v3452 = vld [vmem:[%s13 + $0x3f0] sm:$0xff]
        %v3453 = vld [vmem:[%s13 + $0x3f8] sm:$0xff]
        %v3454 = vld [vmem:[%s13 + $0x400] sm:$0xff]
        %v3455 = vld [vmem:[%s13 + $0x408] sm:$0xff]
        %v3456 = vld [vmem:[%s13 + $0x410] sm:$0xff]
        %v3457 = vld [vmem:[%s13 + $0x418] sm:$0xff]
        %v3458 = vld [vmem:[%s13 + $0x420] sm:$0xff]
        %v3459 = vld [vmem:[%s13 + $0x428] sm:$0xff]
        %v3460 = vld [vmem:[%s13 + $0x430] sm:$0xff]
        %v3461 = vld [vmem:[%s13 + $0x438] sm:$0xff]
        %v3462 = vld [vmem:[%s13 + $0x440] sm:$0xff]
        %v3463 = vld [vmem:[%s13 + $0x448] sm:$0xff]
        %v3464 = vld [vmem:[%s13 + $0x450] sm:$0xff]
        %v3465 = vld [vmem:[%s13 + $0x458] sm:$0xff]
        %v3466 = vld [vmem:[%s13 + $0x460] sm:$0xff]
        %v3467 = vld [vmem:[%s13 + $0x468] sm:$0xff]
        %v3468 = vld [vmem:[%s13 + $0x470] sm:$0xff]
        %v3469 = vld [vmem:[%s13 + $0x478] sm:$0xff]
        %v3470 = vld [vmem:[%s13 + $0x480] sm:$0xff]
        %v3471 = vld [vmem:[%s13 + $0x488] sm:$0xff]
        %v3472 = vld [vmem:[%s13 + $0x490] sm:$0xff]
        %v3473 = vld [vmem:[%s13 + $0x498] sm:$0xff]
        %v3474 = vld [vmem:[%s13 + $0x4a0] sm:$0xff]
        %v3475 = vld [vmem:[%s13 + $0x4a8] sm:$0xff]
        %v3476 = vld [vmem:[%s13 + $0x4b0] sm:$0xff]
        %v3477 = vld [vmem:[%s13 + $0x4b8] sm:$0xff]
        %v3478 = vld [vmem:[%s13 + $0x4c0] sm:$0xff]
        %v3479 = vld [vmem:[%s13 + $0x4c8] sm:$0xff]
        %v3480 = vld [vmem:[%s13 + $0x4d0] sm:$0xff]
        %v3481 = vld [vmem:[%s13 + $0x4d8] sm:$0xff]
        %v3482 = vld [vmem:[%s13 + $0x4e0] sm:$0xff]
        %v3483 = vld [vmem:[%s13 + $0x4e8] sm:$0xff]
        %v3484 = vld [vmem:[%s13 + $0x4f0] sm:$0xff]
        %v3485 = vld [vmem:[%s13 + $0x4f8] sm:$0xff]
        %v3486 = vld [vmem:[%s13 + $0x500] sm:$0xff]
        %v3487 = vld [vmem:[%s13 + $0x508] sm:$0xff]
        %v3488 = vld [vmem:[%s13 + $0x510] sm:$0xff]
        %v3489 = vld [vmem:[%s13 + $0x518] sm:$0xff]
        %v3490 = vld [vmem:[%s13 + $0x520] sm:$0xff]
        %v3491 = vld [vmem:[%s13 + $0x528] sm:$0xff]
        %v3492 = vld [vmem:[%s13 + $0x530] sm:$0xff]
        %v3493 = vld [vmem:[%s13 + $0x538] sm:$0xff]
        %v3494 = vld [vmem:[%s13 + $0x540] sm:$0xff]
        %v3495 = vld [vmem:[%s13 + $0x548] sm:$0xff]
        %v3496 = vld [vmem:[%s13 + $0x550] sm:$0xff]
        %v3497 = vld [vmem:[%s13 + $0x558] sm:$0xff]
        %v3498 = vld [vmem:[%s13 + $0x560] sm:$0xff]
        %v3499 = vld [vmem:[%s13 + $0x568] sm:$0xff]
        %v3500 = vld [vmem:[%s13 + $0x570] sm:$0xff]
        %v3501 = vld [vmem:[%s13 + $0x578] sm:$0xff]
        %v3502 = vld [vmem:[%s13 + $0x580] sm:$0xff]
        %v3503 = vld [vmem:[%s13 + $0x588] sm:$0xff]
        %v3504 = vld [vmem:[%s13 + $0x590] sm:$0xff]
        %v3505 = vld [vmem:[%s13 + $0x598] sm:$0xff]
        %v3506 = vld [vmem:[%s13 + $0x5a0] sm:$0xff]
        %v3507 = vld [vmem:[%s13 + $0x5a8] sm:$0xff]
        %v3508 = vld [vmem:[%s13 + $0x5b0] sm:$0xff]
        %v3509 = vld [vmem:[%s13 + $0x5b8] sm:$0xff]
        %v3510 = vld [vmem:[%s13 + $0x5c0] sm:$0xff]
        %v3511 = vld [vmem:[%s13 + $0x5c8] sm:$0xff]
        %v3512 = vld [vmem:[%s13 + $0x5d0] sm:$0xff]
        %v3513 = vld [vmem:[%s13 + $0x5d8] sm:$0xff]
        %v3514 = vld [vmem:[%s13 + $0x5e0] sm:$0xff]
        %v3515 = vld [vmem:[%s13 + $0x5e8] sm:$0xff]
        %v3516 = vld [vmem:[%s13 + $0x5f0] sm:$0xff]
        %v3517 = vld [vmem:[%s13 + $0x5f8] sm:$0xff]
        %v3518 = vld [vmem:[%s13 + $0x600] sm:$0xff]
        %v3519 = vld [vmem:[%s13 + $0x608] sm:$0xff]
        %v3520 = vld [vmem:[%s13 + $0x610] sm:$0xff]
        %v3521 = vld [vmem:[%s13 + $0x618] sm:$0xff]
        %v3522 = vld [vmem:[%s13 + $0x620] sm:$0xff]
        %v3523 = vld [vmem:[%s13 + $0x628] sm:$0xff]
        %v3524 = vld [vmem:[%s13 + $0x630] sm:$0xff]
        %v3525 = vld [vmem:[%s13 + $0x638] sm:$0xff]
        %v3526 = vld [vmem:[%s13 + $0x640] sm:$0xff]
        %v3527 = vld [vmem:[%s13 + $0x648] sm:$0xff]
        %v3528 = vld [vmem:[%s13 + $0x650] sm:$0xff]
        %v3529 = vld [vmem:[%s13 + $0x658] sm:$0xff]
        %v3530 = vld [vmem:[%s13 + $0x660] sm:$0xff]
        %v3531 = vld [vmem:[%s13 + $0x668] sm:$0xff]
        %v3532 = vld [vmem:[%s13 + $0x670] sm:$0xff]
        %v3533 = vld [vmem:[%s13 + $0x678] sm:$0xff]
        %v3534 = vld [vmem:[%s13 + $0x680] sm:$0xff]
        %v3535 = vld [vmem:[%s13 + $0x688] sm:$0xff]
        %v3536 = vld [vmem:[%s13 + $0x690] sm:$0xff]
        %v3537 = vld [vmem:[%s13 + $0x698] sm:$0xff]
        %v3538 = vld [vmem:[%s13 + $0x6a0] sm:$0xff]
        %v3539 = vld [vmem:[%s13 + $0x6a8] sm:$0xff]
        %v3540 = vld [vmem:[%s13 + $0x6b0] sm:$0xff]
        %v3541 = vld [vmem:[%s13 + $0x6b8] sm:$0xff]
        %v3542 = vld [vmem:[%s13 + $0x6c0] sm:$0xff]
        %v3543 = vld [vmem:[%s13 + $0x6c8] sm:$0xff]
        %v3544 = vld [vmem:[%s13 + $0x6d0] sm:$0xff]
        %v3545 = vld [vmem:[%s13 + $0x6d8] sm:$0xff]
        %v3546 = vld [vmem:[%s13 + $0x6e0] sm:$0xff]
        %v3547 = vld [vmem:[%s13 + $0x6e8] sm:$0xff]
        %v3548 = vld [vmem:[%s13 + $0x6f0] sm:$0xff]
        %v3549 = vld [vmem:[%s13 + $0x6f8] sm:$0xff]
        %v3550 = vld [vmem:[%s13 + $0x700] sm:$0xff]
        %v3551 = vld [vmem:[%s13 + $0x708] sm:$0xff]
        %v3552 = vld [vmem:[%s13 + $0x710] sm:$0xff]
        %v3553 = vld [vmem:[%s13 + $0x718] sm:$0xff]
        %v3554 = vld [vmem:[%s13 + $0x720] sm:$0xff]
        %v3555 = vld [vmem:[%s13 + $0x728] sm:$0xff]
        %v3556 = vld [vmem:[%s13 + $0x730] sm:$0xff]
        %v3557 = vld [vmem:[%s13 + $0x738] sm:$0xff]
        %v3558 = vld [vmem:[%s13 + $0x740] sm:$0xff]
        %v3559 = vld [vmem:[%s13 + $0x748] sm:$0xff]
        %v3560 = vld [vmem:[%s13 + $0x750] sm:$0xff]
        %v3561 = vld [vmem:[%s13 + $0x758] sm:$0xff]
        %v3562 = vld [vmem:[%s13 + $0x760] sm:$0xff]
        %v3563 = vld [vmem:[%s13 + $0x768] sm:$0xff]
        %v3564 = vld [vmem:[%s13 + $0x770] sm:$0xff]
        %v3565 = vld [vmem:[%s13 + $0x778] sm:$0xff]
        %v3566 = vld [vmem:[%s13 + $0x780] sm:$0xff]
        %v3567 = vld [vmem:[%s13 + $0x788] sm:$0xff]
        %v3568 = vld [vmem:[%s13 + $0x790] sm:$0xff]
        %v3569 = vld [vmem:[%s13 + $0x798] sm:$0xff]
        %v3570 = vld [vmem:[%s13 + $0x7a0] sm:$0xff]
        %v3571 = vld [vmem:[%s13 + $0x7a8] sm:$0xff]
        %v3572 = vld [vmem:[%s13 + $0x7b0] sm:$0xff]
        %v3573 = vld [vmem:[%s13 + $0x7b8] sm:$0xff]
        %v3574 = vld [vmem:[%s13 + $0x7c0] sm:$0xff]
        %v3575 = vld [vmem:[%s13 + $0x7c8] sm:$0xff]
        %v3576 = vld [vmem:[%s13 + $0x7d0] sm:$0xff]
        %v3577 = vld [vmem:[%s13 + $0x7d8] sm:$0xff]
        %v3578 = vld [vmem:[%s13 + $0x7e0] sm:$0xff]
        %v3579 = vld [vmem:[%s13 + $0x7e8] sm:$0xff]
        %v3580 = vld [vmem:[%s13 + $0x7f0] sm:$0xff]
        %v3581 = vld [vmem:[%s13 + $0x7f8] sm:$0xff]
        %v3582 = vld [vmem:[%s14] sm:$0xf]
        %v3584 = vlaneseq
        %v3585 = vshrl.u32 %v3584, 7
        %v3586 = vsub.s32 0, %v3585
        %v3587 = vrot.slane %v3582, %v3586
        %v3588 = vlaneseq
        %v3589 = vshrl.u32 %v3588, 7
        %v3590 = vsub.s32 1, %v3589
        %v3591 = vrot.slane %v3582, %v3590
        %v3592 = vlaneseq
        %v3593 = vshrl.u32 %v3592, 7
        %v3594 = vsub.s32 2, %v3593
        %v3595 = vrot.slane %v3582, %v3594
        %v3596 = vlaneseq
        %v3597 = vshrl.u32 %v3596, 7
        %v3598 = vsub.s32 3, %v3597
        %v3599 = vrot.slane %v3582, %v3598
        %3604 = vmatprep.subr.mxu0 %v3327
        %3605 = vmatpush1.msra.mxu0 %v3326
        %3606 = vmatprep.subr.mxu0 %v3331
        %3607 = vmatpush1.msra.mxu0 %v3330
        %3608 = vmatprep.subr.mxu0 %v3335
        %3609 = vmatpush1.msra.mxu0 %v3334
        %3610 = vmatprep.subr.mxu0 %v3339
        %3611 = vmatpush1.msra.mxu0 %v3338
        %3612 = vmatprep.subr.mxu0 %v3343
        %3613 = vmatpush1.msra.mxu0 %v3342
        %3614 = vmatprep.subr.mxu0 %v3347
        %3615 = vmatpush1.msra.mxu0 %v3346
        %3616 = vmatprep.subr.mxu0 %v3351
        %3617 = vmatpush1.msra.mxu0 %v3350
        %3618 = vmatprep.subr.mxu0 %v3355
        %3619 = vmatpush1.msra.mxu0 %v3354
        %3620 = vmatprep.subr.mxu0 %v3359
        %3621 = vmatpush1.msra.mxu0 %v3358
        %3622 = vmatprep.subr.mxu0 %v3363
        %3623 = vmatpush1.msra.mxu0 %v3362
        %3624 = vmatprep.subr.mxu0 %v3367
        %3625 = vmatpush1.msra.mxu0 %v3366
        %3626 = vmatprep.subr.mxu0 %v3371
        %3627 = vmatpush1.msra.mxu0 %v3370
        %3628 = vmatprep.subr.mxu0 %v3375
        %3629 = vmatpush1.msra.mxu0 %v3374
        %3630 = vmatprep.subr.mxu0 %v3379
        %3631 = vmatpush1.msra.mxu0 %v3378
        %3632 = vmatprep.subr.mxu0 %v3383
        %3633 = vmatpush1.msra.mxu0 %v3382
        %3634 = vmatprep.subr.mxu0 %v3387
        %3635 = vmatpush1.msra.mxu0 %v3386
        %3636 = vmatprep.subr.mxu0 %v3391
        %3637 = vmatpush1.msra.mxu0 %v3390
        %3638 = vmatprep.subr.mxu0 %v3395
        %3639 = vmatpush1.msra.mxu0 %v3394
        %3640 = vmatprep.subr.mxu0 %v3399
        %3641 = vmatpush1.msra.mxu0 %v3398
        %3642 = vmatprep.subr.mxu0 %v3403
        %3643 = vmatpush1.msra.mxu0 %v3402
        %3644 = vmatprep.subr.mxu0 %v3407
        %3645 = vmatpush1.msra.mxu0 %v3406
        %3646 = vmatprep.subr.mxu0 %v3411
        %3647 = vmatpush1.msra.mxu0 %v3410
        %3648 = vmatprep.subr.mxu0 %v3415
        %3649 = vmatpush1.msra.mxu0 %v3414
        %3650 = vmatprep.subr.mxu0 %v3419
        %3651 = vmatpush1.msra.mxu0 %v3418
        %3652 = vmatprep.subr.mxu0 %v3423
        %3653 = vmatpush1.msra.mxu0 %v3422
        %3654 = vmatprep.subr.mxu0 %v3427
        %3655 = vmatpush1.msra.mxu0 %v3426
        %3656 = vmatprep.subr.mxu0 %v3431
        %3657 = vmatpush1.msra.mxu0 %v3430
        %3658 = vmatprep.subr.mxu0 %v3435
        %3659 = vmatpush1.msra.mxu0 %v3434
        %3660 = vmatprep.subr.mxu0 %v3439
        %3661 = vmatpush1.msra.mxu0 %v3438
        %3662 = vmatprep.subr.mxu0 %v3443
        %3663 = vmatpush1.msra.mxu0 %v3442
        %3664 = vmatprep.subr.mxu0 %v3447
        %3665 = vmatpush1.msra.mxu0 %v3446
        %3666 = vmatprep.subr.mxu0 %v3451
        %3667 = vmatpush1.msra.mxu0 %v3450
        %3668 = vmatprep.mubr.f32.mxu0 %v3323
        %3669 = vmatmul.mubr.f32.gmra.mrb[0].mxu0 %v3322
        %v3670 = vpop.f32.mrb[0].mxu0
        %v3671 = vadd.f32 %v3587, %v3670
        %v3672 = vpop.f32.mrb[0].mxu0
        %v3673 = vadd.f32 %v3591, %v3672
        %3674 = vdwg.mxu0
        %3675 = vmatprep.subr.mxu0 %v3455
        %3676 = vmatpush1.msra.mxu0 %v3454
        %3677 = vmatprep.subr.mxu0 %v3459
        %3678 = vmatpush1.msra.mxu0 %v3458
        %3679 = vmatprep.subr.mxu0 %v3463
        %3680 = vmatpush1.msra.mxu0 %v3462
        %3681 = vmatprep.subr.mxu0 %v3467
        %3682 = vmatpush1.msra.mxu0 %v3466
        %3683 = vmatprep.subr.mxu0 %v3471
        %3684 = vmatpush1.msra.mxu0 %v3470
        %3685 = vmatprep.subr.mxu0 %v3475
        %3686 = vmatpush1.msra.mxu0 %v3474
        %3687 = vmatprep.subr.mxu0 %v3479
        %3688 = vmatpush1.msra.mxu0 %v3478
        %3689 = vmatprep.subr.mxu0 %v3483
        %3690 = vmatpush1.msra.mxu0 %v3482
        %3691 = vmatprep.subr.mxu0 %v3487
        %3692 = vmatpush1.msra.mxu0 %v3486
        %3693 = vmatprep.subr.mxu0 %v3491
        %3694 = vmatpush1.msra.mxu0 %v3490
        %3695 = vmatprep.subr.mxu0 %v3495
        %3696 = vmatpush1.msra.mxu0 %v3494
        %3697 = vmatprep.subr.mxu0 %v3499
        %3698 = vmatpush1.msra.mxu0 %v3498
        %3699 = vmatprep.subr.mxu0 %v3503
        %3700 = vmatpush1.msra.mxu0 %v3502
        %3701 = vmatprep.subr.mxu0 %v3507
        %3702 = vmatpush1.msra.mxu0 %v3506
        %3703 = vmatprep.subr.mxu0 %v3511
        %3704 = vmatpush1.msra.mxu0 %v3510
        %3705 = vmatprep.subr.mxu0 %v3515
        %3706 = vmatpush1.msra.mxu0 %v3514
        %3707 = vmatprep.subr.mxu0 %v3519
        %3708 = vmatpush1.msra.mxu0 %v3518
        %3709 = vmatprep.subr.mxu0 %v3523
        %3710 = vmatpush1.msra.mxu0 %v3522
        %3711 = vmatprep.subr.mxu0 %v3527
        %3712 = vmatpush1.msra.mxu0 %v3526
        %3713 = vmatprep.subr.mxu0 %v3531
        %3714 = vmatpush1.msra.mxu0 %v3530
        %3715 = vmatprep.subr.mxu0 %v3535
        %3716 = vmatpush1.msra.mxu0 %v3534
        %3717 = vmatprep.subr.mxu0 %v3539
        %3718 = vmatpush1.msra.mxu0 %v3538
        %3719 = vmatprep.subr.mxu0 %v3543
        %3720 = vmatpush1.msra.mxu0 %v3542
        %3721 = vmatprep.subr.mxu0 %v3547
        %3722 = vmatpush1.msra.mxu0 %v3546
        %3723 = vmatprep.subr.mxu0 %v3551
        %3724 = vmatpush1.msra.mxu0 %v3550
        %3725 = vmatprep.subr.mxu0 %v3555
        %3726 = vmatpush1.msra.mxu0 %v3554
        %3727 = vmatprep.subr.mxu0 %v3559
        %3728 = vmatpush1.msra.mxu0 %v3558
        %3729 = vmatprep.subr.mxu0 %v3563
        %3730 = vmatpush1.msra.mxu0 %v3562
        %3731 = vmatprep.subr.mxu0 %v3567
        %3732 = vmatpush1.msra.mxu0 %v3566
        %3733 = vmatprep.subr.mxu0 %v3571
        %3734 = vmatpush1.msra.mxu0 %v3570
        %3735 = vmatprep.subr.mxu0 %v3575
        %3736 = vmatpush1.msra.mxu0 %v3574
        %3737 = vmatprep.subr.mxu0 %v3579
        %3738 = vmatpush1.msra.mxu0 %v3578
        %3739 = vmatprep.mubr.f32.mxu0 %v3325
        %3740 = vmatmul.mubr.f32.gmra.mrb[0].mxu0 %v3324
        %v3741 = vpop.f32.mrb[0].mxu0
        %v3742 = vadd.f32 %v3671, %v3741
        %v3743 = vpop.f32.mrb[0].mxu0
        %v3744 = vadd.f32 %v3673, %v3743
        %3745 = vdwg.mxu0
        %3746 = vmatprep.subr.mxu0 %v3329
        %3747 = vmatpush1.msra.mxu0 %v3328
        %3748 = vmatprep.subr.mxu0 %v3333
        %3749 = vmatpush1.msra.mxu0 %v3332
        %3750 = vmatprep.subr.mxu0 %v3337
        %3751 = vmatpush1.msra.mxu0 %v3336
        %3752 = vmatprep.subr.mxu0 %v3341
        %3753 = vmatpush1.msra.mxu0 %v3340
        %3754 = vmatprep.subr.mxu0 %v3345
        %3755 = vmatpush1.msra.mxu0 %v3344
        %3756 = vmatprep.subr.mxu0 %v3349
        %3757 = vmatpush1.msra.mxu0 %v3348
        %3758 = vmatprep.subr.mxu0 %v3353
        %3759 = vmatpush1.msra.mxu0 %v3352
        %3760 = vmatprep.subr.mxu0 %v3357
        %3761 = vmatpush1.msra.mxu0 %v3356
        %3762 = vmatprep.subr.mxu0 %v3361
        %3763 = vmatpush1.msra.mxu0 %v3360
        %3764 = vmatprep.subr.mxu0 %v3365
        %3765 = vmatpush1.msra.mxu0 %v3364
        %3766 = vmatprep.subr.mxu0 %v3369
        %3767 = vmatpush1.msra.mxu0 %v3368
        %3768 = vmatprep.subr.mxu0 %v3373
        %3769 = vmatpush1.msra.mxu0 %v3372
        %3770 = vmatprep.subr.mxu0 %v3377
        %3771 = vmatpush1.msra.mxu0 %v3376
        %3772 = vmatprep.subr.mxu0 %v3381
        %3773 = vmatpush1.msra.mxu0 %v3380
        %3774 = vmatprep.subr.mxu0 %v3385
        %3775 = vmatpush1.msra.mxu0 %v3384
        %3776 = vmatprep.subr.mxu0 %v3389
        %3777 = vmatpush1.msra.mxu0 %v3388
        %3778 = vmatprep.subr.mxu0 %v3393
        %3779 = vmatpush1.msra.mxu0 %v3392
        %3780 = vmatprep.subr.mxu0 %v3397
        %3781 = vmatpush1.msra.mxu0 %v3396
        %3782 = vmatprep.subr.mxu0 %v3401
        %3783 = vmatpush1.msra.mxu0 %v3400
        %3784 = vmatprep.subr.mxu0 %v3405
        %3785 = vmatpush1.msra.mxu0 %v3404
        %3786 = vmatprep.subr.mxu0 %v3409
        %3787 = vmatpush1.msra.mxu0 %v3408
        %3788 = vmatprep.subr.mxu0 %v3413
        %3789 = vmatpush1.msra.mxu0 %v3412
        %3790 = vmatprep.subr.mxu0 %v3417
        %3791 = vmatpush1.msra.mxu0 %v3416
        %3792 = vmatprep.subr.mxu0 %v3421
        %3793 = vmatpush1.msra.mxu0 %v3420
        %3794 = vmatprep.subr.mxu0 %v3425
        %3795 = vmatpush1.msra.mxu0 %v3424
        %3796 = vmatprep.subr.mxu0 %v3429
        %3797 = vmatpush1.msra.mxu0 %v3428
        %3798 = vmatprep.subr.mxu0 %v3433
        %3799 = vmatpush1.msra.mxu0 %v3432
        %3800 = vmatprep.subr.mxu0 %v3437
        %3801 = vmatpush1.msra.mxu0 %v3436
        %3802 = vmatprep.subr.mxu0 %v3441
        %3803 = vmatpush1.msra.mxu0 %v3440
        %3804 = vmatprep.subr.mxu0 %v3445
        %3805 = vmatpush1.msra.mxu0 %v3444
        %3806 = vmatprep.subr.mxu0 %v3449
        %3807 = vmatpush1.msra.mxu0 %v3448
        %3808 = vmatprep.subr.mxu0 %v3453
        %3809 = vmatpush1.msra.mxu0 %v3452
        %3810 = vmatprep.mubr.f32.mxu0 %v3323
        %3811 = vmatmul.mubr.f32.gmra.mrb[0].mxu0 %v3322
        %v3812 = vpop.f32.mrb[0].mxu0
        %v3813 = vadd.f32 %v3595, %v3812
        %v3814 = vpop.f32.mrb[0].mxu0
        %v3815 = vadd.f32 %v3599, %v3814
        %3816 = vdwg.mxu0
        %3817 = vmatprep.subr.mxu0 %v3457
        %3818 = vmatpush1.msra.mxu0 %v3456
        %3819 = vmatprep.subr.mxu0 %v3461
        %3820 = vmatpush1.msra.mxu0 %v3460
        %3821 = vmatprep.subr.mxu0 %v3465
        %3822 = vmatpush1.msra.mxu0 %v3464
        %3823 = vmatprep.subr.mxu0 %v3469
        %3824 = vmatpush1.msra.mxu0 %v3468
        %3825 = vmatprep.subr.mxu0 %v3473
        %3826 = vmatpush1.msra.mxu0 %v3472
        %3827 = vmatprep.subr.mxu0 %v3477
        %3828 = vmatpush1.msra.mxu0 %v3476
        %3829 = vmatprep.subr.mxu0 %v3481
        %3830 = vmatpush1.msra.mxu0 %v3480
        %3831 = vmatprep.subr.mxu0 %v3485
        %3832 = vmatpush1.msra.mxu0 %v3484
        %3833 = vmatprep.subr.mxu0 %v3489
        %3834 = vmatpush1.msra.mxu0 %v3488
        %3835 = vmatprep.subr.mxu0 %v3493
        %3836 = vmatpush1.msra.mxu0 %v3492
        %3837 = vmatprep.subr.mxu0 %v3497
        %3838 = vmatpush1.msra.mxu0 %v3496
        %3839 = vmatprep.subr.mxu0 %v3501
        %3840 = vmatpush1.msra.mxu0 %v3500
        %3841 = vmatprep.subr.mxu0 %v3505
        %3842 = vmatpush1.msra.mxu0 %v3504
        %3843 = vmatprep.subr.mxu0 %v3509
        %3844 = vmatpush1.msra.mxu0 %v3508
        %3845 = vmatprep.subr.mxu0 %v3513
        %3846 = vmatpush1.msra.mxu0 %v3512
        %3847 = vmatprep.subr.mxu0 %v3517
        %3848 = vmatpush1.msra.mxu0 %v3516
        %3849 = vmatprep.subr.mxu0 %v3521
        %3850 = vmatpush1.msra.mxu0 %v3520
        %3851 = vmatprep.subr.mxu0 %v3525
        %3852 = vmatpush1.msra.mxu0 %v3524
        %3853 = vmatprep.subr.mxu0 %v3529
        %3854 = vmatpush1.msra.mxu0 %v3528
        %3855 = vmatprep.subr.mxu0 %v3533
        %3856 = vmatpush1.msra.mxu0 %v3532
        %3857 = vmatprep.subr.mxu0 %v3537
        %3858 = vmatpush1.msra.mxu0 %v3536
        %3859 = vmatprep.subr.mxu0 %v3541
        %3860 = vmatpush1.msra.mxu0 %v3540
        %3861 = vmatprep.subr.mxu0 %v3545
        %3862 = vmatpush1.msra.mxu0 %v3544
        %3863 = vmatprep.subr.mxu0 %v3549
        %3864 = vmatpush1.msra.mxu0 %v3548
        %3865 = vmatprep.subr.mxu0 %v3553
        %3866 = vmatpush1.msra.mxu0 %v3552
        %3867 = vmatprep.subr.mxu0 %v3557
        %3868 = vmatpush1.msra.mxu0 %v3556
        %3869 = vmatprep.subr.mxu0 %v3561
        %3870 = vmatpush1.msra.mxu0 %v3560
        %3871 = vmatprep.subr.mxu0 %v3565
        %3872 = vmatpush1.msra.mxu0 %v3564
        %3873 = vmatprep.subr.mxu0 %v3569
        %3874 = vmatpush1.msra.mxu0 %v3568
        %3875 = vmatprep.subr.mxu0 %v3573
        %3876 = vmatpush1.msra.mxu0 %v3572
        %3877 = vmatprep.subr.mxu0 %v3577
        %3878 = vmatpush1.msra.mxu0 %v3576
        %3879 = vmatprep.subr.mxu0 %v3581
        %3880 = vmatpush1.msra.mxu0 %v3580
        %3881 = vmatprep.mubr.f32.mxu0 %v3325
        %3882 = vmatmul.mubr.f32.gmra.mrb[0].mxu0 %v3324
        %v3883 = vpop.f32.mrb[0].mxu0
        %v3884 = vadd.f32 %v3813, %v3883
        %v3885 = vpop.f32.mrb[0].mxu0
        %v3886 = vadd.f32 %v3815, %v3885
        %3887 = vdwg.mxu0
        %vm3888 = vcmp.gt.f32.partialorder %v3742, 0.0
        %vm3889 = vcmp.gt.f32.partialorder %v3744, 0.0
        %vm3890 = vcmp.gt.f32.partialorder %v3884, 0.0
        %vm3891 = vcmp.gt.f32.partialorder %v3886, 0.0
        %v3892 = vmul.f32 %v3742, 0.01
        %v3893 = vmul.f32 %v3744, 0.01
        %v3894 = vmul.f32 %v3884, 0.01
        %v3895 = vmul.f32 %v3886, 0.01
        %v3896 = vsel %vm3888, %v3742, %v3892
        %v3897 = vsel %vm3889, %v3744, %v3893
        %v3898 = vsel %vm3890, %v3884, %v3894
        %v3899 = vsel %vm3891, %v3886, %v3895
        %v3900 = vld [vmem:[%s15] sm:$0xff]
        %v3901 = vld [vmem:[%s15 + $0x8] sm:$0xff]
        %v3902 = vld [vmem:[%s15 + $0x10] sm:$0xff]
        %v3903 = vld [vmem:[%s15 + $0x18] sm:$0xff]
        %v3904 = vld [vmem:[%s15 + $0x20] sm:$0xff]
        %v3905 = vld [vmem:[%s15 + $0x28] sm:$0xff]
        %v3906 = vld [vmem:[%s15 + $0x30] sm:$0xff]
        %v3907 = vld [vmem:[%s15 + $0x38] sm:$0xff]
        %v3908 = vld [vmem:[%s15 + $0x40] sm:$0xff]
        %v3909 = vld [vmem:[%s15 + $0x48] sm:$0xff]
        %v3910 = vld [vmem:[%s15 + $0x50] sm:$0xff]
        %v3911 = vld [vmem:[%s15 + $0x58] sm:$0xff]
        %v3912 = vld [vmem:[%s15 + $0x60] sm:$0xff]
        %v3913 = vld [vmem:[%s15 + $0x68] sm:$0xff]
        %v3914 = vld [vmem:[%s15 + $0x70] sm:$0xff]
        %v3915 = vld [vmem:[%s15 + $0x78] sm:$0xff]
        %v3916 = vld [vmem:[%s15 + $0x80] sm:$0xff]
        %v3917 = vld [vmem:[%s15 + $0x88] sm:$0xff]
        %v3918 = vld [vmem:[%s15 + $0x90] sm:$0xff]
        %v3919 = vld [vmem:[%s15 + $0x98] sm:$0xff]
        %v3920 = vld [vmem:[%s15 + $0xa0] sm:$0xff]
        %v3921 = vld [vmem:[%s15 + $0xa8] sm:$0xff]
        %v3922 = vld [vmem:[%s15 + $0xb0] sm:$0xff]
        %v3923 = vld [vmem:[%s15 + $0xb8] sm:$0xff]
        %v3924 = vld [vmem:[%s15 + $0xc0] sm:$0xff]
        %v3925 = vld [vmem:[%s15 + $0xc8] sm:$0xff]
        %v3926 = vld [vmem:[%s15 + $0xd0] sm:$0xff]
        %v3927 = vld [vmem:[%s15 + $0xd8] sm:$0xff]
        %v3928 = vld [vmem:[%s15 + $0xe0] sm:$0xff]
        %v3929 = vld [vmem:[%s15 + $0xe8] sm:$0xff]
        %v3930 = vld [vmem:[%s15 + $0xf0] sm:$0xff]
        %v3931 = vld [vmem:[%s15 + $0xf8] sm:$0xff]
        %v3932 = vld [vmem:[%s15 + $0x100] sm:$0xff]
        %v3933 = vld [vmem:[%s15 + $0x108] sm:$0xff]
        %v3934 = vld [vmem:[%s15 + $0x110] sm:$0xff]
        %v3935 = vld [vmem:[%s15 + $0x118] sm:$0xff]
        %v3936 = vld [vmem:[%s15 + $0x120] sm:$0xff]
        %v3937 = vld [vmem:[%s15 + $0x128] sm:$0xff]
        %v3938 = vld [vmem:[%s15 + $0x130] sm:$0xff]
        %v3939 = vld [vmem:[%s15 + $0x138] sm:$0xff]
        %v3940 = vld [vmem:[%s15 + $0x140] sm:$0xff]
        %v3941 = vld [vmem:[%s15 + $0x148] sm:$0xff]
        %v3942 = vld [vmem:[%s15 + $0x150] sm:$0xff]
        %v3943 = vld [vmem:[%s15 + $0x158] sm:$0xff]
        %v3944 = vld [vmem:[%s15 + $0x160] sm:$0xff]
        %v3945 = vld [vmem:[%s15 + $0x168] sm:$0xff]
        %v3946 = vld [vmem:[%s15 + $0x170] sm:$0xff]
        %v3947 = vld [vmem:[%s15 + $0x178] sm:$0xff]
        %v3948 = vld [vmem:[%s15 + $0x180] sm:$0xff]
        %v3949 = vld [vmem:[%s15 + $0x188] sm:$0xff]
        %v3950 = vld [vmem:[%s15 + $0x190] sm:$0xff]
        %v3951 = vld [vmem:[%s15 + $0x198] sm:$0xff]
        %v3952 = vld [vmem:[%s15 + $0x1a0] sm:$0xff]
        %v3953 = vld [vmem:[%s15 + $0x1a8] sm:$0xff]
        %v3954 = vld [vmem:[%s15 + $0x1b0] sm:$0xff]
        %v3955 = vld [vmem:[%s15 + $0x1b8] sm:$0xff]
        %v3956 = vld [vmem:[%s15 + $0x1c0] sm:$0xff]
        %v3957 = vld [vmem:[%s15 + $0x1c8] sm:$0xff]
        %v3958 = vld [vmem:[%s15 + $0x1d0] sm:$0xff]
        %v3959 = vld [vmem:[%s15 + $0x1d8] sm:$0xff]
        %v3960 = vld [vmem:[%s15 + $0x1e0] sm:$0xff]
        %v3961 = vld [vmem:[%s15 + $0x1e8] sm:$0xff]
        %v3962 = vld [vmem:[%s15 + $0x1f0] sm:$0xff]
        %v3963 = vld [vmem:[%s15 + $0x1f8] sm:$0xff]
        %v3964 = vld [vmem:[%s16] sm:$0x1]
        %v3966 = vlaneseq
        %v3967 = vshrl.u32 %v3966, 7
        %v3968 = vsub.s32 0, %v3967
        %v3969 = vrot.slane %v3964, %v3968
        %3971 = vmatprep.subr.mxu0 0.0
        %3972 = vmatpush1.msra.mxu0 %v3900
        %3973 = vmatprep.subr.mxu0 0.0
        %3974 = vmatpush1.msra.mxu0 %v3901
        %3975 = vmatprep.subr.mxu0 0.0
        %3976 = vmatpush1.msra.mxu0 %v3902
        %3977 = vmatprep.subr.mxu0 0.0
        %3978 = vmatpush1.msra.mxu0 %v3903
        %3979 = vmatprep.subr.mxu0 0.0
        %3980 = vmatpush1.msra.mxu0 %v3904
        %3981 = vmatprep.subr.mxu0 0.0
        %3982 = vmatpush1.msra.mxu0 %v3905
        %3983 = vmatprep.subr.mxu0 0.0
        %3984 = vmatpush1.msra.mxu0 %v3906
        %3985 = vmatprep.subr.mxu0 0.0
        %3986 = vmatpush1.msra.mxu0 %v3907
        %3987 = vmatprep.subr.mxu0 0.0
        %3988 = vmatpush1.msra.mxu0 %v3908
        %3989 = vmatprep.subr.mxu0 0.0
        %3990 = vmatpush1.msra.mxu0 %v3909
        %3991 = vmatprep.subr.mxu0 0.0
        %3992 = vmatpush1.msra.mxu0 %v3910
        %3993 = vmatprep.subr.mxu0 0.0
        %3994 = vmatpush1.msra.mxu0 %v3911
        %3995 = vmatprep.subr.mxu0 0.0
        %3996 = vmatpush1.msra.mxu0 %v3912
        %3997 = vmatprep.subr.mxu0 0.0
        %3998 = vmatpush1.msra.mxu0 %v3913
        %3999 = vmatprep.subr.mxu0 0.0
        %4000 = vmatpush1.msra.mxu0 %v3914
        %4001 = vmatprep.subr.mxu0 0.0
        %4002 = vmatpush1.msra.mxu0 %v3915
        %4003 = vmatprep.subr.mxu0 0.0
        %4004 = vmatpush1.msra.mxu0 %v3916
        %4005 = vmatprep.subr.mxu0 0.0
        %4006 = vmatpush1.msra.mxu0 %v3917
        %4007 = vmatprep.subr.mxu0 0.0
        %4008 = vmatpush1.msra.mxu0 %v3918
        %4009 = vmatprep.subr.mxu0 0.0
        %4010 = vmatpush1.msra.mxu0 %v3919
        %4011 = vmatprep.subr.mxu0 0.0
        %4012 = vmatpush1.msra.mxu0 %v3920
        %4013 = vmatprep.subr.mxu0 0.0
        %4014 = vmatpush1.msra.mxu0 %v3921
        %4015 = vmatprep.subr.mxu0 0.0
        %4016 = vmatpush1.msra.mxu0 %v3922
        %4017 = vmatprep.subr.mxu0 0.0
        %4018 = vmatpush1.msra.mxu0 %v3923
        %4019 = vmatprep.subr.mxu0 0.0
        %4020 = vmatpush1.msra.mxu0 %v3924
        %4021 = vmatprep.subr.mxu0 0.0
        %4022 = vmatpush1.msra.mxu0 %v3925
        %4023 = vmatprep.subr.mxu0 0.0
        %4024 = vmatpush1.msra.mxu0 %v3926
        %4025 = vmatprep.subr.mxu0 0.0
        %4026 = vmatpush1.msra.mxu0 %v3927
        %4027 = vmatprep.subr.mxu0 0.0
        %4028 = vmatpush1.msra.mxu0 %v3928
        %4029 = vmatprep.subr.mxu0 0.0
        %4030 = vmatpush1.msra.mxu0 %v3929
        %4031 = vmatprep.subr.mxu0 0.0
        %4032 = vmatpush1.msra.mxu0 %v3930
        %4033 = vmatprep.subr.mxu0 0.0
        %4034 = vmatpush1.msra.mxu0 %v3931
        %4035 = vmatprep.mubr.f32.mxu0 %v3897
        %4036 = vmatmul.mubr.f32.gmra.mrb[0].mxu0 %v3896
        %v4037 = vpop.f32.mrb[0].mxu0
        %v4038 = vadd.f32 %v3969, %v4037
        %v4039 = vpop.f32.mrb[0].mxu0
        %4040 = vdwg.mxu0
        %4041 = vmatprep.subr.mxu0 0.0
        %4042 = vmatpush1.msra.mxu0 %v3932
        %4043 = vmatprep.subr.mxu0 0.0
        %4044 = vmatpush1.msra.mxu0 %v3933
        %4045 = vmatprep.subr.mxu0 0.0
        %4046 = vmatpush1.msra.mxu0 %v3934
        %4047 = vmatprep.subr.mxu0 0.0
        %4048 = vmatpush1.msra.mxu0 %v3935
        %4049 = vmatprep.subr.mxu0 0.0
        %4050 = vmatpush1.msra.mxu0 %v3936
        %4051 = vmatprep.subr.mxu0 0.0
        %4052 = vmatpush1.msra.mxu0 %v3937
        %4053 = vmatprep.subr.mxu0 0.0
        %4054 = vmatpush1.msra.mxu0 %v3938
        %4055 = vmatprep.subr.mxu0 0.0
        %4056 = vmatpush1.msra.mxu0 %v3939
        %4057 = vmatprep.subr.mxu0 0.0
        %4058 = vmatpush1.msra.mxu0 %v3940
        %4059 = vmatprep.subr.mxu0 0.0
        %4060 = vmatpush1.msra.mxu0 %v3941
        %4061 = vmatprep.subr.mxu0 0.0
        %4062 = vmatpush1.msra.mxu0 %v3942
        %4063 = vmatprep.subr.mxu0 0.0
        %4064 = vmatpush1.msra.mxu0 %v3943
        %4065 = vmatprep.subr.mxu0 0.0
        %4066 = vmatpush1.msra.mxu0 %v3944
        %4067 = vmatprep.subr.mxu0 0.0
        %4068 = vmatpush1.msra.mxu0 %v3945
        %4069 = vmatprep.subr.mxu0 0.0
        %4070 = vmatpush1.msra.mxu0 %v3946
        %4071 = vmatprep.subr.mxu0 0.0
        %4072 = vmatpush1.msra.mxu0 %v3947
        %4073 = vmatprep.subr.mxu0 0.0
        %4074 = vmatpush1.msra.mxu0 %v3948
        %4075 = vmatprep.subr.mxu0 0.0
        %4076 = vmatpush1.msra.mxu0 %v3949
        %4077 = vmatprep.subr.mxu0 0.0
        %4078 = vmatpush1.msra.mxu0 %v3950
        %4079 = vmatprep.subr.mxu0 0.0
        %4080 = vmatpush1.msra.mxu0 %v3951
        %4081 = vmatprep.subr.mxu0 0.0
        %4082 = vmatpush1.msra.mxu0 %v3952
        %4083 = vmatprep.subr.mxu0 0.0
        %4084 = vmatpush1.msra.mxu0 %v3953
        %4085 = vmatprep.subr.mxu0 0.0
        %4086 = vmatpush1.msra.mxu0 %v3954
        %4087 = vmatprep.subr.mxu0 0.0
        %4088 = vmatpush1.msra.mxu0 %v3955
        %4089 = vmatprep.subr.mxu0 0.0
        %4090 = vmatpush1.msra.mxu0 %v3956
        %4091 = vmatprep.subr.mxu0 0.0
        %4092 = vmatpush1.msra.mxu0 %v3957
        %4093 = vmatprep.subr.mxu0 0.0
        %4094 = vmatpush1.msra.mxu0 %v3958
        %4095 = vmatprep.subr.mxu0 0.0
        %4096 = vmatpush1.msra.mxu0 %v3959
        %4097 = vmatprep.subr.mxu0 0.0
        %4098 = vmatpush1.msra.mxu0 %v3960
        %4099 = vmatprep.subr.mxu0 0.0
        %4100 = vmatpush1.msra.mxu0 %v3961
        %4101 = vmatprep.subr.mxu0 0.0
        %4102 = vmatpush1.msra.mxu0 %v3962
        %4103 = vmatprep.subr.mxu0 0.0
        %4104 = vmatpush1.msra.mxu0 %v3963
        %4105 = vmatprep.mubr.f32.mxu0 %v3899
        %4106 = vmatmul.mubr.f32.gmra.mrb[0].mxu0 %v3898
        %v4107 = vpop.f32.mrb[0].mxu0
        %v4108 = vadd.f32 %v4038, %v4107
        %v4109 = vpop.f32.mrb[0].mxu0
        %4110 = vdwg.mxu0
        %4111 = vst [vmem:[%s709] sm:$0xff] %v4108
        %v4112 = vld [vmem:[%s17] sm:$0xff]
        %v4113 = vld [vmem:[%s17 + $0x8] sm:$0xff]
        %v4114 = vld [vmem:[%s17 + $0x10] sm:$0xff]
        %v4115 = vld [vmem:[%s17 + $0x18] sm:$0xff]
        %v4116 = vld [vmem:[%s17 + $0x20] sm:$0xff]
        %v4117 = vld [vmem:[%s17 + $0x28] sm:$0xff]
        %v4118 = vld [vmem:[%s17 + $0x30] sm:$0xff]
        %v4119 = vld [vmem:[%s17 + $0x38] sm:$0xff]
        %v4120 = vld [vmem:[%s17 + $0x40] sm:$0xff]
        %v4121 = vld [vmem:[%s17 + $0x48] sm:$0xff]
        %v4122 = vld [vmem:[%s17 + $0x50] sm:$0xff]
        %v4123 = vld [vmem:[%s17 + $0x58] sm:$0xff]
        %v4124 = vld [vmem:[%s17 + $0x60] sm:$0xff]
        %v4125 = vld [vmem:[%s17 + $0x68] sm:$0xff]
        %v4126 = vld [vmem:[%s17 + $0x70] sm:$0xff]
        %v4127 = vld [vmem:[%s17 + $0x78] sm:$0xff]
        %v4128 = vld [vmem:[%s17 + $0x80] sm:$0xff]
        %v4129 = vld [vmem:[%s17 + $0x88] sm:$0xff]
        %v4130 = vld [vmem:[%s17 + $0x90] sm:$0xff]
        %v4131 = vld [vmem:[%s17 + $0x98] sm:$0xff]
        %v4132 = vld [vmem:[%s17 + $0xa0] sm:$0xff]
        %v4133 = vld [vmem:[%s17 + $0xa8] sm:$0xff]
        %v4134 = vld [vmem:[%s17 + $0xb0] sm:$0xff]
        %v4135 = vld [vmem:[%s17 + $0xb8] sm:$0xff]
        %v4136 = vld [vmem:[%s17 + $0xc0] sm:$0xff]
        %v4137 = vld [vmem:[%s17 + $0xc8] sm:$0xff]
        %v4138 = vld [vmem:[%s17 + $0xd0] sm:$0xff]
        %v4139 = vld [vmem:[%s17 + $0xd8] sm:$0xff]
        %v4140 = vld [vmem:[%s17 + $0xe0] sm:$0xff]
        %v4141 = vld [vmem:[%s17 + $0xe8] sm:$0xff]
        %v4142 = vld [vmem:[%s17 + $0xf0] sm:$0xff]
        %v4143 = vld [vmem:[%s17 + $0xf8] sm:$0xff]
        %v4144 = vld [vmem:[%s17 + $0x100] sm:$0xff]
        %v4145 = vld [vmem:[%s17 + $0x108] sm:$0xff]
        %v4146 = vld [vmem:[%s17 + $0x110] sm:$0xff]
        %v4147 = vld [vmem:[%s17 + $0x118] sm:$0xff]
        %v4148 = vld [vmem:[%s17 + $0x120] sm:$0xff]
        %v4149 = vld [vmem:[%s17 + $0x128] sm:$0xff]
        %v4150 = vld [vmem:[%s17 + $0x130] sm:$0xff]
        %v4151 = vld [vmem:[%s17 + $0x138] sm:$0xff]
        %v4152 = vld [vmem:[%s17 + $0x140] sm:$0xff]
        %v4153 = vld [vmem:[%s17 + $0x148] sm:$0xff]
        %v4154 = vld [vmem:[%s17 + $0x150] sm:$0xff]
        %v4155 = vld [vmem:[%s17 + $0x158] sm:$0xff]
        %v4156 = vld [vmem:[%s17 + $0x160] sm:$0xff]
        %v4157 = vld [vmem:[%s17 + $0x168] sm:$0xff]
        %v4158 = vld [vmem:[%s17 + $0x170] sm:$0xff]
        %v4159 = vld [vmem:[%s17 + $0x178] sm:$0xff]
        %v4160 = vld [vmem:[%s17 + $0x180] sm:$0xff]
        %v4161 = vld [vmem:[%s17 + $0x188] sm:$0xff]
        %v4162 = vld [vmem:[%s17 + $0x190] sm:$0xff]
        %v4163 = vld [vmem:[%s17 + $0x198] sm:$0xff]
        %v4164 = vld [vmem:[%s17 + $0x1a0] sm:$0xff]
        %v4165 = vld [vmem:[%s17 + $0x1a8] sm:$0xff]
        %v4166 = vld [vmem:[%s17 + $0x1b0] sm:$0xff]
        %v4167 = vld [vmem:[%s17 + $0x1b8] sm:$0xff]
        %v4168 = vld [vmem:[%s17 + $0x1c0] sm:$0xff]
        %v4169 = vld [vmem:[%s17 + $0x1c8] sm:$0xff]
        %v4170 = vld [vmem:[%s17 + $0x1d0] sm:$0xff]
        %v4171 = vld [vmem:[%s17 + $0x1d8] sm:$0xff]
        %v4172 = vld [vmem:[%s17 + $0x1e0] sm:$0xff]
        %v4173 = vld [vmem:[%s17 + $0x1e8] sm:$0xff]
        %v4174 = vld [vmem:[%s17 + $0x1f0] sm:$0xff]
        %v4175 = vld [vmem:[%s17 + $0x1f8] sm:$0xff]
        %v4176 = vld [vmem:[%s17 + $0x200] sm:$0xff]
        %v4177 = vld [vmem:[%s17 + $0x208] sm:$0xff]
        %v4178 = vld [vmem:[%s17 + $0x210] sm:$0xff]
        %v4179 = vld [vmem:[%s17 + $0x218] sm:$0xff]
        %v4180 = vld [vmem:[%s17 + $0x220] sm:$0xff]
        %v4181 = vld [vmem:[%s17 + $0x228] sm:$0xff]
        %v4182 = vld [vmem:[%s17 + $0x230] sm:$0xff]
        %v4183 = vld [vmem:[%s17 + $0x238] sm:$0xff]
        %v4184 = vld [vmem:[%s17 + $0x240] sm:$0xff]
        %v4185 = vld [vmem:[%s17 + $0x248] sm:$0xff]
        %v4186 = vld [vmem:[%s17 + $0x250] sm:$0xff]
        %v4187 = vld [vmem:[%s17 + $0x258] sm:$0xff]
        %v4188 = vld [vmem:[%s17 + $0x260] sm:$0xff]
        %v4189 = vld [vmem:[%s17 + $0x268] sm:$0xff]
        %v4190 = vld [vmem:[%s17 + $0x270] sm:$0xff]
        %v4191 = vld [vmem:[%s17 + $0x278] sm:$0xff]
        %v4192 = vld [vmem:[%s17 + $0x280] sm:$0xff]
        %v4193 = vld [vmem:[%s17 + $0x288] sm:$0xff]
        %v4194 = vld [vmem:[%s17 + $0x290] sm:$0xff]
        %v4195 = vld [vmem:[%s17 + $0x298] sm:$0xff]
        %v4196 = vld [vmem:[%s17 + $0x2a0] sm:$0xff]
        %v4197 = vld [vmem:[%s17 + $0x2a8] sm:$0xff]
        %v4198 = vld [vmem:[%s17 + $0x2b0] sm:$0xff]
        %v4199 = vld [vmem:[%s17 + $0x2b8] sm:$0xff]
        %v4200 = vld [vmem:[%s17 + $0x2c0] sm:$0xff]
        %v4201 = vld [vmem:[%s17 + $0x2c8] sm:$0xff]
        %v4202 = vld [vmem:[%s17 + $0x2d0] sm:$0xff]
        %v4203 = vld [vmem:[%s17 + $0x2d8] sm:$0xff]
        %v4204 = vld [vmem:[%s17 + $0x2e0] sm:$0xff]
        %v4205 = vld [vmem:[%s17 + $0x2e8] sm:$0xff]
        %v4206 = vld [vmem:[%s17 + $0x2f0] sm:$0xff]
        %v4207 = vld [vmem:[%s17 + $0x2f8] sm:$0xff]
        %v4208 = vld [vmem:[%s17 + $0x300] sm:$0xff]
        %v4209 = vld [vmem:[%s17 + $0x308] sm:$0xff]
        %v4210 = vld [vmem:[%s17 + $0x310] sm:$0xff]
        %v4211 = vld [vmem:[%s17 + $0x318] sm:$0xff]
        %v4212 = vld [vmem:[%s17 + $0x320] sm:$0xff]
        %v4213 = vld [vmem:[%s17 + $0x328] sm:$0xff]
        %v4214 = vld [vmem:[%s17 + $0x330] sm:$0xff]
        %v4215 = vld [vmem:[%s17 + $0x338] sm:$0xff]
        %v4216 = vld [vmem:[%s17 + $0x340] sm:$0xff]
        %v4217 = vld [vmem:[%s17 + $0x348] sm:$0xff]
        %v4218 = vld [vmem:[%s17 + $0x350] sm:$0xff]
        %v4219 = vld [vmem:[%s17 + $0x358] sm:$0xff]
        %v4220 = vld [vmem:[%s17 + $0x360] sm:$0xff]
        %v4221 = vld [vmem:[%s17 + $0x368] sm:$0xff]
        %v4222 = vld [vmem:[%s17 + $0x370] sm:$0xff]
        %v4223 = vld [vmem:[%s17 + $0x378] sm:$0xff]
        %v4224 = vld [vmem:[%s17 + $0x380] sm:$0xff]
        %v4225 = vld [vmem:[%s17 + $0x388] sm:$0xff]
        %v4226 = vld [vmem:[%s17 + $0x390] sm:$0xff]
        %v4227 = vld [vmem:[%s17 + $0x398] sm:$0xff]
        %v4228 = vld [vmem:[%s17 + $0x3a0] sm:$0xff]
        %v4229 = vld [vmem:[%s17 + $0x3a8] sm:$0xff]
        %v4230 = vld [vmem:[%s17 + $0x3b0] sm:$0xff]
        %v4231 = vld [vmem:[%s17 + $0x3b8] sm:$0xff]
        %v4232 = vld [vmem:[%s17 + $0x3c0] sm:$0xff]
        %v4233 = vld [vmem:[%s17 + $0x3c8] sm:$0xff]
        %v4234 = vld [vmem:[%s17 + $0x3d0] sm:$0xff]
        %v4235 = vld [vmem:[%s17 + $0x3d8] sm:$0xff]
        %v4236 = vld [vmem:[%s17 + $0x3e0] sm:$0xff]
        %v4237 = vld [vmem:[%s17 + $0x3e8] sm:$0xff]
        %v4238 = vld [vmem:[%s17 + $0x3f0] sm:$0xff]
        %v4239 = vld [vmem:[%s17 + $0x3f8] sm:$0xff]
        %v4240 = vld [vmem:[%s17 + $0x400] sm:$0xff]
        %v4241 = vld [vmem:[%s17 + $0x408] sm:$0xff]
        %v4242 = vld [vmem:[%s17 + $0x410] sm:$0xff]
        %v4243 = vld [vmem:[%s17 + $0x418] sm:$0xff]
        %v4244 = vld [vmem:[%s17 + $0x420] sm:$0xff]
        %v4245 = vld [vmem:[%s17 + $0x428] sm:$0xff]
        %v4246 = vld [vmem:[%s17 + $0x430] sm:$0xff]
        %v4247 = vld [vmem:[%s17 + $0x438] sm:$0xff]
        %v4248 = vld [vmem:[%s17 + $0x440] sm:$0xff]
        %v4249 = vld [vmem:[%s17 + $0x448] sm:$0xff]
        %v4250 = vld [vmem:[%s17 + $0x450] sm:$0xff]
        %v4251 = vld [vmem:[%s17 + $0x458] sm:$0xff]
        %v4252 = vld [vmem:[%s17 + $0x460] sm:$0xff]
        %v4253 = vld [vmem:[%s17 + $0x468] sm:$0xff]
        %v4254 = vld [vmem:[%s17 + $0x470] sm:$0xff]
        %v4255 = vld [vmem:[%s17 + $0x478] sm:$0xff]
        %v4256 = vld [vmem:[%s17 + $0x480] sm:$0xff]
        %v4257 = vld [vmem:[%s17 + $0x488] sm:$0xff]
        %v4258 = vld [vmem:[%s17 + $0x490] sm:$0xff]
        %v4259 = vld [vmem:[%s17 + $0x498] sm:$0xff]
        %v4260 = vld [vmem:[%s17 + $0x4a0] sm:$0xff]
        %v4261 = vld [vmem:[%s17 + $0x4a8] sm:$0xff]
        %v4262 = vld [vmem:[%s17 + $0x4b0] sm:$0xff]
        %v4263 = vld [vmem:[%s17 + $0x4b8] sm:$0xff]
        %v4264 = vld [vmem:[%s17 + $0x4c0] sm:$0xff]
        %v4265 = vld [vmem:[%s17 + $0x4c8] sm:$0xff]
        %v4266 = vld [vmem:[%s17 + $0x4d0] sm:$0xff]
        %v4267 = vld [vmem:[%s17 + $0x4d8] sm:$0xff]
        %v4268 = vld [vmem:[%s17 + $0x4e0] sm:$0xff]
        %v4269 = vld [vmem:[%s17 + $0x4e8] sm:$0xff]
        %v4270 = vld [vmem:[%s17 + $0x4f0] sm:$0xff]
        %v4271 = vld [vmem:[%s17 + $0x4f8] sm:$0xff]
        %v4272 = vld [vmem:[%s17 + $0x500] sm:$0xff]
        %v4273 = vld [vmem:[%s17 + $0x508] sm:$0xff]
        %v4274 = vld [vmem:[%s17 + $0x510] sm:$0xff]
        %v4275 = vld [vmem:[%s17 + $0x518] sm:$0xff]
        %v4276 = vld [vmem:[%s17 + $0x520] sm:$0xff]
        %v4277 = vld [vmem:[%s17 + $0x528] sm:$0xff]
        %v4278 = vld [vmem:[%s17 + $0x530] sm:$0xff]
        %v4279 = vld [vmem:[%s17 + $0x538] sm:$0xff]
        %v4280 = vld [vmem:[%s17 + $0x540] sm:$0xff]
        %v4281 = vld [vmem:[%s17 + $0x548] sm:$0xff]
        %v4282 = vld [vmem:[%s17 + $0x550] sm:$0xff]
        %v4283 = vld [vmem:[%s17 + $0x558] sm:$0xff]
        %v4284 = vld [vmem:[%s17 + $0x560] sm:$0xff]
        %v4285 = vld [vmem:[%s17 + $0x568] sm:$0xff]
        %v4286 = vld [vmem:[%s17 + $0x570] sm:$0xff]
        %v4287 = vld [vmem:[%s17 + $0x578] sm:$0xff]
        %v4288 = vld [vmem:[%s17 + $0x580] sm:$0xff]
        %v4289 = vld [vmem:[%s17 + $0x588] sm:$0xff]
        %v4290 = vld [vmem:[%s17 + $0x590] sm:$0xff]
        %v4291 = vld [vmem:[%s17 + $0x598] sm:$0xff]
        %v4292 = vld [vmem:[%s17 + $0x5a0] sm:$0xff]
        %v4293 = vld [vmem:[%s17 + $0x5a8] sm:$0xff]
        %v4294 = vld [vmem:[%s17 + $0x5b0] sm:$0xff]
        %v4295 = vld [vmem:[%s17 + $0x5b8] sm:$0xff]
        %v4296 = vld [vmem:[%s17 + $0x5c0] sm:$0xff]
        %v4297 = vld [vmem:[%s17 + $0x5c8] sm:$0xff]
        %v4298 = vld [vmem:[%s17 + $0x5d0] sm:$0xff]
        %v4299 = vld [vmem:[%s17 + $0x5d8] sm:$0xff]
        %v4300 = vld [vmem:[%s17 + $0x5e0] sm:$0xff]
        %v4301 = vld [vmem:[%s17 + $0x5e8] sm:$0xff]
        %v4302 = vld [vmem:[%s17 + $0x5f0] sm:$0xff]
        %v4303 = vld [vmem:[%s17 + $0x5f8] sm:$0xff]
        %v4304 = vld [vmem:[%s17 + $0x600] sm:$0xff]
        %v4305 = vld [vmem:[%s17 + $0x608] sm:$0xff]
        %v4306 = vld [vmem:[%s17 + $0x610] sm:$0xff]
        %v4307 = vld [vmem:[%s17 + $0x618] sm:$0xff]
        %v4308 = vld [vmem:[%s17 + $0x620] sm:$0xff]
        %v4309 = vld [vmem:[%s17 + $0x628] sm:$0xff]
        %v4310 = vld [vmem:[%s17 + $0x630] sm:$0xff]
        %v4311 = vld [vmem:[%s17 + $0x638] sm:$0xff]
        %v4312 = vld [vmem:[%s17 + $0x640] sm:$0xff]
        %v4313 = vld [vmem:[%s17 + $0x648] sm:$0xff]
        %v4314 = vld [vmem:[%s17 + $0x650] sm:$0xff]
        %v4315 = vld [vmem:[%s17 + $0x658] sm:$0xff]
        %v4316 = vld [vmem:[%s17 + $0x660] sm:$0xff]
        %v4317 = vld [vmem:[%s17 + $0x668] sm:$0xff]
        %v4318 = vld [vmem:[%s17 + $0x670] sm:$0xff]
        %v4319 = vld [vmem:[%s17 + $0x678] sm:$0xff]
        %v4320 = vld [vmem:[%s17 + $0x680] sm:$0xff]
        %v4321 = vld [vmem:[%s17 + $0x688] sm:$0xff]
        %v4322 = vld [vmem:[%s17 + $0x690] sm:$0xff]
        %v4323 = vld [vmem:[%s17 + $0x698] sm:$0xff]
        %v4324 = vld [vmem:[%s17 + $0x6a0] sm:$0xff]
        %v4325 = vld [vmem:[%s17 + $0x6a8] sm:$0xff]
        %v4326 = vld [vmem:[%s17 + $0x6b0] sm:$0xff]
        %v4327 = vld [vmem:[%s17 + $0x6b8] sm:$0xff]
        %v4328 = vld [vmem:[%s17 + $0x6c0] sm:$0xff]
        %v4329 = vld [vmem:[%s17 + $0x6c8] sm:$0xff]
        %v4330 = vld [vmem:[%s17 + $0x6d0] sm:$0xff]
        %v4331 = vld [vmem:[%s17 + $0x6d8] sm:$0xff]
        %v4332 = vld [vmem:[%s17 + $0x6e0] sm:$0xff]
        %v4333 = vld [vmem:[%s17 + $0x6e8] sm:$0xff]
        %v4334 = vld [vmem:[%s17 + $0x6f0] sm:$0xff]
        %v4335 = vld [vmem:[%s17 + $0x6f8] sm:$0xff]
        %v4336 = vld [vmem:[%s17 + $0x700] sm:$0xff]
        %v4337 = vld [vmem:[%s17 + $0x708] sm:$0xff]
        %v4338 = vld [vmem:[%s17 + $0x710] sm:$0xff]
        %v4339 = vld [vmem:[%s17 + $0x718] sm:$0xff]
        %v4340 = vld [vmem:[%s17 + $0x720] sm:$0xff]
        %v4341 = vld [vmem:[%s17 + $0x728] sm:$0xff]
        %v4342 = vld [vmem:[%s17 + $0x730] sm:$0xff]
        %v4343 = vld [vmem:[%s17 + $0x738] sm:$0xff]
        %v4344 = vld [vmem:[%s17 + $0x740] sm:$0xff]
        %v4345 = vld [vmem:[%s17 + $0x748] sm:$0xff]
        %v4346 = vld [vmem:[%s17 + $0x750] sm:$0xff]
        %v4347 = vld [vmem:[%s17 + $0x758] sm:$0xff]
        %v4348 = vld [vmem:[%s17 + $0x760] sm:$0xff]
        %v4349 = vld [vmem:[%s17 + $0x768] sm:$0xff]
        %v4350 = vld [vmem:[%s17 + $0x770] sm:$0xff]
        %v4351 = vld [vmem:[%s17 + $0x778] sm:$0xff]
        %v4352 = vld [vmem:[%s17 + $0x780] sm:$0xff]
        %v4353 = vld [vmem:[%s17 + $0x788] sm:$0xff]
        %v4354 = vld [vmem:[%s17 + $0x790] sm:$0xff]
        %v4355 = vld [vmem:[%s17 + $0x798] sm:$0xff]
        %v4356 = vld [vmem:[%s17 + $0x7a0] sm:$0xff]
        %v4357 = vld [vmem:[%s17 + $0x7a8] sm:$0xff]
        %v4358 = vld [vmem:[%s17 + $0x7b0] sm:$0xff]
        %v4359 = vld [vmem:[%s17 + $0x7b8] sm:$0xff]
        %v4360 = vld [vmem:[%s17 + $0x7c0] sm:$0xff]
        %v4361 = vld [vmem:[%s17 + $0x7c8] sm:$0xff]
        %v4362 = vld [vmem:[%s17 + $0x7d0] sm:$0xff]
        %v4363 = vld [vmem:[%s17 + $0x7d8] sm:$0xff]
        %v4364 = vld [vmem:[%s17 + $0x7e0] sm:$0xff]
        %v4365 = vld [vmem:[%s17 + $0x7e8] sm:$0xff]
        %v4366 = vld [vmem:[%s17 + $0x7f0] sm:$0xff]
        %v4367 = vld [vmem:[%s17 + $0x7f8] sm:$0xff]
        %v4368 = vld [vmem:[%s18] sm:$0xf]
        %v4370 = vlaneseq
        %v4371 = vshrl.u32 %v4370, 7
        %v4372 = vsub.s32 0, %v4371
        %v4373 = vrot.slane %v4368, %v4372
        %v4374 = vlaneseq
        %v4375 = vshrl.u32 %v4374, 7
        %v4376 = vsub.s32 1, %v4375
        %v4377 = vrot.slane %v4368, %v4376
        %v4378 = vlaneseq
        %v4379 = vshrl.u32 %v4378, 7
        %v4380 = vsub.s32 2, %v4379
        %v4381 = vrot.slane %v4368, %v4380
        %v4382 = vlaneseq
        %v4383 = vshrl.u32 %v4382, 7
        %v4384 = vsub.s32 3, %v4383
        %v4385 = vrot.slane %v4368, %v4384
        %4390 = vmatprep.subr.mxu0 %v4113
        %4391 = vmatpush1.msra.mxu0 %v4112
        %4392 = vmatprep.subr.mxu0 %v4117
        %4393 = vmatpush1.msra.mxu0 %v4116
        %4394 = vmatprep.subr.mxu0 %v4121
        %4395 = vmatpush1.msra.mxu0 %v4120
        %4396 = vmatprep.subr.mxu0 %v4125
        %4397 = vmatpush1.msra.mxu0 %v4124
        %4398 = vmatprep.subr.mxu0 %v4129
        %4399 = vmatpush1.msra.mxu0 %v4128
        %4400 = vmatprep.subr.mxu0 %v4133
        %4401 = vmatpush1.msra.mxu0 %v4132
        %4402 = vmatprep.subr.mxu0 %v4137
        %4403 = vmatpush1.msra.mxu0 %v4136
        %4404 = vmatprep.subr.mxu0 %v4141
        %4405 = vmatpush1.msra.mxu0 %v4140
        %4406 = vmatprep.subr.mxu0 %v4145
        %4407 = vmatpush1.msra.mxu0 %v4144
        %4408 = vmatprep.subr.mxu0 %v4149
        %4409 = vmatpush1.msra.mxu0 %v4148
        %4410 = vmatprep.subr.mxu0 %v4153
        %4411 = vmatpush1.msra.mxu0 %v4152
        %4412 = vmatprep.subr.mxu0 %v4157
        %4413 = vmatpush1.msra.mxu0 %v4156
        %4414 = vmatprep.subr.mxu0 %v4161
        %4415 = vmatpush1.msra.mxu0 %v4160
        %4416 = vmatprep.subr.mxu0 %v4165
        %4417 = vmatpush1.msra.mxu0 %v4164
        %4418 = vmatprep.subr.mxu0 %v4169
        %4419 = vmatpush1.msra.mxu0 %v4168
        %4420 = vmatprep.subr.mxu0 %v4173
        %4421 = vmatpush1.msra.mxu0 %v4172
        %4422 = vmatprep.subr.mxu0 %v4177
        %4423 = vmatpush1.msra.mxu0 %v4176
        %4424 = vmatprep.subr.mxu0 %v4181
        %4425 = vmatpush1.msra.mxu0 %v4180
        %4426 = vmatprep.subr.mxu0 %v4185
        %4427 = vmatpush1.msra.mxu0 %v4184
        %4428 = vmatprep.subr.mxu0 %v4189
        %4429 = vmatpush1.msra.mxu0 %v4188
        %4430 = vmatprep.subr.mxu0 %v4193
        %4431 = vmatpush1.msra.mxu0 %v4192
        %4432 = vmatprep.subr.mxu0 %v4197
        %4433 = vmatpush1.msra.mxu0 %v4196
        %4434 = vmatprep.subr.mxu0 %v4201
        %4435 = vmatpush1.msra.mxu0 %v4200
        %4436 = vmatprep.subr.mxu0 %v4205
        %4437 = vmatpush1.msra.mxu0 %v4204
        %4438 = vmatprep.subr.mxu0 %v4209
        %4439 = vmatpush1.msra.mxu0 %v4208
        %4440 = vmatprep.subr.mxu0 %v4213
        %4441 = vmatpush1.msra.mxu0 %v4212
        %4442 = vmatprep.subr.mxu0 %v4217
        %4443 = vmatpush1.msra.mxu0 %v4216
        %4444 = vmatprep.subr.mxu0 %v4221
        %4445 = vmatpush1.msra.mxu0 %v4220
        %4446 = vmatprep.subr.mxu0 %v4225
        %4447 = vmatpush1.msra.mxu0 %v4224
        %4448 = vmatprep.subr.mxu0 %v4229
        %4449 = vmatpush1.msra.mxu0 %v4228
        %4450 = vmatprep.subr.mxu0 %v4233
        %4451 = vmatpush1.msra.mxu0 %v4232
        %4452 = vmatprep.subr.mxu0 %v4237
        %4453 = vmatpush1.msra.mxu0 %v4236
        %4454 = vmatprep.mubr.f32.mxu0 %v3323
        %4455 = vmatmul.mubr.f32.gmra.mrb[0].mxu0 %v3322
        %v4456 = vpop.f32.mrb[0].mxu0
        %v4457 = vadd.f32 %v4373, %v4456
        %v4458 = vpop.f32.mrb[0].mxu0
        %v4459 = vadd.f32 %v4377, %v4458
        %4460 = vdwg.mxu0
        %4461 = vmatprep.subr.mxu0 %v4241
        %4462 = vmatpush1.msra.mxu0 %v4240
        %4463 = vmatprep.subr.mxu0 %v4245
        %4464 = vmatpush1.msra.mxu0 %v4244
        %4465 = vmatprep.subr.mxu0 %v4249
        %4466 = vmatpush1.msra.mxu0 %v4248
        %4467 = vmatprep.subr.mxu0 %v4253
        %4468 = vmatpush1.msra.mxu0 %v4252
        %4469 = vmatprep.subr.mxu0 %v4257
        %4470 = vmatpush1.msra.mxu0 %v4256
        %4471 = vmatprep.subr.mxu0 %v4261
        %4472 = vmatpush1.msra.mxu0 %v4260
        %4473 = vmatprep.subr.mxu0 %v4265
        %4474 = vmatpush1.msra.mxu0 %v4264
        %4475 = vmatprep.subr.mxu0 %v4269
        %4476 = vmatpush1.msra.mxu0 %v4268
        %4477 = vmatprep.subr.mxu0 %v4273
        %4478 = vmatpush1.msra.mxu0 %v4272
        %4479 = vmatprep.subr.mxu0 %v4277
        %4480 = vmatpush1.msra.mxu0 %v4276
        %4481 = vmatprep.subr.mxu0 %v4281
        %4482 = vmatpush1.msra.mxu0 %v4280
        %4483 = vmatprep.subr.mxu0 %v4285
        %4484 = vmatpush1.msra.mxu0 %v4284
        %4485 = vmatprep.subr.mxu0 %v4289
        %4486 = vmatpush1.msra.mxu0 %v4288
        %4487 = vmatprep.subr.mxu0 %v4293
        %4488 = vmatpush1.msra.mxu0 %v4292
        %4489 = vmatprep.subr.mxu0 %v4297
        %4490 = vmatpush1.msra.mxu0 %v4296
        %4491 = vmatprep.subr.mxu0 %v4301
        %4492 = vmatpush1.msra.mxu0 %v4300
        %4493 = vmatprep.subr.mxu0 %v4305
        %4494 = vmatpush1.msra.mxu0 %v4304
        %4495 = vmatprep.subr.mxu0 %v4309
        %4496 = vmatpush1.msra.mxu0 %v4308
        %4497 = vmatprep.subr.mxu0 %v4313
        %4498 = vmatpush1.msra.mxu0 %v4312
        %4499 = vmatprep.subr.mxu0 %v4317
        %4500 = vmatpush1.msra.mxu0 %v4316
        %4501 = vmatprep.subr.mxu0 %v4321
        %4502 = vmatpush1.msra.mxu0 %v4320
        %4503 = vmatprep.subr.mxu0 %v4325
        %4504 = vmatpush1.msra.mxu0 %v4324
        %4505 = vmatprep.subr.mxu0 %v4329
        %4506 = vmatpush1.msra.mxu0 %v4328
        %4507 = vmatprep.subr.mxu0 %v4333
        %4508 = vmatpush1.msra.mxu0 %v4332
        %4509 = vmatprep.subr.mxu0 %v4337
        %4510 = vmatpush1.msra.mxu0 %v4336
        %4511 = vmatprep.subr.mxu0 %v4341
        %4512 = vmatpush1.msra.mxu0 %v4340
        %4513 = vmatprep.subr.mxu0 %v4345
        %4514 = vmatpush1.msra.mxu0 %v4344
        %4515 = vmatprep.subr.mxu0 %v4349
        %4516 = vmatpush1.msra.mxu0 %v4348
        %4517 = vmatprep.subr.mxu0 %v4353
        %4518 = vmatpush1.msra.mxu0 %v4352
        %4519 = vmatprep.subr.mxu0 %v4357
        %4520 = vmatpush1.msra.mxu0 %v4356
        %4521 = vmatprep.subr.mxu0 %v4361
        %4522 = vmatpush1.msra.mxu0 %v4360
        %4523 = vmatprep.subr.mxu0 %v4365
        %4524 = vmatpush1.msra.mxu0 %v4364
        %4525 = vmatprep.mubr.f32.mxu0 %v3325
        %4526 = vmatmul.mubr.f32.gmra.mrb[0].mxu0 %v3324
        %v4527 = vpop.f32.mrb[0].mxu0
        %v4528 = vadd.f32 %v4457, %v4527
        %v4529 = vpop.f32.mrb[0].mxu0
        %v4530 = vadd.f32 %v4459, %v4529
        %4531 = vdwg.mxu0
        %4532 = vmatprep.subr.mxu0 %v4115
        %4533 = vmatpush1.msra.mxu0 %v4114
        %4534 = vmatprep.subr.mxu0 %v4119
        %4535 = vmatpush1.msra.mxu0 %v4118
        %4536 = vmatprep.subr.mxu0 %v4123
        %4537 = vmatpush1.msra.mxu0 %v4122
        %4538 = vmatprep.subr.mxu0 %v4127
        %4539 = vmatpush1.msra.mxu0 %v4126
        %4540 = vmatprep.subr.mxu0 %v4131
        %4541 = vmatpush1.msra.mxu0 %v4130
        %4542 = vmatprep.subr.mxu0 %v4135
        %4543 = vmatpush1.msra.mxu0 %v4134
        %4544 = vmatprep.subr.mxu0 %v4139
        %4545 = vmatpush1.msra.mxu0 %v4138
        %4546 = vmatprep.subr.mxu0 %v4143
        %4547 = vmatpush1.msra.mxu0 %v4142
        %4548 = vmatprep.subr.mxu0 %v4147
        %4549 = vmatpush1.msra.mxu0 %v4146
        %4550 = vmatprep.subr.mxu0 %v4151
        %4551 = vmatpush1.msra.mxu0 %v4150
        %4552 = vmatprep.subr.mxu0 %v4155
        %4553 = vmatpush1.msra.mxu0 %v4154
        %4554 = vmatprep.subr.mxu0 %v4159
        %4555 = vmatpush1.msra.mxu0 %v4158
        %4556 = vmatprep.subr.mxu0 %v4163
        %4557 = vmatpush1.msra.mxu0 %v4162
        %4558 = vmatprep.subr.mxu0 %v4167
        %4559 = vmatpush1.msra.mxu0 %v4166
        %4560 = vmatprep.subr.mxu0 %v4171
        %4561 = vmatpush1.msra.mxu0 %v4170
        %4562 = vmatprep.subr.mxu0 %v4175
        %4563 = vmatpush1.msra.mxu0 %v4174
        %4564 = vmatprep.subr.mxu0 %v4179
        %4565 = vmatpush1.msra.mxu0 %v4178
        %4566 = vmatprep.subr.mxu0 %v4183
        %4567 = vmatpush1.msra.mxu0 %v4182
        %4568 = vmatprep.subr.mxu0 %v4187
        %4569 = vmatpush1.msra.mxu0 %v4186
        %4570 = vmatprep.subr.mxu0 %v4191
        %4571 = vmatpush1.msra.mxu0 %v4190
        %4572 = vmatprep.subr.mxu0 %v4195
        %4573 = vmatpush1.msra.mxu0 %v4194
        %4574 = vmatprep.subr.mxu0 %v4199
        %4575 = vmatpush1.msra.mxu0 %v4198
        %4576 = vmatprep.subr.mxu0 %v4203
        %4577 = vmatpush1.msra.mxu0 %v4202
        %4578 = vmatprep.subr.mxu0 %v4207
        %4579 = vmatpush1.msra.mxu0 %v4206
        %4580 = vmatprep.subr.mxu0 %v4211
        %4581 = vmatpush1.msra.mxu0 %v4210
        %4582 = vmatprep.subr.mxu0 %v4215
        %4583 = vmatpush1.msra.mxu0 %v4214
        %4584 = vmatprep.subr.mxu0 %v4219
        %4585 = vmatpush1.msra.mxu0 %v4218
        %4586 = vmatprep.subr.mxu0 %v4223
        %4587 = vmatpush1.msra.mxu0 %v4222
        %4588 = vmatprep.subr.mxu0 %v4227
        %4589 = vmatpush1.msra.mxu0 %v4226
        %4590 = vmatprep.subr.mxu0 %v4231
        %4591 = vmatpush1.msra.mxu0 %v4230
        %4592 = vmatprep.subr.mxu0 %v4235
        %4593 = vmatpush1.msra.mxu0 %v4234
        %4594 = vmatprep.subr.mxu0 %v4239
        %4595 = vmatpush1.msra.mxu0 %v4238
        %4596 = vmatprep.mubr.f32.mxu0 %v3323
        %4597 = vmatmul.mubr.f32.gmra.mrb[0].mxu0 %v3322
        %v4598 = vpop.f32.mrb[0].mxu0
        %v4599 = vadd.f32 %v4381, %v4598
        %v4600 = vpop.f32.mrb[0].mxu0
        %v4601 = vadd.f32 %v4385, %v4600
        %4602 = vdwg.mxu0
        %4603 = vmatprep.subr.mxu0 %v4243
        %4604 = vmatpush1.msra.mxu0 %v4242
        %4605 = vmatprep.subr.mxu0 %v4247
        %4606 = vmatpush1.msra.mxu0 %v4246
        %4607 = vmatprep.subr.mxu0 %v4251
        %4608 = vmatpush1.msra.mxu0 %v4250
        %4609 = vmatprep.subr.mxu0 %v4255
        %4610 = vmatpush1.msra.mxu0 %v4254
        %4611 = vmatprep.subr.mxu0 %v4259
        %4612 = vmatpush1.msra.mxu0 %v4258
        %4613 = vmatprep.subr.mxu0 %v4263
        %4614 = vmatpush1.msra.mxu0 %v4262
        %4615 = vmatprep.subr.mxu0 %v4267
        %4616 = vmatpush1.msra.mxu0 %v4266
        %4617 = vmatprep.subr.mxu0 %v4271
        %4618 = vmatpush1.msra.mxu0 %v4270
        %4619 = vmatprep.subr.mxu0 %v4275
        %4620 = vmatpush1.msra.mxu0 %v4274
        %4621 = vmatprep.subr.mxu0 %v4279
        %4622 = vmatpush1.msra.mxu0 %v4278
        %4623 = vmatprep.subr.mxu0 %v4283
        %4624 = vmatpush1.msra.mxu0 %v4282
        %4625 = vmatprep.subr.mxu0 %v4287
        %4626 = vmatpush1.msra.mxu0 %v4286
        %4627 = vmatprep.subr.mxu0 %v4291
        %4628 = vmatpush1.msra.mxu0 %v4290
        %4629 = vmatprep.subr.mxu0 %v4295
        %4630 = vmatpush1.msra.mxu0 %v4294
        %4631 = vmatprep.subr.mxu0 %v4299
        %4632 = vmatpush1.msra.mxu0 %v4298
        %4633 = vmatprep.subr.mxu0 %v4303
        %4634 = vmatpush1.msra.mxu0 %v4302
        %4635 = vmatprep.subr.mxu0 %v4307
        %4636 = vmatpush1.msra.mxu0 %v4306
        %4637 = vmatprep.subr.mxu0 %v4311
        %4638 = vmatpush1.msra.mxu0 %v4310
        %4639 = vmatprep.subr.mxu0 %v4315
        %4640 = vmatpush1.msra.mxu0 %v4314
        %4641 = vmatprep.subr.mxu0 %v4319
        %4642 = vmatpush1.msra.mxu0 %v4318
        %4643 = vmatprep.subr.mxu0 %v4323
        %4644 = vmatpush1.msra.mxu0 %v4322
        %4645 = vmatprep.subr.mxu0 %v4327
        %4646 = vmatpush1.msra.mxu0 %v4326
        %4647 = vmatprep.subr.mxu0 %v4331
        %4648 = vmatpush1.msra.mxu0 %v4330
        %4649 = vmatprep.subr.mxu0 %v4335
        %4650 = vmatpush1.msra.mxu0 %v4334
        %4651 = vmatprep.subr.mxu0 %v4339
        %4652 = vmatpush1.msra.mxu0 %v4338
        %4653 = vmatprep.subr.mxu0 %v4343
        %4654 = vmatpush1.msra.mxu0 %v4342
        %4655 = vmatprep.subr.mxu0 %v4347
        %4656 = vmatpush1.msra.mxu0 %v4346
        %4657 = vmatprep.subr.mxu0 %v4351
        %4658 = vmatpush1.msra.mxu0 %v4350
        %4659 = vmatprep.subr.mxu0 %v4355
        %4660 = vmatpush1.msra.mxu0 %v4354
        %4661 = vmatprep.subr.mxu0 %v4359
        %4662 = vmatpush1.msra.mxu0 %v4358
        %4663 = vmatprep.subr.mxu0 %v4363
        %4664 = vmatpush1.msra.mxu0 %v4362
        %4665 = vmatprep.subr.mxu0 %v4367
        %4666 = vmatpush1.msra.mxu0 %v4366
        %4667 = vmatprep.mubr.f32.mxu0 %v3325
        %4668 = vmatmul.mubr.f32.gmra.mrb[0].mxu0 %v3324
        %v4669 = vpop.f32.mrb[0].mxu0
        %v4670 = vadd.f32 %v4599, %v4669
        %v4671 = vpop.f32.mrb[0].mxu0
        %v4672 = vadd.f32 %v4601, %v4671
        %4673 = vdwg.mxu0
        %vm4674 = vcmp.gt.f32.partialorder %v4528, 0.0
        %vm4675 = vcmp.gt.f32.partialorder %v4530, 0.0
        %vm4676 = vcmp.gt.f32.partialorder %v4670, 0.0
        %vm4677 = vcmp.gt.f32.partialorder %v4672, 0.0
        %v4678 = vmul.f32 %v4528, 0.01
        %v4679 = vmul.f32 %v4530, 0.01
        %v4680 = vmul.f32 %v4670, 0.01
        %v4681 = vmul.f32 %v4672, 0.01
        %v4682 = vsel %vm4674, %v4528, %v4678
        %v4683 = vsel %vm4675, %v4530, %v4679
        %v4684 = vsel %vm4676, %v4670, %v4680
        %v4685 = vsel %vm4677, %v4672, %v4681
        %v4686 = vld [vmem:[%s19] sm:$0xff]
        %v4687 = vld [vmem:[%s19 + $0x8] sm:$0xff]
        %v4688 = vld [vmem:[%s19 + $0x10] sm:$0xff]
        %v4689 = vld [vmem:[%s19 + $0x18] sm:$0xff]
        %v4690 = vld [vmem:[%s19 + $0x20] sm:$0xff]
        %v4691 = vld [vmem:[%s19 + $0x28] sm:$0xff]
        %v4692 = vld [vmem:[%s19 + $0x30] sm:$0xff]
        %v4693 = vld [vmem:[%s19 + $0x38] sm:$0xff]
        %v4694 = vld [vmem:[%s19 + $0x40] sm:$0xff]
        %v4695 = vld [vmem:[%s19 + $0x48] sm:$0xff]
        %v4696 = vld [vmem:[%s19 + $0x50] sm:$0xff]
        %v4697 = vld [vmem:[%s19 + $0x58] sm:$0xff]
        %v4698 = vld [vmem:[%s19 + $0x60] sm:$0xff]
        %v4699 = vld [vmem:[%s19 + $0x68] sm:$0xff]
        %v4700 = vld [vmem:[%s19 + $0x70] sm:$0xff]
        %v4701 = vld [vmem:[%s19 + $0x78] sm:$0xff]
        %v4702 = vld [vmem:[%s19 + $0x80] sm:$0xff]
        %v4703 = vld [vmem:[%s19 + $0x88] sm:$0xff]
        %v4704 = vld [vmem:[%s19 + $0x90] sm:$0xff]
        %v4705 = vld [vmem:[%s19 + $0x98] sm:$0xff]
        %v4706 = vld [vmem:[%s19 + $0xa0] sm:$0xff]
        %v4707 = vld [vmem:[%s19 + $0xa8] sm:$0xff]
        %v4708 = vld [vmem:[%s19 + $0xb0] sm:$0xff]
        %v4709 = vld [vmem:[%s19 + $0xb8] sm:$0xff]
        %v4710 = vld [vmem:[%s19 + $0xc0] sm:$0xff]
        %v4711 = vld [vmem:[%s19 + $0xc8] sm:$0xff]
        %v4712 = vld [vmem:[%s19 + $0xd0] sm:$0xff]
        %v4713 = vld [vmem:[%s19 + $0xd8] sm:$0xff]
        %v4714 = vld [vmem:[%s19 + $0xe0] sm:$0xff]
        %v4715 = vld [vmem:[%s19 + $0xe8] sm:$0xff]
        %v4716 = vld [vmem:[%s19 + $0xf0] sm:$0xff]
        %v4717 = vld [vmem:[%s19 + $0xf8] sm:$0xff]
        %v4718 = vld [vmem:[%s19 + $0x100] sm:$0xff]
        %v4719 = vld [vmem:[%s19 + $0x108] sm:$0xff]
        %v4720 = vld [vmem:[%s19 + $0x110] sm:$0xff]
        %v4721 = vld [vmem:[%s19 + $0x118] sm:$0xff]
        %v4722 = vld [vmem:[%s19 + $0x120] sm:$0xff]
        %v4723 = vld [vmem:[%s19 + $0x128] sm:$0xff]
        %v4724 = vld [vmem:[%s19 + $0x130] sm:$0xff]
        %v4725 = vld [vmem:[%s19 + $0x138] sm:$0xff]
        %v4726 = vld [vmem:[%s19 + $0x140] sm:$0xff]
        %v4727 = vld [vmem:[%s19 + $0x148] sm:$0xff]
        %v4728 = vld [vmem:[%s19 + $0x150] sm:$0xff]
        %v4729 = vld [vmem:[%s19 + $0x158] sm:$0xff]
        %v4730 = vld [vmem:[%s19 + $0x160] sm:$0xff]
        %v4731 = vld [vmem:[%s19 + $0x168] sm:$0xff]
        %v4732 = vld [vmem:[%s19 + $0x170] sm:$0xff]
        %v4733 = vld [vmem:[%s19 + $0x178] sm:$0xff]
        %v4734 = vld [vmem:[%s19 + $0x180] sm:$0xff]
        %v4735 = vld [vmem:[%s19 + $0x188] sm:$0xff]
        %v4736 = vld [vmem:[%s19 + $0x190] sm:$0xff]
        %v4737 = vld [vmem:[%s19 + $0x198] sm:$0xff]
        %v4738 = vld [vmem:[%s19 + $0x1a0] sm:$0xff]
        %v4739 = vld [vmem:[%s19 + $0x1a8] sm:$0xff]
        %v4740 = vld [vmem:[%s19 + $0x1b0] sm:$0xff]
        %v4741 = vld [vmem:[%s19 + $0x1b8] sm:$0xff]
        %v4742 = vld [vmem:[%s19 + $0x1c0] sm:$0xff]
        %v4743 = vld [vmem:[%s19 + $0x1c8] sm:$0xff]
        %v4744 = vld [vmem:[%s19 + $0x1d0] sm:$0xff]
        %v4745 = vld [vmem:[%s19 + $0x1d8] sm:$0xff]
        %v4746 = vld [vmem:[%s19 + $0x1e0] sm:$0xff]
        %v4747 = vld [vmem:[%s19 + $0x1e8] sm:$0xff]
        %v4748 = vld [vmem:[%s19 + $0x1f0] sm:$0xff]
        %v4749 = vld [vmem:[%s19 + $0x1f8] sm:$0xff]
        %v4750 = vld [vmem:[%s20] sm:$0x1]
        %v4752 = vlaneseq
        %v4753 = vshrl.u32 %v4752, 7
        %v4754 = vsub.s32 0, %v4753
        %v4755 = vrot.slane %v4750, %v4754
        %4757 = vmatprep.subr.mxu0 0.0
        %4758 = vmatpush1.msra.mxu0 %v4686
        %4759 = vmatprep.subr.mxu0 0.0
        %4760 = vmatpush1.msra.mxu0 %v4687
        %4761 = vmatprep.subr.mxu0 0.0
        %4762 = vmatpush1.msra.mxu0 %v4688
        %4763 = vmatprep.subr.mxu0 0.0
        %4764 = vmatpush1.msra.mxu0 %v4689
        %4765 = vmatprep.subr.mxu0 0.0
        %4766 = vmatpush1.msra.mxu0 %v4690
        %4767 = vmatprep.subr.mxu0 0.0
        %4768 = vmatpush1.msra.mxu0 %v4691
        %4769 = vmatprep.subr.mxu0 0.0
        %4770 = vmatpush1.msra.mxu0 %v4692
        %4771 = vmatprep.subr.mxu0 0.0
        %4772 = vmatpush1.msra.mxu0 %v4693
        %4773 = vmatprep.subr.mxu0 0.0
        %4774 = vmatpush1.msra.mxu0 %v4694
        %4775 = vmatprep.subr.mxu0 0.0
        %4776 = vmatpush1.msra.mxu0 %v4695
        %4777 = vmatprep.subr.mxu0 0.0
        %4778 = vmatpush1.msra.mxu0 %v4696
        %4779 = vmatprep.subr.mxu0 0.0
        %4780 = vmatpush1.msra.mxu0 %v4697
        %4781 = vmatprep.subr.mxu0 0.0
        %4782 = vmatpush1.msra.mxu0 %v4698
        %4783 = vmatprep.subr.mxu0 0.0
        %4784 = vmatpush1.msra.mxu0 %v4699
        %4785 = vmatprep.subr.mxu0 0.0
        %4786 = vmatpush1.msra.mxu0 %v4700
        %4787 = vmatprep.subr.mxu0 0.0
        %4788 = vmatpush1.msra.mxu0 %v4701
        %4789 = vmatprep.subr.mxu0 0.0
        %4790 = vmatpush1.msra.mxu0 %v4702
        %4791 = vmatprep.subr.mxu0 0.0
        %4792 = vmatpush1.msra.mxu0 %v4703
        %4793 = vmatprep.subr.mxu0 0.0
        %4794 = vmatpush1.msra.mxu0 %v4704
        %4795 = vmatprep.subr.mxu0 0.0
        %4796 = vmatpush1.msra.mxu0 %v4705
        %4797 = vmatprep.subr.mxu0 0.0
        %4798 = vmatpush1.msra.mxu0 %v4706
        %4799 = vmatprep.subr.mxu0 0.0
        %4800 = vmatpush1.msra.mxu0 %v4707
        %4801 = vmatprep.subr.mxu0 0.0
        %4802 = vmatpush1.msra.mxu0 %v4708
        %4803 = vmatprep.subr.mxu0 0.0
        %4804 = vmatpush1.msra.mxu0 %v4709
        %4805 = vmatprep.subr.mxu0 0.0
        %4806 = vmatpush1.msra.mxu0 %v4710
        %4807 = vmatprep.subr.mxu0 0.0
        %4808 = vmatpush1.msra.mxu0 %v4711
        %4809 = vmatprep.subr.mxu0 0.0
        %4810 = vmatpush1.msra.mxu0 %v4712
        %4811 = vmatprep.subr.mxu0 0.0
        %4812 = vmatpush1.msra.mxu0 %v4713
        %4813 = vmatprep.subr.mxu0 0.0
        %4814 = vmatpush1.msra.mxu0 %v4714
        %4815 = vmatprep.subr.mxu0 0.0
        %4816 = vmatpush1.msra.mxu0 %v4715
        %4817 = vmatprep.subr.mxu0 0.0
        %4818 = vmatpush1.msra.mxu0 %v4716
        %4819 = vmatprep.subr.mxu0 0.0
        %4820 = vmatpush1.msra.mxu0 %v4717
        %4821 = vmatprep.mubr.f32.mxu0 %v4683
        %4822 = vmatmul.mubr.f32.gmra.mrb[0].mxu0 %v4682
        %v4823 = vpop.f32.mrb[0].mxu0
        %v4824 = vadd.f32 %v4755, %v4823
        %v4825 = vpop.f32.mrb[0].mxu0
        %4826 = vdwg.mxu0
        %4827 = vmatprep.subr.mxu0 0.0
        %4828 = vmatpush1.msra.mxu0 %v4718
        %4829 = vmatprep.subr.mxu0 0.0
        %4830 = vmatpush1.msra.mxu0 %v4719
        %4831 = vmatprep.subr.mxu0 0.0
        %4832 = vmatpush1.msra.mxu0 %v4720
        %4833 = vmatprep.subr.mxu0 0.0
        %4834 = vmatpush1.msra.mxu0 %v4721
        %4835 = vmatprep.subr.mxu0 0.0
        %4836 = vmatpush1.msra.mxu0 %v4722
        %4837 = vmatprep.subr.mxu0 0.0
        %4838 = vmatpush1.msra.mxu0 %v4723
        %4839 = vmatprep.subr.mxu0 0.0
        %4840 = vmatpush1.msra.mxu0 %v4724
        %4841 = vmatprep.subr.mxu0 0.0
        %4842 = vmatpush1.msra.mxu0 %v4725
        %4843 = vmatprep.subr.mxu0 0.0
        %4844 = vmatpush1.msra.mxu0 %v4726
        %4845 = vmatprep.subr.mxu0 0.0
        %4846 = vmatpush1.msra.mxu0 %v4727
        %4847 = vmatprep.subr.mxu0 0.0
        %4848 = vmatpush1.msra.mxu0 %v4728
        %4849 = vmatprep.subr.mxu0 0.0
        %4850 = vmatpush1.msra.mxu0 %v4729
        %4851 = vmatprep.subr.mxu0 0.0
        %4852 = vmatpush1.msra.mxu0 %v4730
        %4853 = vmatprep.subr.mxu0 0.0
        %4854 = vmatpush1.msra.mxu0 %v4731
        %4855 = vmatprep.subr.mxu0 0.0
        %4856 = vmatpush1.msra.mxu0 %v4732
        %4857 = vmatprep.subr.mxu0 0.0
        %4858 = vmatpush1.msra.mxu0 %v4733
        %4859 = vmatprep.subr.mxu0 0.0
        %4860 = vmatpush1.msra.mxu0 %v4734
        %4861 = vmatprep.subr.mxu0 0.0
        %4862 = vmatpush1.msra.mxu0 %v4735
        %4863 = vmatprep.subr.mxu0 0.0
        %4864 = vmatpush1.msra.mxu0 %v4736
        %4865 = vmatprep.subr.mxu0 0.0
        %4866 = vmatpush1.msra.mxu0 %v4737
        %4867 = vmatprep.subr.mxu0 0.0
        %4868 = vmatpush1.msra.mxu0 %v4738
        %4869 = vmatprep.subr.mxu0 0.0
        %4870 = vmatpush1.msra.mxu0 %v4739
        %4871 = vmatprep.subr.mxu0 0.0
        %4872 = vmatpush1.msra.mxu0 %v4740
        %4873 = vmatprep.subr.mxu0 0.0
        %4874 = vmatpush1.msra.mxu0 %v4741
        %4875 = vmatprep.subr.mxu0 0.0
        %4876 = vmatpush1.msra.mxu0 %v4742
        %4877 = vmatprep.subr.mxu0 0.0
        %4878 = vmatpush1.msra.mxu0 %v4743
        %4879 = vmatprep.subr.mxu0 0.0
        %4880 = vmatpush1.msra.mxu0 %v4744
        %4881 = vmatprep.subr.mxu0 0.0
        %4882 = vmatpush1.msra.mxu0 %v4745
        %4883 = vmatprep.subr.mxu0 0.0
        %4884 = vmatpush1.msra.mxu0 %v4746
        %4885 = vmatprep.subr.mxu0 0.0
        %4886 = vmatpush1.msra.mxu0 %v4747
        %4887 = vmatprep.subr.mxu0 0.0
        %4888 = vmatpush1.msra.mxu0 %v4748
        %4889 = vmatprep.subr.mxu0 0.0
        %4890 = vmatpush1.msra.mxu0 %v4749
        %4891 = vmatprep.mubr.f32.mxu0 %v4685
        %4892 = vmatmul.mubr.f32.gmra.mrb[0].mxu0 %v4684
        %v4893 = vpop.f32.mrb[0].mxu0
        %v4894 = vadd.f32 %v4824, %v4893
        %v4895 = vpop.f32.mrb[0].mxu0
        %4896 = vdwg.mxu0
        %4897 = vst [vmem:[%s696] sm:$0xff] %v4894
        %p4898 = scmp.lt.s32.totalorder %s37, 1
        %s4899 = scalar_select %p4898, %s37, 1
        %s4900 = smul.addr %s4899, 8
        %s4901 = scalar_lea.vmem %s21, %s4900
        %s4902 = sand.u32 %s522, 1
        %s4903 = scalar_lea.sflag [#allocation3], %s4902
        %s4904 = sand.u32 %s522, 1
        %s4905 = smul.addr %s4904, 8
        %s4906 = scalar_lea.vmem [#allocation2], %s4905
        // Predicated region
        $region105: #{sag_model_25d_forward.1} parent=103 // pred_check
          %p4907 = pneg %p506
        $region106: #{sag_model_25d_forward.1} parent=103 // pred_check_branch
          %4909 = sbr.rel (%p4907) target = $region108
        $region107: #{sag_model_25d_forward.1} parent=103 // pred_region
          _
        $region108: #{sag_model_25d_forward.1} parent=103 // pred_fallthru
          _
        // Predicated region
        $region109: #{sag_model_25d_forward.1} parent=103 // pred_check
          %p4910 = pneg %p532
        $region110: #{sag_model_25d_forward.1} parent=103 // pred_check_branch
          %4912 = sbr.rel (%p4910) target = $region112
        $region111: #{sag_model_25d_forward.1} parent=103 // pred_region
          %s4914 = ssub.s32 128, 128
          %4915 = vsyncadd %s4903, %s4914
          %s4916 = smul.addr %s37, 128
          %s4917 = scalar_lea.hbm %s22, %s4916
          %s4919 = sshll.u32 %s4906, 4
          %s4920 = int_to_ptr.vmem [resolvable:$true] %s4919
          %4922 = dma.vmem_to_hbm [thread:$0]  %s4920, 128, %s4917, %s4903
        $region112: #{sag_model_25d_forward.1} parent=103 // pred_fallthru
          _
      $region104: #{sag_model_25d_forward.1} parent=5 // pred_fallthru
        _
      %p4923 = scmp.le.s32.totalorder 2, %s32
      // Predicated region
      $region113: #{sag_model_25d_forward.1} parent=5 // pred_check
        %p4924 = pneg %p4923
      $region114: #{sag_model_25d_forward.1} parent=5 // pred_check_branch
        %4926 = sbr.rel (%p4924) target = $region116
      $region115: #{sag_model_25d_forward.1} parent=5 // pred_region
        %s4927 = ssub.s32 %s32, 2
        // Predicated region
        $region117: #{sag_model_25d_forward.1} parent=115 // pred_check
          %p4928 = pneg %p512
        $region118: #{sag_model_25d_forward.1} parent=115 // pred_check_branch
          %4930 = sbr.rel (%p4928) target = $region120
        $region119: #{sag_model_25d_forward.1} parent=115 // pred_region
          %p4931 = scmp.lt.s32.totalorder %s38, 1
          %s4932 = scalar_select %p4931, %s38, 1
          %s4933 = smul.addr %s4932, 8
          %s4934 = scalar_lea.vmem %s21, %s4933
        $region120: #{sag_model_25d_forward.1} parent=115 // pred_fallthru
          _
        // Predicated region
        $region121: #{sag_model_25d_forward.1} parent=115 // pred_check
          %p4935 = pneg %p538
        $region122: #{sag_model_25d_forward.1} parent=115 // pred_check_branch
          %4937 = sbr.rel (%p4935) target = $region124
        $region123: #{sag_model_25d_forward.1} parent=115 // pred_region
          %s4938 = sand.u32 %s523, 1
          %s4939 = scalar_lea.sflag [#allocation3], %s4938
          %s4940 = sand.u32 %s523, 1
          %s4941 = smul.addr %s4940, 8
          %s4942 = scalar_lea.vmem [#allocation2], %s4941
          %4943 = dma.done %s4939, 128
        $region124: #{sag_model_25d_forward.1} parent=115 // pred_fallthru
          _
      $region116: #{sag_model_25d_forward.1} parent=5 // pred_fallthru
        _
    $region6: #{sag_model_25d_forward.1} parent=1 // loop_footer
      %s36 = sadd.s32 1, %s32
    $region7: #{sag_model_25d_forward.1} parent=1 // loop_footer_branch
      %31 = sbr.rel target = $region3
    $region8: #{sag_model_25d_forward.1} parent=1 // loop_exit
      _
    %4944 = vsyncpa [#allocation3], 1
    %s4945 = scalar_lea.sflag [#allocation3], 1
    %4946 = vsyncpa %s4945, 1

</llo_original>
